<compile_context>
chip_gen: v5e
topology: v5e:2x2
jax: 0.10.0
libtpu: 0.0.40
codegen_flags: <defaults>
</compile_context>

<pallas_src>
import functools
import math

import numpy as np
import jax
import jax.numpy as jnp
from jax.experimental import pallas as pl
from jax.experimental.pallas import tpu as pltpu

C = 128            # conv channel width used by every Lecnet block
FT = 16            # AdaptiveAvgPool1d target length
NUM_BLOCKS = 9
DENSE = 256
CLASS_NUM = 3
BN_EPS = 1e-5
NEG_BIG = -1e30    # "-inf" for maxpool padding (finite -> safe with 0*x)


# ----------------------------------------------------------------------------
# Pallas kernels
# ----------------------------------------------------------------------------
def fused_conv_kernel(x_ref, dww_ref, dwb_ref, s1_ref, t1_ref,
                      pww_ref, pwb_ref, s2_ref, t2_ref,
                      out_ref, seq_ref, *, lengths):
    """All 9 depthblocks for one batch element, fully in VMEM/registers.

    x_ref  : (L0+2, C) input, zero-padded by 1 row at each end (k=3 conv pad)
             and zero-padded on channels (block 0 has 1 real input channel).
    out_ref: (T_final, C) final conv activations (adaptive pool is folded
             into the dense head weights).
    seq_ref: VMEM scratch used to build the maxpool input sequence.
    """
    neg = jnp.full((1, C), NEG_BIG, jnp.float32)
    xp = x_ref[...]                                     # (L+2, C), padded

    for b in range(NUM_BLOCKS):
        L = lengths[b]
        M = L + 2                                       # len after pointwise
        P = M // 2 + 1                                  # len after maxpool

        # depthwise conv1d (k=3, s=1, pad=1, groups=C) + bias, ReLU, BN1
        dw = dww_ref[b]                                 # (3, C)
        y = (xp[0:L, :] * dw[0:1, :]
             + xp[1:L + 1, :] * dw[1:2, :]
             + xp[2:L + 2, :] * dw[2:3, :]
             + dwb_ref[b])
        y = jnp.maximum(y, 0.0) * s1_ref[b] + t1_ref[b]

        # pointwise conv1d (k=1, pad=1) -> length M: interior is a matmul on
        # the MXU, the two padded end positions see only the bias.  ReLU, BN2.
        z = jnp.dot(y, pww_ref[b], preferred_element_type=jnp.float32) + pwb_ref[b]
        z = jnp.maximum(z, 0.0) * s2_ref[b] + t2_ref[b]                 # (L, C)
        edge = jnp.maximum(pwb_ref[b], 0.0) * s2_ref[b] + t2_ref[b]     # (1, C)

        # maxpool1d k=2, s=2, pad=1 over the conceptual sequence
        # [edge, z[0..L-1], edge] with -inf padding:
        #   1) build the padded sequence [-big, edge, z, edge, -big] in scratch
        #   2) adjacent-pair max (vectorized)
        #   3) pick every other row with a 0/1 selection matmul whose extra
        #      all-zero first/last rows re-create the zero padding rows the
        #      next block's depthwise conv needs.
        seq_ref[0:1, :] = neg
        seq_ref[1:2, :] = edge
        seq_ref[2:L + 2, :] = z
        seq_ref[L + 2:L + 3, :] = edge
        seq_ref[L + 3:L + 4, :] = neg
        p_full = seq_ref[0:M + 2, :]                                    # (M+2, C)
        mx = jnp.maximum(p_full[0:M + 1, :], p_full[1:M + 2, :])        # (M+1, C)

        ri = jax.lax.broadcasted_iota(jnp.int32, (P + 2, M + 1), 0)
        ci = jax.lax.broadcasted_iota(jnp.int32, (P + 2, M + 1), 1)
        sel = jnp.where(ci == 2 * (ri - 1), 1.0, 0.0)                   # (P+2, M+1)
        xp = jnp.dot(sel, mx, preferred_element_type=jnp.float32)       # (P+2, C)

    T = lengths[NUM_BLOCKS]
    out_ref[...] = xp[1:T + 1, :]


def head_kernel(feat_ref, w0_ref, b0_ref, w1_ref, b1_ref,
                wo1a_ref, wo1b_ref, bo1_ref, wo2_ref, bo2_ref, out_ref):
    """Dense head, batched over both branches (they share weights):
    dense_0/tanh/dense_1/tanh on the stacked (2N, T*C) features, then split
    into the data/meta halves for out_1 (concat folded into wo1a/wo1b), out_2.
    """
    h = jnp.tanh(jnp.dot(feat_ref[...], w0_ref[...],
                         preferred_element_type=jnp.float32) + b0_ref[...])
    h = jnp.tanh(jnp.dot(h, w1_ref[...],
                         preferred_element_type=jnp.float32) + b1_ref[...])
    n = out_ref.shape[0]
    f, fm = h[:n, :], h[n:, :]
    o = (jnp.dot(f, wo1a_ref[...], preferred_element_type=jnp.float32)
         + jnp.dot(fm, wo1b_ref[...], preferred_element_type=jnp.float32)
         + bo1_ref[...])
    out_ref[...] = jnp.dot(o, wo2_ref[...],
                           preferred_element_type=jnp.float32) + bo2_ref[...]


# ----------------------------------------------------------------------------
# Wrappers (pallas_call plumbing + minimal glue)
# ----------------------------------------------------------------------------
def conv_features(x_all_ncl, prep):
    """x_all_ncl: (B, 1, L0) NCL  ->  (B, T_final, 128) final activations."""
    B, cin, L0 = x_all_ncl.shape
    lengths = prep['lengths']
    T = lengths[-1]

    x = jnp.transpose(x_all_ncl.astype(jnp.float32), (0, 2, 1))      # (B, L0, 1)
    x = jnp.pad(x, ((0, 0), (1, 1), (0, C - cin)))                   # (B, L0+2, C)

    seq_rows = max(lengths[:NUM_BLOCKS]) + 4
    seq_rows = ((seq_rows + 7) // 8) * 8

    def wspec(shape):
        return pl.BlockSpec(shape, lambda n, nd=len(shape): (0,) * nd)

    kernel = functools.partial(fused_conv_kernel, lengths=lengths)
    return pl.pallas_call(
        kernel,
        out_shape=jax.ShapeDtypeStruct((B, T, C), jnp.float32),
        grid=(B,),
        in_specs=[
            pl.BlockSpec((None, L0 + 2, C), lambda n: (n, 0, 0)),
            wspec(prep['dw_w'].shape), wspec(prep['dw_b'].shape),
            wspec(prep['s1'].shape), wspec(prep['t1'].shape),
            wspec(prep['pw_w'].shape), wspec(prep['pw_b'].shape),
            wspec(prep['s2'].shape), wspec(prep['t2'].shape),
        ],
        out_specs=pl.BlockSpec((None, T, C), lambda n: (n, 0, 0)),
        scratch_shapes=[pltpu.VMEM((seq_rows, C), jnp.float32)],
        compiler_params=pltpu.CompilerParams(dimension_semantics=("parallel",)),
    )(x, prep['dw_w'], prep['dw_b'], prep['s1'], prep['t1'],
      prep['pw_w'], prep['pw_b'], prep['s2'], prep['t2'])


def head(feat2d, prep):
    B = feat2d.shape[0]
    N = B // 2

    def fullspec(shape):
        return pl.BlockSpec(shape, lambda i, nd=len(shape): (0,) * nd)

    args = (feat2d, prep['w0_eff'], prep['b0'], prep['w1'], prep['b1'],
            prep['wo1a'], prep['wo1b'], prep['bo1'], prep['wo2'], prep['bo2'])
    return pl.pallas_call(
        head_kernel,
        out_shape=jax.ShapeDtypeStruct((N, CLASS_NUM), jnp.float32),
        grid=(1,),
        in_specs=[fullspec(a.shape) for a in args],
        out_specs=fullspec((N, CLASS_NUM)),
    )(*args)


def lecnet_forward(data, meta, prep):
    """data/meta: (N, 1, L) NCL -> (N, class_num) logits."""
    N = data.shape[0]
    x_all = jnp.concatenate([data, meta], axis=0)          # (2N, 1, L)
    feats = conv_features(x_all, prep)                     # (2N, T, C)
    T = feats.shape[1]
    feat2d = feats.reshape(2 * N, T * C)                   # (2N, T*C)
    return head(feat2d, prep)


# ----------------------------------------------------------------------------
# One-time parameter preparation (stacking / padding / pooling fold)
# ----------------------------------------------------------------------------
def prepare_params(params, L0):
    lengths = [L0]
    L = L0
    for _ in range(NUM_BLOCKS):
        L = (L + 2) // 2 + 1          # +2 from pointwise pad, then maxpool
        lengths.append(L)
    T = lengths[-1]

    def padc(a, axis):
        cfg = [(0, 0)] * a.ndim
        cfg[axis] = (0, C - a.shape[axis])
        return jnp.pad(a, cfg)

    blocks = params['blocks']
    prep = dict(
        lengths=tuple(lengths),
        dw_w=jnp.stack([padc(p['dw_w'], 1) for p in blocks]),   # (9, 3, C)
        dw_b=jnp.stack([padc(p['dw_b'], 1) for p in blocks]),   # (9, 1, C)
        s1=jnp.stack([padc(p['s1'], 1) for p in blocks]),
        t1=jnp.stack([padc(p['t1'], 1) for p in blocks]),
        pw_w=jnp.stack([padc(p['pw_w'], 0) for p in blocks]),   # (9, C, C)
        pw_b=jnp.stack([p['pw_b'] for p in blocks]),
        s2=jnp.stack([p['s2'] for p in blocks]),
        t2=jnp.stack([p['t2'] for p in blocks]),
    )

    # AdaptiveAvgPool1d(FT) + Flatten + dense_0 is linear -> fold the pooling
    # matrix A (FT, T) and the PyTorch (C, T)-major flatten order into w0.
    A = np.zeros((FT, T), np.float64)
    for j in range(FT):
        s = (j * T) // FT
        e = -(-((j + 1) * T) // FT)
        A[j, s:e] = 1.0 / (e - s)
    w0_np = np.asarray(params['w0'], np.float64)           # rows: c*FT + t
    w0_3d = w0_np.reshape(C, FT, DENSE).transpose(1, 0, 2)  # (FT, C, D)
    w0_eff = np.einsum('tp,tcd->pcd', A, w0_3d)             # (T, C, D)
    prep['w0_eff'] = jnp.asarray(w0_eff.reshape(T * C, DENSE), jnp.float32)

    for k in ('b0', 'w1', 'b1', 'wo1a', 'wo1b', 'bo1', 'wo2', 'bo2'):
        prep[k] = params[k]
    return prep


# ----------------------------------------------------------------------------
# Deterministic parameter init (synthetic; matches Lecnet shapes)
# ----------------------------------------------------------------------------
def _uni(key, shape, bound):
    return jax.random.uniform(key, shape, jnp.float32, -bound, bound)


def init_params(key):
    params = {'blocks': []}
    inv = 1.0 / math.sqrt(1.0 + BN_EPS)      # eval BN: running_mean=0, var=1
    for b in range(NUM_BLOCKS):
        cin = 1 if b == 0 else C
        key, k1, k2, k3, k4, k5, k6, k7, k8 = jax.random.split(key, 9)
        bd = 1.0 / math.sqrt(3.0)            # depthwise fan_in = 3
        bp = 1.0 / math.sqrt(cin)            # pointwise fan_in = cin
        params['blocks'].append(dict(
            dw_w=_uni(k1, (3, cin), bd),      # dw_w[k, c] == torch w[c, 0, k]
            dw_b=_uni(k2, (1, cin), bd),
            s1=(1.0 + 0.1 * jax.random.normal(k3, (1, cin), jnp.float32)) * inv,
            t1=0.1 * jax.random.normal(k4, (1, cin), jnp.float32),
            pw_w=_uni(k5, (cin, C), bp),      # pw_w == torch w[:, :, 0].T
            pw_b=_uni(k6, (1, C), bp),
            s2=(1.0 + 0.1 * jax.random.normal(k7, (1, C), jnp.float32)) * inv,
            t2=0.1 * jax.random.normal(k8, (1, C), jnp.float32)))
    ks = jax.random.split(key, 9)
    d_in = FT * C
    b0 = 1.0 / math.sqrt(d_in)
    b1 = 1.0 / math.sqrt(DENSE)
    bo1 = 1.0 / math.sqrt(2 * DENSE)
    bo2 = 1.0 / math.sqrt(128)
    params['w0'] = _uni(ks[0], (d_in, DENSE), b0)
    params['b0'] = _uni(ks[1], (1, DENSE), b0)
    params['w1'] = _uni(ks[2], (DENSE, DENSE), b1)
    params['b1'] = _uni(ks[3], (1, DENSE), b1)
    params['wo1a'] = _uni(ks[4], (DENSE, 128), bo1)   # out_1 weight rows 0:256
    params['wo1b'] = _uni(ks[5], (DENSE, 128), bo1)   # out_1 weight rows 256:512
    params['bo1'] = _uni(ks[6], (1, 128), bo1)
    params['wo2'] = _uni(ks[7], (128, CLASS_NUM), bo2)
    params['bo2'] = _uni(ks[8], (1, CLASS_NUM), bo2)
    return params


# ----------------------------------------------------------------------------
# Pure-JAX reference (lax.conv / reduce_window) for a correctness check
# ----------------------------------------------------------------------------
def _ref_branch(x_ncl, params):
    hp = jax.lax.Precision.HIGHEST
    x = x_ncl.astype(jnp.float32)
    for p in params['blocks']:
        cin = p['dw_w'].shape[1]
        dw_k = jnp.transpose(p['dw_w'])[:, None, :]              # (cin, 1, 3)
        y = jax.lax.conv_general_dilated(
            x, dw_k, window_strides=(1,), padding=((1, 1),),
            dimension_numbers=('NCH', 'OIH', 'NCH'),
            feature_group_count=cin, precision=hp)
        y = y + p['dw_b'][0][None, :, None]
        y = jnp.maximum(y, 0.0) * p['s1'][0][None, :, None] + p['t1'][0][None, :, None]
        pw_k = jnp.transpose(p['pw_w'])[:, :, None]              # (C, cin, 1)
        z = jax.lax.conv_general_dilated(
            y, pw_k, window_strides=(1,), padding=((1, 1),),
            dimension_numbers=('NCH', 'OIH', 'NCH'), precision=hp)
        z = z + p['pw_b'][0][None, :, None]
        z = jnp.maximum(z, 0.0) * p['s2'][0][None, :, None] + p['t2'][0][None, :, None]
        x = jax.lax.reduce_window(z, -jnp.inf, jax.lax.max,
                                  (1, 1, 2), (1, 1, 2),
                                  ((0, 0), (0, 0), (1, 1)))
    T = x.shape[2]
    cols = []
    for j in range(FT):
        s = (j * T) // FT
        e = -(-((j + 1) * T) // FT)
        cols.append(jnp.mean(x[:, :, s:e], axis=2, keepdims=True))
    flat = jnp.concatenate(cols, axis=2).reshape(x.shape[0], -1)
    h = jnp.tanh(jnp.dot(flat, params['w0'], precision=hp) + params['b0'])
    h = jnp.tanh(jnp.dot(h, params['w1'], precision=hp) + params['b1'])
    return h


def ref_forward(data, meta, params):
    hp = jax.lax.Precision.HIGHEST
    h = _ref_branch(data, params)
    hm = _ref_branch(meta, params)
    cat = jnp.concatenate([h, hm], axis=1)
    wo1 = jnp.concatenate([params['wo1a'], params['wo1b']], axis=0)
    o = jnp.dot(cat, wo1, precision=hp) + params['bo1']
    return jnp.dot(o, params['wo2'], precision=hp) + params['bo2']


# ----------------------------------------------------------------------------
if __name__ == "__main__":
    key = jax.random.PRNGKey(0)
    kp, kd, km = jax.random.split(key, 3)
    params = init_params(kp)

    N, L = 2, 16                                  # data/meta: (N, 1, L) NCL
    data = jax.random.normal(kd, (N, 1, L), jnp.float32)
    meta = jax.random.normal(km, (N, 1, L), jnp.float32)

    prep = prepare_params(params, L)              # once, outside the fwd path
    fwd = jax.jit(lambda d, m: lecnet_forward(d, m, prep))

    out = jax.block_until_ready(fwd(data, meta))  # (N, 3) logits

    ref = jax.block_until_ready(ref_forward(data, meta, params))
    np.testing.assert_allclose(np.asarray(out), np.asarray(ref),
                               rtol=2e-2, atol=2e-2)
    print("KERNEL_OK")
</pallas_src>

<mosaic_0001>
module attributes {stable_mosaic.version = 11 : i64} {
  func.func @fused_conv_kernel(%arg0: i32, %arg1: memref<1x18x128xf32, #tpu.memory_space<vmem>>, %arg2: memref<9x3x128xf32, #tpu.memory_space<vmem>>, %arg3: memref<9x1x128xf32, #tpu.memory_space<vmem>>, %arg4: memref<9x1x128xf32, #tpu.memory_space<vmem>>, %arg5: memref<9x1x128xf32, #tpu.memory_space<vmem>>, %arg6: memref<9x128x128xf32, #tpu.memory_space<vmem>>, %arg7: memref<9x1x128xf32, #tpu.memory_space<vmem>>, %arg8: memref<9x1x128xf32, #tpu.memory_space<vmem>>, %arg9: memref<9x1x128xf32, #tpu.memory_space<vmem>>, %arg10: memref<1x4x128xf32, #tpu.memory_space<vmem>>, %arg11: memref<24x128xf32, #tpu.memory_space<vmem>>) attributes {dimension_semantics = [#tpu.dimension_semantics<parallel>], iteration_bounds = array<i64: 4>, scalar_prefetch = 0 : i64, scratch_operands = 1 : i64, tpu.core_type = #tpu.core_type<tc>, window_params = [{transform_indices = @transform_0, window_bounds = array<i64: 1, 18, 128>}, {pipeline_mode = #tpu.pipeline_mode<synchronous>, transform_indices = @transform_1, window_bounds = array<i64: 9, 3, 128>}, {pipeline_mode = #tpu.pipeline_mode<synchronous>, transform_indices = @transform_2, window_bounds = array<i64: 9, 1, 128>}, {pipeline_mode = #tpu.pipeline_mode<synchronous>, transform_indices = @transform_3, window_bounds = array<i64: 9, 1, 128>}, {pipeline_mode = #tpu.pipeline_mode<synchronous>, transform_indices = @transform_4, window_bounds = array<i64: 9, 1, 128>}, {pipeline_mode = #tpu.pipeline_mode<synchronous>, transform_indices = @transform_5, window_bounds = array<i64: 9, 128, 128>}, {pipeline_mode = #tpu.pipeline_mode<synchronous>, transform_indices = @transform_6, window_bounds = array<i64: 9, 1, 128>}, {pipeline_mode = #tpu.pipeline_mode<synchronous>, transform_indices = @transform_7, window_bounds = array<i64: 9, 1, 128>}, {pipeline_mode = #tpu.pipeline_mode<synchronous>, transform_indices = @transform_8, window_bounds = array<i64: 9, 1, 128>}, {transform_indices = @transform_9, window_bounds = array<i64: 1, 4, 128>}]} {
    %cst = arith.constant -1.000000e+30 : f32
    %0 = vector.broadcast %cst : f32 to vector<1x128xf32>
    %c0 = arith.constant 0 : index
    %c0_0 = arith.constant 0 : index
    %c0_1 = arith.constant 0 : index
    %1 = vector.load %arg1[%c0, %c0_0, %c0_1] : memref<1x18x128xf32, #tpu.memory_space<vmem>>, vector<1x18x128xf32>
    %2 = vector.shape_cast %1 : vector<1x18x128xf32> to vector<18x128xf32>
    %c0_2 = arith.constant 0 : index
    %c0_3 = arith.constant 0 : index
    %c0_4 = arith.constant 0 : index
    %3 = vector.load %arg2[%c0_2, %c0_3, %c0_4] : memref<9x3x128xf32, #tpu.memory_space<vmem>>, vector<1x3x128xf32>
    %4 = vector.shape_cast %3 : vector<1x3x128xf32> to vector<3x128xf32>
    %5 = vector.extract_strided_slice %2 {offsets = [0, 0], sizes = [16, 128], strides = [1, 1]} : vector<18x128xf32> to vector<16x128xf32>
    %6 = vector.extract_strided_slice %4 {offsets = [0, 0], sizes = [1, 128], strides = [1, 1]} : vector<3x128xf32> to vector<1x128xf32>
    %7 = vector.broadcast %6 : vector<1x128xf32> to vector<16x128xf32>
    %8 = arith.mulf %5, %7 : vector<16x128xf32>
    %9 = vector.extract_strided_slice %2 {offsets = [1, 0], sizes = [16, 128], strides = [1, 1]} : vector<18x128xf32> to vector<16x128xf32>
    %10 = vector.extract_strided_slice %4 {offsets = [1, 0], sizes = [1, 128], strides = [1, 1]} : vector<3x128xf32> to vector<1x128xf32>
    %11 = vector.broadcast %10 : vector<1x128xf32> to vector<16x128xf32>
    %12 = arith.mulf %9, %11 : vector<16x128xf32>
    %13 = arith.addf %8, %12 : vector<16x128xf32>
    %14 = vector.extract_strided_slice %2 {offsets = [2, 0], sizes = [16, 128], strides = [1, 1]} : vector<18x128xf32> to vector<16x128xf32>
    %15 = vector.extract_strided_slice %4 {offsets = [2, 0], sizes = [1, 128], strides = [1, 1]} : vector<3x128xf32> to vector<1x128xf32>
    %16 = vector.broadcast %15 : vector<1x128xf32> to vector<16x128xf32>
    %17 = arith.mulf %14, %16 : vector<16x128xf32>
    %18 = arith.addf %13, %17 : vector<16x128xf32>
    %c0_5 = arith.constant 0 : index
    %c0_6 = arith.constant 0 : index
    %c0_7 = arith.constant 0 : index
    %19 = vector.load %arg3[%c0_5, %c0_6, %c0_7] : memref<9x1x128xf32, #tpu.memory_space<vmem>>, vector<1x1x128xf32>
    %20 = vector.shape_cast %19 : vector<1x1x128xf32> to vector<1x128xf32>
    %21 = vector.broadcast %20 : vector<1x128xf32> to vector<16x128xf32>
    %22 = arith.addf %18, %21 : vector<16x128xf32>
    %cst_8 = arith.constant 0.000000e+00 : f32
    %23 = vector.broadcast %cst_8 : f32 to vector<16x128xf32>
    %24 = arith.maximumf %22, %23 : vector<16x128xf32>
    %c0_9 = arith.constant 0 : index
    %c0_10 = arith.constant 0 : index
    %c0_11 = arith.constant 0 : index
    %25 = vector.load %arg4[%c0_9, %c0_10, %c0_11] : memref<9x1x128xf32, #tpu.memory_space<vmem>>, vector<1x1x128xf32>
    %26 = vector.shape_cast %25 : vector<1x1x128xf32> to vector<1x128xf32>
    %27 = vector.broadcast %26 : vector<1x128xf32> to vector<16x128xf32>
    %28 = arith.mulf %24, %27 : vector<16x128xf32>
    %c0_12 = arith.constant 0 : index
    %c0_13 = arith.constant 0 : index
    %c0_14 = arith.constant 0 : index
    %29 = vector.load %arg5[%c0_12, %c0_13, %c0_14] : memref<9x1x128xf32, #tpu.memory_space<vmem>>, vector<1x1x128xf32>
    %30 = vector.shape_cast %29 : vector<1x1x128xf32> to vector<1x128xf32>
    %31 = vector.broadcast %30 : vector<1x128xf32> to vector<16x128xf32>
    %32 = arith.addf %28, %31 : vector<16x128xf32>
    %c0_15 = arith.constant 0 : index
    %c0_16 = arith.constant 0 : index
    %c0_17 = arith.constant 0 : index
    %33 = vector.load %arg6[%c0_15, %c0_16, %c0_17] : memref<9x128x128xf32, #tpu.memory_space<vmem>>, vector<1x128x128xf32>
    %34 = vector.shape_cast %33 : vector<1x128x128xf32> to vector<128x128xf32>
    %cst_18 = arith.constant dense<0.000000e+00> : vector<16x128xf32>
    %35 = tpu.matmul %32, %34, %cst_18 {dimension_numbers = #tpu.dot_dimension_numbers<[1], [0], [0], [1], [0, 0, 1, 1], [], []>} : vector<16x128xf32>, vector<128x128xf32>, vector<16x128xf32> -> vector<16x128xf32>
    %c0_19 = arith.constant 0 : index
    %c0_20 = arith.constant 0 : index
    %c0_21 = arith.constant 0 : index
    %36 = vector.load %arg7[%c0_19, %c0_20, %c0_21] : memref<9x1x128xf32, #tpu.memory_space<vmem>>, vector<1x1x128xf32>
    %37 = vector.shape_cast %36 : vector<1x1x128xf32> to vector<1x128xf32>
    %38 = vector.broadcast %37 : vector<1x128xf32> to vector<16x128xf32>
    %39 = arith.addf %35, %38 : vector<16x128xf32>
    %cst_22 = arith.constant 0.000000e+00 : f32
    %40 = vector.broadcast %cst_22 : f32 to vector<16x128xf32>
    %41 = arith.maximumf %39, %40 : vector<16x128xf32>
    %c0_23 = arith.constant 0 : index
    %c0_24 = arith.constant 0 : index
    %c0_25 = arith.constant 0 : index
    %42 = vector.load %arg8[%c0_23, %c0_24, %c0_25] : memref<9x1x128xf32, #tpu.memory_space<vmem>>, vector<1x1x128xf32>
    %43 = vector.shape_cast %42 : vector<1x1x128xf32> to vector<1x128xf32>
    %44 = vector.broadcast %43 : vector<1x128xf32> to vector<16x128xf32>
    %45 = arith.mulf %41, %44 : vector<16x128xf32>
    %c0_26 = arith.constant 0 : index
    %c0_27 = arith.constant 0 : index
    %c0_28 = arith.constant 0 : index
    %46 = vector.load %arg9[%c0_26, %c0_27, %c0_28] : memref<9x1x128xf32, #tpu.memory_space<vmem>>, vector<1x1x128xf32>
    %47 = vector.shape_cast %46 : vector<1x1x128xf32> to vector<1x128xf32>
    %48 = vector.broadcast %47 : vector<1x128xf32> to vector<16x128xf32>
    %49 = arith.addf %45, %48 : vector<16x128xf32>
    %c0_29 = arith.constant 0 : index
    %c0_30 = arith.constant 0 : index
    %c0_31 = arith.constant 0 : index
    %50 = vector.load %arg7[%c0_29, %c0_30, %c0_31] : memref<9x1x128xf32, #tpu.memory_space<vmem>>, vector<1x1x128xf32>
    %51 = vector.shape_cast %50 : vector<1x1x128xf32> to vector<1x128xf32>
    %cst_32 = arith.constant 0.000000e+00 : f32
    %52 = vector.broadcast %cst_32 : f32 to vector<1x128xf32>
    %53 = arith.maximumf %51, %52 : vector<1x128xf32>
    %c0_33 = arith.constant 0 : index
    %c0_34 = arith.constant 0 : index
    %c0_35 = arith.constant 0 : index
    %54 = vector.load %arg8[%c0_33, %c0_34, %c0_35] : memref<9x1x128xf32, #tpu.memory_space<vmem>>, vector<1x1x128xf32>
    %55 = vector.shape_cast %54 : vector<1x1x128xf32> to vector<1x128xf32>
    %56 = arith.mulf %53, %55 : vector<1x128xf32>
    %c0_36 = arith.constant 0 : index
    %c0_37 = arith.constant 0 : index
    %c0_38 = arith.constant 0 : index
    %57 = vector.load %arg9[%c0_36, %c0_37, %c0_38] : memref<9x1x128xf32, #tpu.memory_space<vmem>>, vector<1x1x128xf32>
    %58 = vector.shape_cast %57 : vector<1x1x128xf32> to vector<1x128xf32>
    %59 = arith.addf %56, %58 : vector<1x128xf32>
    %c0_39 = arith.constant 0 : index
    %c0_40 = arith.constant 0 : index
    %60 = vector.load %arg11[%c0_39, %c0_40] : memref<24x128xf32, #tpu.memory_space<vmem>>, vector<1x128xf32>
    tpu.vector_store %arg11[%c0_39, %c0_40], %0 {strides = array<i32>} : memref<24x128xf32, #tpu.memory_space<vmem>>, vector<1x128xf32>,
    %c1 = arith.constant 1 : index
    %c0_41 = arith.constant 0 : index
    %61 = vector.load %arg11[%c1, %c0_41] : memref<24x128xf32, #tpu.memory_space<vmem>>, vector<1x128xf32>
    tpu.vector_store %arg11[%c1, %c0_41], %59 {strides = array<i32>} : memref<24x128xf32, #tpu.memory_space<vmem>>, vector<1x128xf32>,
    %c2 = arith.constant 2 : index
    %c0_42 = arith.constant 0 : index
    %62 = vector.load %arg11[%c2, %c0_42] : memref<24x128xf32, #tpu.memory_space<vmem>>, vector<16x128xf32>
    tpu.vector_store %arg11[%c2, %c0_42], %49 {strides = array<i32>} : memref<24x128xf32, #tpu.memory_space<vmem>>, vector<16x128xf32>,
    %c18 = arith.constant 18 : index
    %c0_43 = arith.constant 0 : index
    %63 = vector.load %arg11[%c18, %c0_43] : memref<24x128xf32, #tpu.memory_space<vmem>>, vector<1x128xf32>
    tpu.vector_store %arg11[%c18, %c0_43], %59 {strides = array<i32>} : memref<24x128xf32, #tpu.memory_space<vmem>>, vector<1x128xf32>,
    %c19 = arith.constant 19 : index
    %c0_44 = arith.constant 0 : index
    %64 = vector.load %arg11[%c19, %c0_44] : memref<24x128xf32, #tpu.memory_space<vmem>>, vector<1x128xf32>
    tpu.vector_store %arg11[%c19, %c0_44], %0 {strides = array<i32>} : memref<24x128xf32, #tpu.memory_space<vmem>>, vector<1x128xf32>,
    %c0_45 = arith.constant 0 : index
    %c0_46 = arith.constant 0 : index
    %65 = vector.load %arg11[%c0_45, %c0_46] : memref<24x128xf32, #tpu.memory_space<vmem>>, vector<20x128xf32>
    %66 = vector.extract_strided_slice %65 {offsets = [0, 0], sizes = [19, 128], strides = [1, 1]} : vector<20x128xf32> to vector<19x128xf32>
    %67 = vector.extract_strided_slice %65 {offsets = [1, 0], sizes = [19, 128], strides = [1, 1]} : vector<20x128xf32> to vector<19x128xf32>
    %68 = arith.maximumf %66, %67 : vector<19x128xf32>
    %69 = tpu.iota {dimensions = array<i32: 0>} : vector<12x19xi32>
    %70 = tpu.iota {dimensions = array<i32: 1>} : vector<12x19xi32>
    %c1_i32 = arith.constant 1 : i32
    %71 = vector.broadcast %c1_i32 : i32 to vector<12x19xi32>
    %72 = arith.subi %69, %71 : vector<12x19xi32>
    %c2_i32 = arith.constant 2 : i32
    %73 = vector.broadcast %c2_i32 : i32 to vector<12x19xi32>
    %74 = arith.muli %73, %72 : vector<12x19xi32>
    %75 = arith.cmpi eq, %70, %74 : vector<12x19xi32>
    %cst_47 = arith.constant 1.000000e+00 : f32
    %cst_48 = arith.constant 0.000000e+00 : f32
    %76 = vector.broadcast %cst_47 : f32 to vector<12x19xf32>
    %77 = vector.broadcast %cst_48 : f32 to vector<12x19xf32>
    %78 = arith.select %75, %76, %77 : vector<12x19xi1>, vector<12x19xf32>
    %cst_49 = arith.constant dense<0.000000e+00> : vector<12x128xf32>
    %79 = tpu.matmul %78, %68, %cst_49 {dimension_numbers = #tpu.dot_dimension_numbers<[1], [0], [0], [1], [0, 0, 1, 1], [], []>} : vector<12x19xf32>, vector<19x128xf32>, vector<12x128xf32> -> vector<12x128xf32>
    %c1_50 = arith.constant 1 : index
    %c0_51 = arith.constant 0 : index
    %c0_52 = arith.constant 0 : index
    %80 = vector.load %arg2[%c1_50, %c0_51, %c0_52] : memref<9x3x128xf32, #tpu.memory_space<vmem>>, vector<1x3x128xf32>
    %81 = vector.shape_cast %80 : vector<1x3x128xf32> to vector<3x128xf32>
    %82 = vector.extract_strided_slice %79 {offsets = [0, 0], sizes = [10, 128], strides = [1, 1]} : vector<12x128xf32> to vector<10x128xf32>
    %83 = vector.extract_strided_slice %81 {offsets = [0, 0], sizes = [1, 128], strides = [1, 1]} : vector<3x128xf32> to vector<1x128xf32>
    %84 = vector.broadcast %83 : vector<1x128xf32> to vector<10x128xf32>
    %85 = arith.mulf %82, %84 : vector<10x128xf32>
    %86 = vector.extract_strided_slice %79 {offsets = [1, 0], sizes = [10, 128], strides = [1, 1]} : vector<12x128xf32> to vector<10x128xf32>
    %87 = vector.extract_strided_slice %81 {offsets = [1, 0], sizes = [1, 128], strides = [1, 1]} : vector<3x128xf32> to vector<1x128xf32>
    %88 = vector.broadcast %87 : vector<1x128xf32> to vector<10x128xf32>
    %89 = arith.mulf %86, %88 : vector<10x128xf32>
    %90 = arith.addf %85, %89 : vector<10x128xf32>
    %91 = vector.extract_strided_slice %79 {offsets = [2, 0], sizes = [10, 128], strides = [1, 1]} : vector<12x128xf32> to vector<10x128xf32>
    %92 = vector.extract_strided_slice %81 {offsets = [2, 0], sizes = [1, 128], strides = [1, 1]} : vector<3x128xf32> to vector<1x128xf32>
    %93 = vector.broadcast %92 : vector<1x128xf32> to vector<10x128xf32>
    %94 = arith.mulf %91, %93 : vector<10x128xf32>
    %95 = arith.addf %90, %94 : vector<10x128xf32>
    %c1_53 = arith.constant 1 : index
    %c0_54 = arith.constant 0 : index
    %c0_55 = arith.constant 0 : index
    %96 = vector.load %arg3[%c1_53, %c0_54, %c0_55] : memref<9x1x128xf32, #tpu.memory_space<vmem>>, vector<1x1x128xf32>
    %97 = vector.shape_cast %96 : vector<1x1x128xf32> to vector<1x128xf32>
    %98 = vector.broadcast %97 : vector<1x128xf32> to vector<10x128xf32>
    %99 = arith.addf %95, %98 : vector<10x128xf32>
    %cst_56 = arith.constant 0.000000e+00 : f32
    %100 = vector.broadcast %cst_56 : f32 to vector<10x128xf32>
    %101 = arith.maximumf %99, %100 : vector<10x128xf32>
    %c1_57 = arith.constant 1 : index
    %c0_58 = arith.constant 0 : index
    %c0_59 = arith.constant 0 : index
    %102 = vector.load %arg4[%c1_57, %c0_58, %c0_59] : memref<9x1x128xf32, #tpu.memory_space<vmem>>, vector<1x1x128xf32>
    %103 = vector.shape_cast %102 : vector<1x1x128xf32> to vector<1x128xf32>
    %104 = vector.broadcast %103 : vector<1x128xf32> to vector<10x128xf32>
    %105 = arith.mulf %101, %104 : vector<10x128xf32>
    %c1_60 = arith.constant 1 : index
    %c0_61 = arith.constant 0 : index
    %c0_62 = arith.constant 0 : index
    %106 = vector.load %arg5[%c1_60, %c0_61, %c0_62] : memref<9x1x128xf32, #tpu.memory_space<vmem>>, vector<1x1x128xf32>
    %107 = vector.shape_cast %106 : vector<1x1x128xf32> to vector<1x128xf32>
    %108 = vector.broadcast %107 : vector<1x128xf32> to vector<10x128xf32>
    %109 = arith.addf %105, %108 : vector<10x128xf32>
    %c1_63 = arith.constant 1 : index
    %c0_64 = arith.constant 0 : index
    %c0_65 = arith.constant 0 : index
    %110 = vector.load %arg6[%c1_63, %c0_64, %c0_65] : memref<9x128x128xf32, #tpu.memory_space<vmem>>, vector<1x128x128xf32>
    %111 = vector.shape_cast %110 : vector<1x128x128xf32> to vector<128x128xf32>
    %cst_66 = arith.constant dense<0.000000e+00> : vector<10x128xf32>
    %112 = tpu.matmul %109, %111, %cst_66 {dimension_numbers = #tpu.dot_dimension_numbers<[1], [0], [0], [1], [0, 0, 1, 1], [], []>} : vector<10x128xf32>, vector<128x128xf32>, vector<10x128xf32> -> vector<10x128xf32>
    %c1_67 = arith.constant 1 : index
    %c0_68 = arith.constant 0 : index
    %c0_69 = arith.constant 0 : index
    %113 = vector.load %arg7[%c1_67, %c0_68, %c0_69] : memref<9x1x128xf32, #tpu.memory_space<vmem>>, vector<1x1x128xf32>
    %114 = vector.shape_cast %113 : vector<1x1x128xf32> to vector<1x128xf32>
    %115 = vector.broadcast %114 : vector<1x128xf32> to vector<10x128xf32>
    %116 = arith.addf %112, %115 : vector<10x128xf32>
    %cst_70 = arith.constant 0.000000e+00 : f32
    %117 = vector.broadcast %cst_70 : f32 to vector<10x128xf32>
    %118 = arith.maximumf %116, %117 : vector<10x128xf32>
    %c1_71 = arith.constant 1 : index
    %c0_72 = arith.constant 0 : index
    %c0_73 = arith.constant 0 : index
    %119 = vector.load %arg8[%c1_71, %c0_72, %c0_73] : memref<9x1x128xf32, #tpu.memory_space<vmem>>, vector<1x1x128xf32>
    %120 = vector.shape_cast %119 : vector<1x1x128xf32> to vector<1x128xf32>
    %121 = vector.broadcast %120 : vector<1x128xf32> to vector<10x128xf32>
    %122 = arith.mulf %118, %121 : vector<10x128xf32>
    %c1_74 = arith.constant 1 : index
    %c0_75 = arith.constant 0 : index
    %c0_76 = arith.constant 0 : index
    %123 = vector.load %arg9[%c1_74, %c0_75, %c0_76] : memref<9x1x128xf32, #tpu.memory_space<vmem>>, vector<1x1x128xf32>
    %124 = vector.shape_cast %123 : vector<1x1x128xf32> to vector<1x128xf32>
    %125 = vector.broadcast %124 : vector<1x128xf32> to vector<10x128xf32>
    %126 = arith.addf %122, %125 : vector<10x128xf32>
    %c1_77 = arith.constant 1 : index
    %c0_78 = arith.constant 0 : index
    %c0_79 = arith.constant 0 : index
    %127 = vector.load %arg7[%c1_77, %c0_78, %c0_79] : memref<9x1x128xf32, #tpu.memory_space<vmem>>, vector<1x1x128xf32>
    %128 = vector.shape_cast %127 : vector<1x1x128xf32> to vector<1x128xf32>
    %cst_80 = arith.constant 0.000000e+00 : f32
    %129 = vector.broadcast %cst_80 : f32 to vector<1x128xf32>
    %130 = arith.maximumf %128, %129 : vector<1x128xf32>
    %c1_81 = arith.constant 1 : index
    %c0_82 = arith.constant 0 : index
    %c0_83 = arith.constant 0 : index
    %131 = vector.load %arg8[%c1_81, %c0_82, %c0_83] : memref<9x1x128xf32, #tpu.memory_space<vmem>>, vector<1x1x128xf32>
    %132 = vector.shape_cast %131 : vector<1x1x128xf32> to vector<1x128xf32>
    %133 = arith.mulf %130, %132 : vector<1x128xf32>
    %c1_84 = arith.constant 1 : index
    %c0_85 = arith.constant 0 : index
    %c0_86 = arith.constant 0 : index
    %134 = vector.load %arg9[%c1_84, %c0_85, %c0_86] : memref<9x1x128xf32, #tpu.memory_space<vmem>>, vector<1x1x128xf32>
    %135 = vector.shape_cast %134 : vector<1x1x128xf32> to vector<1x128xf32>
    %136 = arith.addf %133, %135 : vector<1x128xf32>
    %c0_87 = arith.constant 0 : index
    %c0_88 = arith.constant 0 : index
    %137 = vector.load %arg11[%c0_87, %c0_88] : memref<24x128xf32, #tpu.memory_space<vmem>>, vector<1x128xf32>
    tpu.vector_store %arg11[%c0_87, %c0_88], %0 {strides = array<i32>} : memref<24x128xf32, #tpu.memory_space<vmem>>, vector<1x128xf32>,
    %c1_89 = arith.constant 1 : index
    %c0_90 = arith.constant 0 : index
    %138 = vector.load %arg11[%c1_89, %c0_90] : memref<24x128xf32, #tpu.memory_space<vmem>>, vector<1x128xf32>
    tpu.vector_store %arg11[%c1_89, %c0_90], %136 {strides = array<i32>} : memref<24x128xf32, #tpu.memory_space<vmem>>, vector<1x128xf32>,
    %c2_91 = arith.constant 2 : index
    %c0_92 = arith.constant 0 : index
    %139 = vector.load %arg11[%c2_91, %c0_92] : memref<24x128xf32, #tpu.memory_space<vmem>>, vector<10x128xf32>
    tpu.vector_store %arg11[%c2_91, %c0_92], %126 {strides = array<i32>} : memref<24x128xf32, #tpu.memory_space<vmem>>, vector<10x128xf32>,
    %c12 = arith.constant 12 : index
    %c0_93 = arith.constant 0 : index
    %140 = vector.load %arg11[%c12, %c0_93] : memref<24x128xf32, #tpu.memory_space<vmem>>, vector<1x128xf32>
    tpu.vector_store %arg11[%c12, %c0_93], %136 {strides = array<i32>} : memref<24x128xf32, #tpu.memory_space<vmem>>, vector<1x128xf32>,
    %c13 = arith.constant 13 : index
    %c0_94 = arith.constant 0 : index
    %141 = vector.load %arg11[%c13, %c0_94] : memref<24x128xf32, #tpu.memory_space<vmem>>, vector<1x128xf32>
    tpu.vector_store %arg11[%c13, %c0_94], %0 {strides = array<i32>} : memref<24x128xf32, #tpu.memory_space<vmem>>, vector<1x128xf32>,
    %c0_95 = arith.constant 0 : index
    %c0_96 = arith.constant 0 : index
    %142 = vector.load %arg11[%c0_95, %c0_96] : memref<24x128xf32, #tpu.memory_space<vmem>>, vector<14x128xf32>
    %143 = vector.extract_strided_slice %142 {offsets = [0, 0], sizes = [13, 128], strides = [1, 1]} : vector<14x128xf32> to vector<13x128xf32>
    %144 = vector.extract_strided_slice %142 {offsets = [1, 0], sizes = [13, 128], strides = [1, 1]} : vector<14x128xf32> to vector<13x128xf32>
    %145 = arith.maximumf %143, %144 : vector<13x128xf32>
    %146 = tpu.iota {dimensions = array<i32: 0>} : vector<9x13xi32>
    %147 = tpu.iota {dimensions = array<i32: 1>} : vector<9x13xi32>
    %c1_i32_97 = arith.constant 1 : i32
    %148 = vector.broadcast %c1_i32_97 : i32 to vector<9x13xi32>
    %149 = arith.subi %146, %148 : vector<9x13xi32>
    %c2_i32_98 = arith.constant 2 : i32
    %150 = vector.broadcast %c2_i32_98 : i32 to vector<9x13xi32>
    %151 = arith.muli %150, %149 : vector<9x13xi32>
    %152 = arith.cmpi eq, %147, %151 : vector<9x13xi32>
    %cst_99 = arith.constant 1.000000e+00 : f32
    %cst_100 = arith.constant 0.000000e+00 : f32
    %153 = vector.broadcast %cst_99 : f32 to vector<9x13xf32>
    %154 = vector.broadcast %cst_100 : f32 to vector<9x13xf32>
    %155 = arith.select %152, %153, %154 : vector<9x13xi1>, vector<9x13xf32>
    %cst_101 = arith.constant dense<0.000000e+00> : vector<9x128xf32>
    %156 = tpu.matmul %155, %145, %cst_101 {dimension_numbers = #tpu.dot_dimension_numbers<[1], [0], [0], [1], [0, 0, 1, 1], [], []>} : vector<9x13xf32>, vector<13x128xf32>, vector<9x128xf32> -> vector<9x128xf32>
    %c2_102 = arith.constant 2 : index
    %c0_103 = arith.constant 0 : index
    %c0_104 = arith.constant 0 : index
    %157 = vector.load %arg2[%c2_102, %c0_103, %c0_104] : memref<9x3x128xf32, #tpu.memory_space<vmem>>, vector<1x3x128xf32>
    %158 = vector.shape_cast %157 : vector<1x3x128xf32> to vector<3x128xf32>
    %159 = vector.extract_strided_slice %156 {offsets = [0, 0], sizes = [7, 128], strides = [1, 1]} : vector<9x128xf32> to vector<7x128xf32>
    %160 = vector.extract_strided_slice %158 {offsets = [0, 0], sizes = [1, 128], strides = [1, 1]} : vector<3x128xf32> to vector<1x128xf32>
    %161 = vector.broadcast %160 : vector<1x128xf32> to vector<7x128xf32>
    %162 = arith.mulf %159, %161 : vector<7x128xf32>
    %163 = vector.extract_strided_slice %156 {offsets = [1, 0], sizes = [7, 128], strides = [1, 1]} : vector<9x128xf32> to vector<7x128xf32>
    %164 = vector.extract_strided_slice %158 {offsets = [1, 0], sizes = [1, 128], strides = [1, 1]} : vector<3x128xf32> to vector<1x128xf32>
    %165 = vector.broadcast %164 : vector<1x128xf32> to vector<7x128xf32>
    %166 = arith.mulf %163, %165 : vector<7x128xf32>
    %167 = arith.addf %162, %166 : vector<7x128xf32>
    %168 = vector.extract_strided_slice %156 {offsets = [2, 0], sizes = [7, 128], strides = [1, 1]} : vector<9x128xf32> to vector<7x128xf32>
    %169 = vector.extract_strided_slice %158 {offsets = [2, 0], sizes = [1, 128], strides = [1, 1]} : vector<3x128xf32> to vector<1x128xf32>
    %170 = vector.broadcast %169 : vector<1x128xf32> to vector<7x128xf32>
    %171 = arith.mulf %168, %170 : vector<7x128xf32>
    %172 = arith.addf %167, %171 : vector<7x128xf32>
    %c2_105 = arith.constant 2 : index
    %c0_106 = arith.constant 0 : index
    %c0_107 = arith.constant 0 : index
    %173 = vector.load %arg3[%c2_105, %c0_106, %c0_107] : memref<9x1x128xf32, #tpu.memory_space<vmem>>, vector<1x1x128xf32>
    %174 = vector.shape_cast %173 : vector<1x1x128xf32> to vector<1x128xf32>
    %175 = vector.broadcast %174 : vector<1x128xf32> to vector<7x128xf32>
    %176 = arith.addf %172, %175 : vector<7x128xf32>
    %cst_108 = arith.constant 0.000000e+00 : f32
    %177 = vector.broadcast %cst_108 : f32 to vector<7x128xf32>
    %178 = arith.maximumf %176, %177 : vector<7x128xf32>
    %c2_109 = arith.constant 2 : index
    %c0_110 = arith.constant 0 : index
    %c0_111 = arith.constant 0 : index
    %179 = vector.load %arg4[%c2_109, %c0_110, %c0_111] : memref<9x1x128xf32, #tpu.memory_space<vmem>>, vector<1x1x128xf32>
    %180 = vector.shape_cast %179 : vector<1x1x128xf32> to vector<1x128xf32>
    %181 = vector.broadcast %180 : vector<1x128xf32> to vector<7x128xf32>
    %182 = arith.mulf %178, %181 : vector<7x128xf32>
    %c2_112 = arith.constant 2 : index
    %c0_113 = arith.constant 0 : index
    %c0_114 = arith.constant 0 : index
    %183 = vector.load %arg5[%c2_112, %c0_113, %c0_114] : memref<9x1x128xf32, #tpu.memory_space<vmem>>, vector<1x1x128xf32>
    %184 = vector.shape_cast %183 : vector<1x1x128xf32> to vector<1x128xf32>
    %185 = vector.broadcast %184 : vector<1x128xf32> to vector<7x128xf32>
    %186 = arith.addf %182, %185 : vector<7x128xf32>
    %c2_115 = arith.constant 2 : index
    %c0_116 = arith.constant 0 : index
    %c0_117 = arith.constant 0 : index
    %187 = vector.load %arg6[%c2_115, %c0_116, %c0_117] : memref<9x128x128xf32, #tpu.memory_space<vmem>>, vector<1x128x128xf32>
    %188 = vector.shape_cast %187 : vector<1x128x128xf32> to vector<128x128xf32>
    %cst_118 = arith.constant dense<0.000000e+00> : vector<7x128xf32>
    %189 = tpu.matmul %186, %188, %cst_118 {dimension_numbers = #tpu.dot_dimension_numbers<[1], [0], [0], [1], [0, 0, 1, 1], [], []>} : vector<7x128xf32>, vector<128x128xf32>, vector<7x128xf32> -> vector<7x128xf32>
    %c2_119 = arith.constant 2 : index
    %c0_120 = arith.constant 0 : index
    %c0_121 = arith.constant 0 : index
    %190 = vector.load %arg7[%c2_119, %c0_120, %c0_121] : memref<9x1x128xf32, #tpu.memory_space<vmem>>, vector<1x1x128xf32>
    %191 = vector.shape_cast %190 : vector<1x1x128xf32> to vector<1x128xf32>
    %192 = vector.broadcast %191 : vector<1x128xf32> to vector<7x128xf32>
    %193 = arith.addf %189, %192 : vector<7x128xf32>
    %cst_122 = arith.constant 0.000000e+00 : f32
    %194 = vector.broadcast %cst_122 : f32 to vector<7x128xf32>
    %195 = arith.maximumf %193, %194 : vector<7x128xf32>
    %c2_123 = arith.constant 2 : index
    %c0_124 = arith.constant 0 : index
    %c0_125 = arith.constant 0 : index
    %196 = vector.load %arg8[%c2_123, %c0_124, %c0_125] : memref<9x1x128xf32, #tpu.memory_space<vmem>>, vector<1x1x128xf32>
    %197 = vector.shape_cast %196 : vector<1x1x128xf32> to vector<1x128xf32>
    %198 = vector.broadcast %197 : vector<1x128xf32> to vector<7x128xf32>
    %199 = arith.mulf %195, %198 : vector<7x128xf32>
    %c2_126 = arith.constant 2 : index
    %c0_127 = arith.constant 0 : index
    %c0_128 = arith.constant 0 : index
    %200 = vector.load %arg9[%c2_126, %c0_127, %c0_128] : memref<9x1x128xf32, #tpu.memory_space<vmem>>, vector<1x1x128xf32>
    %201 = vector.shape_cast %200 : vector<1x1x128xf32> to vector<1x128xf32>
    %202 = vector.broadcast %201 : vector<1x128xf32> to vector<7x128xf32>
    %203 = arith.addf %199, %202 : vector<7x128xf32>
    %c2_129 = arith.constant 2 : index
    %c0_130 = arith.constant 0 : index
    %c0_131 = arith.constant 0 : index
    %204 = vector.load %arg7[%c2_129, %c0_130, %c0_131] : memref<9x1x128xf32, #tpu.memory_space<vmem>>, vector<1x1x128xf32>
    %205 = vector.shape_cast %204 : vector<1x1x128xf32> to vector<1x128xf32>
    %cst_132 = arith.constant 0.000000e+00 : f32
    %206 = vector.broadcast %cst_132 : f32 to vector<1x128xf32>
    %207 = arith.maximumf %205, %206 : vector<1x128xf32>
    %c2_133 = arith.constant 2 : index
    %c0_134 = arith.constant 0 : index
    %c0_135 = arith.constant 0 : index
    %208 = vector.load %arg8[%c2_133, %c0_134, %c0_135] : memref<9x1x128xf32, #tpu.memory_space<vmem>>, vector<1x1x128xf32>
    %209 = vector.shape_cast %208 : vector<1x1x128xf32> to vector<1x128xf32>
    %210 = arith.mulf %207, %209 : vector<1x128xf32>
    %c2_136 = arith.constant 2 : index
    %c0_137 = arith.constant 0 : index
    %c0_138 = arith.constant 0 : index
    %211 = vector.load %arg9[%c2_136, %c0_137, %c0_138] : memref<9x1x128xf32, #tpu.memory_space<vmem>>, vector<1x1x128xf32>
    %212 = vector.shape_cast %211 : vector<1x1x128xf32> to vector<1x128xf32>
    %213 = arith.addf %210, %212 : vector<1x128xf32>
    %c0_139 = arith.constant 0 : index
    %c0_140 = arith.constant 0 : index
    %214 = vector.load %arg11[%c0_139, %c0_140] : memref<24x128xf32, #tpu.memory_space<vmem>>, vector<1x128xf32>
    tpu.vector_store %arg11[%c0_139, %c0_140], %0 {strides = array<i32>} : memref<24x128xf32, #tpu.memory_space<vmem>>, vector<1x128xf32>,
    %c1_141 = arith.constant 1 : index
    %c0_142 = arith.constant 0 : index
    %215 = vector.load %arg11[%c1_141, %c0_142] : memref<24x128xf32, #tpu.memory_space<vmem>>, vector<1x128xf32>
    tpu.vector_store %arg11[%c1_141, %c0_142], %213 {strides = array<i32>} : memref<24x128xf32, #tpu.memory_space<vmem>>, vector<1x128xf32>,
    %c2_143 = arith.constant 2 : index
    %c0_144 = arith.constant 0 : index
    %216 = vector.load %arg11[%c2_143, %c0_144] : memref<24x128xf32, #tpu.memory_space<vmem>>, vector<7x128xf32>
    tpu.vector_store %arg11[%c2_143, %c0_144], %203 {strides = array<i32>} : memref<24x128xf32, #tpu.memory_space<vmem>>, vector<7x128xf32>,
    %c9 = arith.constant 9 : index
    %c0_145 = arith.constant 0 : index
    %217 = vector.load %arg11[%c9, %c0_145] : memref<24x128xf32, #tpu.memory_space<vmem>>, vector<1x128xf32>
    tpu.vector_store %arg11[%c9, %c0_145], %213 {strides = array<i32>} : memref<24x128xf32, #tpu.memory_space<vmem>>, vector<1x128xf32>,
    %c10 = arith.constant 10 : index
    %c0_146 = arith.constant 0 : index
    %218 = vector.load %arg11[%c10, %c0_146] : memref<24x128xf32, #tpu.memory_space<vmem>>, vector<1x128xf32>
    tpu.vector_store %arg11[%c10, %c0_146], %0 {strides = array<i32>} : memref<24x128xf32, #tpu.memory_space<vmem>>, vector<1x128xf32>,
    %c0_147 = arith.constant 0 : index
    %c0_148 = arith.constant 0 : index
    %219 = vector.load %arg11[%c0_147, %c0_148] : memref<24x128xf32, #tpu.memory_space<vmem>>, vector<11x128xf32>
    %220 = vector.extract_strided_slice %219 {offsets = [0, 0], sizes = [10, 128], strides = [1, 1]} : vector<11x128xf32> to vector<10x128xf32>
    %221 = vector.extract_strided_slice %219 {offsets = [1, 0], sizes = [10, 128], strides = [1, 1]} : vector<11x128xf32> to vector<10x128xf32>
    %222 = arith.maximumf %220, %221 : vector<10x128xf32>
    %223 = tpu.iota {dimensions = array<i32: 0>} : vector<7x10xi32>
    %224 = tpu.iota {dimensions = array<i32: 1>} : vector<7x10xi32>
    %c1_i32_149 = arith.constant 1 : i32
    %225 = vector.broadcast %c1_i32_149 : i32 to vector<7x10xi32>
    %226 = arith.subi %223, %225 : vector<7x10xi32>
    %c2_i32_150 = arith.constant 2 : i32
    %227 = vector.broadcast %c2_i32_150 : i32 to vector<7x10xi32>
    %228 = arith.muli %227, %226 : vector<7x10xi32>
    %229 = arith.cmpi eq, %224, %228 : vector<7x10xi32>
    %cst_151 = arith.constant 1.000000e+00 : f32
    %cst_152 = arith.constant 0.000000e+00 : f32
    %230 = vector.broadcast %cst_151 : f32 to vector<7x10xf32>
    %231 = vector.broadcast %cst_152 : f32 to vector<7x10xf32>
    %232 = arith.select %229, %230, %231 : vector<7x10xi1>, vector<7x10xf32>
    %cst_153 = arith.constant dense<0.000000e+00> : vector<7x128xf32>
    %233 = tpu.matmul %232, %222, %cst_153 {dimension_numbers = #tpu.dot_dimension_numbers<[1], [0], [0], [1], [0, 0, 1, 1], [], []>} : vector<7x10xf32>, vector<10x128xf32>, vector<7x128xf32> -> vector<7x128xf32>
    %c3 = arith.constant 3 : index
    %c0_154 = arith.constant 0 : index
    %c0_155 = arith.constant 0 : index
    %234 = vector.load %arg2[%c3, %c0_154, %c0_155] : memref<9x3x128xf32, #tpu.memory_space<vmem>>, vector<1x3x128xf32>
    %235 = vector.shape_cast %234 : vector<1x3x128xf32> to vector<3x128xf32>
    %236 = vector.extract_strided_slice %233 {offsets = [0, 0], sizes = [5, 128], strides = [1, 1]} : vector<7x128xf32> to vector<5x128xf32>
    %237 = vector.extract_strided_slice %235 {offsets = [0, 0], sizes = [1, 128], strides = [1, 1]} : vector<3x128xf32> to vector<1x128xf32>
    %238 = vector.broadcast %237 : vector<1x128xf32> to vector<5x128xf32>
    %239 = arith.mulf %236, %238 : vector<5x128xf32>
    %240 = vector.extract_strided_slice %233 {offsets = [1, 0], sizes = [5, 128], strides = [1, 1]} : vector<7x128xf32> to vector<5x128xf32>
    %241 = vector.extract_strided_slice %235 {offsets = [1, 0], sizes = [1, 128], strides = [1, 1]} : vector<3x128xf32> to vector<1x128xf32>
    %242 = vector.broadcast %241 : vector<1x128xf32> to vector<5x128xf32>
    %243 = arith.mulf %240, %242 : vector<5x128xf32>
    %244 = arith.addf %239, %243 : vector<5x128xf32>
    %245 = vector.extract_strided_slice %233 {offsets = [2, 0], sizes = [5, 128], strides = [1, 1]} : vector<7x128xf32> to vector<5x128xf32>
    %246 = vector.extract_strided_slice %235 {offsets = [2, 0], sizes = [1, 128], strides = [1, 1]} : vector<3x128xf32> to vector<1x128xf32>
    %247 = vector.broadcast %246 : vector<1x128xf32> to vector<5x128xf32>
    %248 = arith.mulf %245, %247 : vector<5x128xf32>
    %249 = arith.addf %244, %248 : vector<5x128xf32>
    %c3_156 = arith.constant 3 : index
    %c0_157 = arith.constant 0 : index
    %c0_158 = arith.constant 0 : index
    %250 = vector.load %arg3[%c3_156, %c0_157, %c0_158] : memref<9x1x128xf32, #tpu.memory_space<vmem>>, vector<1x1x128xf32>
    %251 = vector.shape_cast %250 : vector<1x1x128xf32> to vector<1x128xf32>
    %252 = vector.broadcast %251 : vector<1x128xf32> to vector<5x128xf32>
    %253 = arith.addf %249, %252 : vector<5x128xf32>
    %cst_159 = arith.constant 0.000000e+00 : f32
    %254 = vector.broadcast %cst_159 : f32 to vector<5x128xf32>
    %255 = arith.maximumf %253, %254 : vector<5x128xf32>
    %c3_160 = arith.constant 3 : index
    %c0_161 = arith.constant 0 : index
    %c0_162 = arith.constant 0 : index
    %256 = vector.load %arg4[%c3_160, %c0_161, %c0_162] : memref<9x1x128xf32, #tpu.memory_space<vmem>>, vector<1x1x128xf32>
    %257 = vector.shape_cast %256 : vector<1x1x128xf32> to vector<1x128xf32>
    %258 = vector.broadcast %257 : vector<1x128xf32> to vector<5x128xf32>
    %259 = arith.mulf %255, %258 : vector<5x128xf32>
    %c3_163 = arith.constant 3 : index
    %c0_164 = arith.constant 0 : index
    %c0_165 = arith.constant 0 : index
    %260 = vector.load %arg5[%c3_163, %c0_164, %c0_165] : memref<9x1x128xf32, #tpu.memory_space<vmem>>, vector<1x1x128xf32>
    %261 = vector.shape_cast %260 : vector<1x1x128xf32> to vector<1x128xf32>
    %262 = vector.broadcast %261 : vector<1x128xf32> to vector<5x128xf32>
    %263 = arith.addf %259, %262 : vector<5x128xf32>
    %c3_166 = arith.constant 3 : index
    %c0_167 = arith.constant 0 : index
    %c0_168 = arith.constant 0 : index
    %264 = vector.load %arg6[%c3_166, %c0_167, %c0_168] : memref<9x128x128xf32, #tpu.memory_space<vmem>>, vector<1x128x128xf32>
    %265 = vector.shape_cast %264 : vector<1x128x128xf32> to vector<128x128xf32>
    %cst_169 = arith.constant dense<0.000000e+00> : vector<5x128xf32>
    %266 = tpu.matmul %263, %265, %cst_169 {dimension_numbers = #tpu.dot_dimension_numbers<[1], [0], [0], [1], [0, 0, 1, 1], [], []>} : vector<5x128xf32>, vector<128x128xf32>, vector<5x128xf32> -> vector<5x128xf32>
    %c3_170 = arith.constant 3 : index
    %c0_171 = arith.constant 0 : index
    %c0_172 = arith.constant 0 : index
    %267 = vector.load %arg7[%c3_170, %c0_171, %c0_172] : memref<9x1x128xf32, #tpu.memory_space<vmem>>, vector<1x1x128xf32>
    %268 = vector.shape_cast %267 : vector<1x1x128xf32> to vector<1x128xf32>
    %269 = vector.broadcast %268 : vector<1x128xf32> to vector<5x128xf32>
    %270 = arith.addf %266, %269 : vector<5x128xf32>
    %cst_173 = arith.constant 0.000000e+00 : f32
    %271 = vector.broadcast %cst_173 : f32 to vector<5x128xf32>
    %272 = arith.maximumf %270, %271 : vector<5x128xf32>
    %c3_174 = arith.constant 3 : index
    %c0_175 = arith.constant 0 : index
    %c0_176 = arith.constant 0 : index
    %273 = vector.load %arg8[%c3_174, %c0_175, %c0_176] : memref<9x1x128xf32, #tpu.memory_space<vmem>>, vector<1x1x128xf32>
    %274 = vector.shape_cast %273 : vector<1x1x128xf32> to vector<1x128xf32>
    %275 = vector.broadcast %274 : vector<1x128xf32> to vector<5x128xf32>
    %276 = arith.mulf %272, %275 : vector<5x128xf32>
    %c3_177 = arith.constant 3 : index
    %c0_178 = arith.constant 0 : index
    %c0_179 = arith.constant 0 : index
    %277 = vector.load %arg9[%c3_177, %c0_178, %c0_179] : memref<9x1x128xf32, #tpu.memory_space<vmem>>, vector<1x1x128xf32>
    %278 = vector.shape_cast %277 : vector<1x1x128xf32> to vector<1x128xf32>
    %279 = vector.broadcast %278 : vector<1x128xf32> to vector<5x128xf32>
    %280 = arith.addf %276, %279 : vector<5x128xf32>
    %c3_180 = arith.constant 3 : index
    %c0_181 = arith.constant 0 : index
    %c0_182 = arith.constant 0 : index
    %281 = vector.load %arg7[%c3_180, %c0_181, %c0_182] : memref<9x1x128xf32, #tpu.memory_space<vmem>>, vector<1x1x128xf32>
    %282 = vector.shape_cast %281 : vector<1x1x128xf32> to vector<1x128xf32>
    %cst_183 = arith.constant 0.000000e+00 : f32
    %283 = vector.broadcast %cst_183 : f32 to vector<1x128xf32>
    %284 = arith.maximumf %282, %283 : vector<1x128xf32>
    %c3_184 = arith.constant 3 : index
    %c0_185 = arith.constant 0 : index
    %c0_186 = arith.constant 0 : index
    %285 = vector.load %arg8[%c3_184, %c0_185, %c0_186] : memref<9x1x128xf32, #tpu.memory_space<vmem>>, vector<1x1x128xf32>
    %286 = vector.shape_cast %285 : vector<1x1x128xf32> to vector<1x128xf32>
    %287 = arith.mulf %284, %286 : vector<1x128xf32>
    %c3_187 = arith.constant 3 : index
    %c0_188 = arith.constant 0 : index
    %c0_189 = arith.constant 0 : index
    %288 = vector.load %arg9[%c3_187, %c0_188, %c0_189] : memref<9x1x128xf32, #tpu.memory_space<vmem>>, vector<1x1x128xf32>
    %289 = vector.shape_cast %288 : vector<1x1x128xf32> to vector<1x128xf32>
    %290 = arith.addf %287, %289 : vector<1x128xf32>
    %c0_190 = arith.constant 0 : index
    %c0_191 = arith.constant 0 : index
    %291 = vector.load %arg11[%c0_190, %c0_191] : memref<24x128xf32, #tpu.memory_space<vmem>>, vector<1x128xf32>
    tpu.vector_store %arg11[%c0_190, %c0_191], %0 {strides = array<i32>} : memref<24x128xf32, #tpu.memory_space<vmem>>, vector<1x128xf32>,
    %c1_192 = arith.constant 1 : index
    %c0_193 = arith.constant 0 : index
    %292 = vector.load %arg11[%c1_192, %c0_193] : memref<24x128xf32, #tpu.memory_space<vmem>>, vector<1x128xf32>
    tpu.vector_store %arg11[%c1_192, %c0_193], %290 {strides = array<i32>} : memref<24x128xf32, #tpu.memory_space<vmem>>, vector<1x128xf32>,
    %c2_194 = arith.constant 2 : index
    %c0_195 = arith.constant 0 : index
    %293 = vector.load %arg11[%c2_194, %c0_195] : memref<24x128xf32, #tpu.memory_space<vmem>>, vector<5x128xf32>
    tpu.vector_store %arg11[%c2_194, %c0_195], %280 {strides = array<i32>} : memref<24x128xf32, #tpu.memory_space<vmem>>, vector<5x128xf32>,
    %c7 = arith.constant 7 : index
    %c0_196 = arith.constant 0 : index
    %294 = vector.load %arg11[%c7, %c0_196] : memref<24x128xf32, #tpu.memory_space<vmem>>, vector<1x128xf32>
    tpu.vector_store %arg11[%c7, %c0_196], %290 {strides = array<i32>} : memref<24x128xf32, #tpu.memory_space<vmem>>, vector<1x128xf32>,
    %c8 = arith.constant 8 : index
    %c0_197 = arith.constant 0 : index
    %295 = vector.load %arg11[%c8, %c0_197] : memref<24x128xf32, #tpu.memory_space<vmem>>, vector<1x128xf32>
    tpu.vector_store %arg11[%c8, %c0_197], %0 {strides = array<i32>} : memref<24x128xf32, #tpu.memory_space<vmem>>, vector<1x128xf32>,
    %c0_198 = arith.constant 0 : index
    %c0_199 = arith.constant 0 : index
    %296 = vector.load %arg11[%c0_198, %c0_199] : memref<24x128xf32, #tpu.memory_space<vmem>>, vector<9x128xf32>
    %297 = vector.extract_strided_slice %296 {offsets = [0, 0], sizes = [8, 128], strides = [1, 1]} : vector<9x128xf32> to vector<8x128xf32>
    %298 = vector.extract_strided_slice %296 {offsets = [1, 0], sizes = [8, 128], strides = [1, 1]} : vector<9x128xf32> to vector<8x128xf32>
    %299 = arith.maximumf %297, %298 : vector<8x128xf32>
    %300 = tpu.iota {dimensions = array<i32: 0>} : vector<6x8xi32>
    %301 = tpu.iota {dimensions = array<i32: 1>} : vector<6x8xi32>
    %c1_i32_200 = arith.constant 1 : i32
    %302 = vector.broadcast %c1_i32_200 : i32 to vector<6x8xi32>
    %303 = arith.subi %300, %302 : vector<6x8xi32>
    %c2_i32_201 = arith.constant 2 : i32
    %304 = vector.broadcast %c2_i32_201 : i32 to vector<6x8xi32>
    %305 = arith.muli %304, %303 : vector<6x8xi32>
    %306 = arith.cmpi eq, %301, %305 : vector<6x8xi32>
    %cst_202 = arith.constant 1.000000e+00 : f32
    %cst_203 = arith.constant 0.000000e+00 : f32
    %307 = vector.broadcast %cst_202 : f32 to vector<6x8xf32>
    %308 = vector.broadcast %cst_203 : f32 to vector<6x8xf32>
    %309 = arith.select %306, %307, %308 : vector<6x8xi1>, vector<6x8xf32>
    %cst_204 = arith.constant dense<0.000000e+00> : vector<6x128xf32>
    %310 = tpu.matmul %309, %299, %cst_204 {dimension_numbers = #tpu.dot_dimension_numbers<[1], [0], [0], [1], [0, 0, 1, 1], [], []>} : vector<6x8xf32>, vector<8x128xf32>, vector<6x128xf32> -> vector<6x128xf32>
    %c4 = arith.constant 4 : index
    %c0_205 = arith.constant 0 : index
    %c0_206 = arith.constant 0 : index
    %311 = vector.load %arg2[%c4, %c0_205, %c0_206] : memref<9x3x128xf32, #tpu.memory_space<vmem>>, vector<1x3x128xf32>
    %312 = vector.shape_cast %311 : vector<1x3x128xf32> to vector<3x128xf32>
    %313 = vector.extract_strided_slice %310 {offsets = [0, 0], sizes = [4, 128], strides = [1, 1]} : vector<6x128xf32> to vector<4x128xf32>
    %314 = vector.extract_strided_slice %312 {offsets = [0, 0], sizes = [1, 128], strides = [1, 1]} : vector<3x128xf32> to vector<1x128xf32>
    %315 = vector.broadcast %314 : vector<1x128xf32> to vector<4x128xf32>
    %316 = arith.mulf %313, %315 : vector<4x128xf32>
    %317 = vector.extract_strided_slice %310 {offsets = [1, 0], sizes = [4, 128], strides = [1, 1]} : vector<6x128xf32> to vector<4x128xf32>
    %318 = vector.extract_strided_slice %312 {offsets = [1, 0], sizes = [1, 128], strides = [1, 1]} : vector<3x128xf32> to vector<1x128xf32>
    %319 = vector.broadcast %318 : vector<1x128xf32> to vector<4x128xf32>
    %320 = arith.mulf %317, %319 : vector<4x128xf32>
    %321 = arith.addf %316, %320 : vector<4x128xf32>
    %322 = vector.extract_strided_slice %310 {offsets = [2, 0], sizes = [4, 128], strides = [1, 1]} : vector<6x128xf32> to vector<4x128xf32>
    %323 = vector.extract_strided_slice %312 {offsets = [2, 0], sizes = [1, 128], strides = [1, 1]} : vector<3x128xf32> to vector<1x128xf32>
    %324 = vector.broadcast %323 : vector<1x128xf32> to vector<4x128xf32>
    %325 = arith.mulf %322, %324 : vector<4x128xf32>
    %326 = arith.addf %321, %325 : vector<4x128xf32>
    %c4_207 = arith.constant 4 : index
    %c0_208 = arith.constant 0 : index
    %c0_209 = arith.constant 0 : index
    %327 = vector.load %arg3[%c4_207, %c0_208, %c0_209] : memref<9x1x128xf32, #tpu.memory_space<vmem>>, vector<1x1x128xf32>
    %328 = vector.shape_cast %327 : vector<1x1x128xf32> to vector<1x128xf32>
    %329 = vector.broadcast %328 : vector<1x128xf32> to vector<4x128xf32>
    %330 = arith.addf %326, %329 : vector<4x128xf32>
    %cst_210 = arith.constant 0.000000e+00 : f32
    %331 = vector.broadcast %cst_210 : f32 to vector<4x128xf32>
    %332 = arith.maximumf %330, %331 : vector<4x128xf32>
    %c4_211 = arith.constant 4 : index
    %c0_212 = arith.constant 0 : index
    %c0_213 = arith.constant 0 : index
    %333 = vector.load %arg4[%c4_211, %c0_212, %c0_213] : memref<9x1x128xf32, #tpu.memory_space<vmem>>, vector<1x1x128xf32>
    %334 = vector.shape_cast %333 : vector<1x1x128xf32> to vector<1x128xf32>
    %335 = vector.broadcast %334 : vector<1x128xf32> to vector<4x128xf32>
    %336 = arith.mulf %332, %335 : vector<4x128xf32>
    %c4_214 = arith.constant 4 : index
    %c0_215 = arith.constant 0 : index
    %c0_216 = arith.constant 0 : index
    %337 = vector.load %arg5[%c4_214, %c0_215, %c0_216] : memref<9x1x128xf32, #tpu.memory_space<vmem>>, vector<1x1x128xf32>
    %338 = vector.shape_cast %337 : vector<1x1x128xf32> to vector<1x128xf32>
    %339 = vector.broadcast %338 : vector<1x128xf32> to vector<4x128xf32>
    %340 = arith.addf %336, %339 : vector<4x128xf32>
    %c4_217 = arith.constant 4 : index
    %c0_218 = arith.constant 0 : index
    %c0_219 = arith.constant 0 : index
    %341 = vector.load %arg6[%c4_217, %c0_218, %c0_219] : memref<9x128x128xf32, #tpu.memory_space<vmem>>, vector<1x128x128xf32>
    %342 = vector.shape_cast %341 : vector<1x128x128xf32> to vector<128x128xf32>
    %cst_220 = arith.constant dense<0.000000e+00> : vector<4x128xf32>
    %343 = tpu.matmul %340, %342, %cst_220 {dimension_numbers = #tpu.dot_dimension_numbers<[1], [0], [0], [1], [0, 0, 1, 1], [], []>} : vector<4x128xf32>, vector<128x128xf32>, vector<4x128xf32> -> vector<4x128xf32>
    %c4_221 = arith.constant 4 : index
    %c0_222 = arith.constant 0 : index
    %c0_223 = arith.constant 0 : index
    %344 = vector.load %arg7[%c4_221, %c0_222, %c0_223] : memref<9x1x128xf32, #tpu.memory_space<vmem>>, vector<1x1x128xf32>
    %345 = vector.shape_cast %344 : vector<1x1x128xf32> to vector<1x128xf32>
    %346 = vector.broadcast %345 : vector<1x128xf32> to vector<4x128xf32>
    %347 = arith.addf %343, %346 : vector<4x128xf32>
    %cst_224 = arith.constant 0.000000e+00 : f32
    %348 = vector.broadcast %cst_224 : f32 to vector<4x128xf32>
    %349 = arith.maximumf %347, %348 : vector<4x128xf32>
    %c4_225 = arith.constant 4 : index
    %c0_226 = arith.constant 0 : index
    %c0_227 = arith.constant 0 : index
    %350 = vector.load %arg8[%c4_225, %c0_226, %c0_227] : memref<9x1x128xf32, #tpu.memory_space<vmem>>, vector<1x1x128xf32>
    %351 = vector.shape_cast %350 : vector<1x1x128xf32> to vector<1x128xf32>
    %352 = vector.broadcast %351 : vector<1x128xf32> to vector<4x128xf32>
    %353 = arith.mulf %349, %352 : vector<4x128xf32>
    %c4_228 = arith.constant 4 : index
    %c0_229 = arith.constant 0 : index
    %c0_230 = arith.constant 0 : index
    %354 = vector.load %arg9[%c4_228, %c0_229, %c0_230] : memref<9x1x128xf32, #tpu.memory_space<vmem>>, vector<1x1x128xf32>
    %355 = vector.shape_cast %354 : vector<1x1x128xf32> to vector<1x128xf32>
    %356 = vector.broadcast %355 : vector<1x128xf32> to vector<4x128xf32>
    %357 = arith.addf %353, %356 : vector<4x128xf32>
    %c4_231 = arith.constant 4 : index
    %c0_232 = arith.constant 0 : index
    %c0_233 = arith.constant 0 : index
    %358 = vector.load %arg7[%c4_231, %c0_232, %c0_233] : memref<9x1x128xf32, #tpu.memory_space<vmem>>, vector<1x1x128xf32>
    %359 = vector.shape_cast %358 : vector<1x1x128xf32> to vector<1x128xf32>
    %cst_234 = arith.constant 0.000000e+00 : f32
    %360 = vector.broadcast %cst_234 : f32 to vector<1x128xf32>
    %361 = arith.maximumf %359, %360 : vector<1x128xf32>
    %c4_235 = arith.constant 4 : index
    %c0_236 = arith.constant 0 : index
    %c0_237 = arith.constant 0 : index
    %362 = vector.load %arg8[%c4_235, %c0_236, %c0_237] : memref<9x1x128xf32, #tpu.memory_space<vmem>>, vector<1x1x128xf32>
    %363 = vector.shape_cast %362 : vector<1x1x128xf32> to vector<1x128xf32>
    %364 = arith.mulf %361, %363 : vector<1x128xf32>
    %c4_238 = arith.constant 4 : index
    %c0_239 = arith.constant 0 : index
    %c0_240 = arith.constant 0 : index
    %365 = vector.load %arg9[%c4_238, %c0_239, %c0_240] : memref<9x1x128xf32, #tpu.memory_space<vmem>>, vector<1x1x128xf32>
    %366 = vector.shape_cast %365 : vector<1x1x128xf32> to vector<1x128xf32>
    %367 = arith.addf %364, %366 : vector<1x128xf32>
    %c0_241 = arith.constant 0 : index
    %c0_242 = arith.constant 0 : index
    %368 = vector.load %arg11[%c0_241, %c0_242] : memref<24x128xf32, #tpu.memory_space<vmem>>, vector<1x128xf32>
    tpu.vector_store %arg11[%c0_241, %c0_242], %0 {strides = array<i32>} : memref<24x128xf32, #tpu.memory_space<vmem>>, vector<1x128xf32>,
    %c1_243 = arith.constant 1 : index
    %c0_244 = arith.constant 0 : index
    %369 = vector.load %arg11[%c1_243, %c0_244] : memref<24x128xf32, #tpu.memory_space<vmem>>, vector<1x128xf32>
    tpu.vector_store %arg11[%c1_243, %c0_244], %367 {strides = array<i32>} : memref<24x128xf32, #tpu.memory_space<vmem>>, vector<1x128xf32>,
    %c2_245 = arith.constant 2 : index
    %c0_246 = arith.constant 0 : index
    %370 = vector.load %arg11[%c2_245, %c0_246] : memref<24x128xf32, #tpu.memory_space<vmem>>, vector<4x128xf32>
    tpu.vector_store %arg11[%c2_245, %c0_246], %357 {strides = array<i32>} : memref<24x128xf32, #tpu.memory_space<vmem>>, vector<4x128xf32>,
    %c6 = arith.constant 6 : index
    %c0_247 = arith.constant 0 : index
    %371 = vector.load %arg11[%c6, %c0_247] : memref<24x128xf32, #tpu.memory_space<vmem>>, vector<1x128xf32>
    tpu.vector_store %arg11[%c6, %c0_247], %367 {strides = array<i32>} : memref<24x128xf32, #tpu.memory_space<vmem>>, vector<1x128xf32>,
    %c7_248 = arith.constant 7 : index
    %c0_249 = arith.constant 0 : index
    %372 = vector.load %arg11[%c7_248, %c0_249] : memref<24x128xf32, #tpu.memory_space<vmem>>, vector<1x128xf32>
    tpu.vector_store %arg11[%c7_248, %c0_249], %0 {strides = array<i32>} : memref<24x128xf32, #tpu.memory_space<vmem>>, vector<1x128xf32>,
    %c0_250 = arith.constant 0 : index
    %c0_251 = arith.constant 0 : index
    %373 = vector.load %arg11[%c0_250, %c0_251] : memref<24x128xf32, #tpu.memory_space<vmem>>, vector<8x128xf32>
    %374 = vector.extract_strided_slice %373 {offsets = [0, 0], sizes = [7, 128], strides = [1, 1]} : vector<8x128xf32> to vector<7x128xf32>
    %375 = vector.extract_strided_slice %373 {offsets = [1, 0], sizes = [7, 128], strides = [1, 1]} : vector<8x128xf32> to vector<7x128xf32>
    %376 = arith.maximumf %374, %375 : vector<7x128xf32>
    %377 = tpu.iota {dimensions = array<i32: 0>} : vector<6x7xi32>
    %378 = tpu.iota {dimensions = array<i32: 1>} : vector<6x7xi32>
    %c1_i32_252 = arith.constant 1 : i32
    %379 = vector.broadcast %c1_i32_252 : i32 to vector<6x7xi32>
    %380 = arith.subi %377, %379 : vector<6x7xi32>
    %c2_i32_253 = arith.constant 2 : i32
    %381 = vector.broadcast %c2_i32_253 : i32 to vector<6x7xi32>
    %382 = arith.muli %381, %380 : vector<6x7xi32>
    %383 = arith.cmpi eq, %378, %382 : vector<6x7xi32>
    %cst_254 = arith.constant 1.000000e+00 : f32
    %cst_255 = arith.constant 0.000000e+00 : f32
    %384 = vector.broadcast %cst_254 : f32 to vector<6x7xf32>
    %385 = vector.broadcast %cst_255 : f32 to vector<6x7xf32>
    %386 = arith.select %383, %384, %385 : vector<6x7xi1>, vector<6x7xf32>
    %cst_256 = arith.constant dense<0.000000e+00> : vector<6x128xf32>
    %387 = tpu.matmul %386, %376, %cst_256 {dimension_numbers = #tpu.dot_dimension_numbers<[1], [0], [0], [1], [0, 0, 1, 1], [], []>} : vector<6x7xf32>, vector<7x128xf32>, vector<6x128xf32> -> vector<6x128xf32>
    %c5 = arith.constant 5 : index
    %c0_257 = arith.constant 0 : index
    %c0_258 = arith.constant 0 : index
    %388 = vector.load %arg2[%c5, %c0_257, %c0_258] : memref<9x3x128xf32, #tpu.memory_space<vmem>>, vector<1x3x128xf32>
    %389 = vector.shape_cast %388 : vector<1x3x128xf32> to vector<3x128xf32>
    %390 = vector.extract_strided_slice %387 {offsets = [0, 0], sizes = [4, 128], strides = [1, 1]} : vector<6x128xf32> to vector<4x128xf32>
    %391 = vector.extract_strided_slice %389 {offsets = [0, 0], sizes = [1, 128], strides = [1, 1]} : vector<3x128xf32> to vector<1x128xf32>
    %392 = vector.broadcast %391 : vector<1x128xf32> to vector<4x128xf32>
    %393 = arith.mulf %390, %392 : vector<4x128xf32>
    %394 = vector.extract_strided_slice %387 {offsets = [1, 0], sizes = [4, 128], strides = [1, 1]} : vector<6x128xf32> to vector<4x128xf32>
    %395 = vector.extract_strided_slice %389 {offsets = [1, 0], sizes = [1, 128], strides = [1, 1]} : vector<3x128xf32> to vector<1x128xf32>
    %396 = vector.broadcast %395 : vector<1x128xf32> to vector<4x128xf32>
    %397 = arith.mulf %394, %396 : vector<4x128xf32>
    %398 = arith.addf %393, %397 : vector<4x128xf32>
    %399 = vector.extract_strided_slice %387 {offsets = [2, 0], sizes = [4, 128], strides = [1, 1]} : vector<6x128xf32> to vector<4x128xf32>
    %400 = vector.extract_strided_slice %389 {offsets = [2, 0], sizes = [1, 128], strides = [1, 1]} : vector<3x128xf32> to vector<1x128xf32>
    %401 = vector.broadcast %400 : vector<1x128xf32> to vector<4x128xf32>
    %402 = arith.mulf %399, %401 : vector<4x128xf32>
    %403 = arith.addf %398, %402 : vector<4x128xf32>
    %c5_259 = arith.constant 5 : index
    %c0_260 = arith.constant 0 : index
    %c0_261 = arith.constant 0 : index
    %404 = vector.load %arg3[%c5_259, %c0_260, %c0_261] : memref<9x1x128xf32, #tpu.memory_space<vmem>>, vector<1x1x128xf32>
    %405 = vector.shape_cast %404 : vector<1x1x128xf32> to vector<1x128xf32>
    %406 = vector.broadcast %405 : vector<1x128xf32> to vector<4x128xf32>
    %407 = arith.addf %403, %406 : vector<4x128xf32>
    %cst_262 = arith.constant 0.000000e+00 : f32
    %408 = vector.broadcast %cst_262 : f32 to vector<4x128xf32>
    %409 = arith.maximumf %407, %408 : vector<4x128xf32>
    %c5_263 = arith.constant 5 : index
    %c0_264 = arith.constant 0 : index
    %c0_265 = arith.constant 0 : index
    %410 = vector.load %arg4[%c5_263, %c0_264, %c0_265] : memref<9x1x128xf32, #tpu.memory_space<vmem>>, vector<1x1x128xf32>
    %411 = vector.shape_cast %410 : vector<1x1x128xf32> to vector<1x128xf32>
    %412 = vector.broadcast %411 : vector<1x128xf32> to vector<4x128xf32>
    %413 = arith.mulf %409, %412 : vector<4x128xf32>
    %c5_266 = arith.constant 5 : index
    %c0_267 = arith.constant 0 : index
    %c0_268 = arith.constant 0 : index
    %414 = vector.load %arg5[%c5_266, %c0_267, %c0_268] : memref<9x1x128xf32, #tpu.memory_space<vmem>>, vector<1x1x128xf32>
    %415 = vector.shape_cast %414 : vector<1x1x128xf32> to vector<1x128xf32>
    %416 = vector.broadcast %415 : vector<1x128xf32> to vector<4x128xf32>
    %417 = arith.addf %413, %416 : vector<4x128xf32>
    %c5_269 = arith.constant 5 : index
    %c0_270 = arith.constant 0 : index
    %c0_271 = arith.constant 0 : index
    %418 = vector.load %arg6[%c5_269, %c0_270, %c0_271] : memref<9x128x128xf32, #tpu.memory_space<vmem>>, vector<1x128x128xf32>
    %419 = vector.shape_cast %418 : vector<1x128x128xf32> to vector<128x128xf32>
    %cst_272 = arith.constant dense<0.000000e+00> : vector<4x128xf32>
    %420 = tpu.matmul %417, %419, %cst_272 {dimension_numbers = #tpu.dot_dimension_numbers<[1], [0], [0], [1], [0, 0, 1, 1], [], []>} : vector<4x128xf32>, vector<128x128xf32>, vector<4x128xf32> -> vector<4x128xf32>
    %c5_273 = arith.constant 5 : index
    %c0_274 = arith.constant 0 : index
    %c0_275 = arith.constant 0 : index
    %421 = vector.load %arg7[%c5_273, %c0_274, %c0_275] : memref<9x1x128xf32, #tpu.memory_space<vmem>>, vector<1x1x128xf32>
    %422 = vector.shape_cast %421 : vector<1x1x128xf32> to vector<1x128xf32>
    %423 = vector.broadcast %422 : vector<1x128xf32> to vector<4x128xf32>
    %424 = arith.addf %420, %423 : vector<4x128xf32>
    %cst_276 = arith.constant 0.000000e+00 : f32
    %425 = vector.broadcast %cst_276 : f32 to vector<4x128xf32>
    %426 = arith.maximumf %424, %425 : vector<4x128xf32>
    %c5_277 = arith.constant 5 : index
    %c0_278 = arith.constant 0 : index
    %c0_279 = arith.constant 0 : index
    %427 = vector.load %arg8[%c5_277, %c0_278, %c0_279] : memref<9x1x128xf32, #tpu.memory_space<vmem>>, vector<1x1x128xf32>
    %428 = vector.shape_cast %427 : vector<1x1x128xf32> to vector<1x128xf32>
    %429 = vector.broadcast %428 : vector<1x128xf32> to vector<4x128xf32>
    %430 = arith.mulf %426, %429 : vector<4x128xf32>
    %c5_280 = arith.constant 5 : index
    %c0_281 = arith.constant 0 : index
    %c0_282 = arith.constant 0 : index
    %431 = vector.load %arg9[%c5_280, %c0_281, %c0_282] : memref<9x1x128xf32, #tpu.memory_space<vmem>>, vector<1x1x128xf32>
    %432 = vector.shape_cast %431 : vector<1x1x128xf32> to vector<1x128xf32>
    %433 = vector.broadcast %432 : vector<1x128xf32> to vector<4x128xf32>
    %434 = arith.addf %430, %433 : vector<4x128xf32>
    %c5_283 = arith.constant 5 : index
    %c0_284 = arith.constant 0 : index
    %c0_285 = arith.constant 0 : index
    %435 = vector.load %arg7[%c5_283, %c0_284, %c0_285] : memref<9x1x128xf32, #tpu.memory_space<vmem>>, vector<1x1x128xf32>
    %436 = vector.shape_cast %435 : vector<1x1x128xf32> to vector<1x128xf32>
    %cst_286 = arith.constant 0.000000e+00 : f32
    %437 = vector.broadcast %cst_286 : f32 to vector<1x128xf32>
    %438 = arith.maximumf %436, %437 : vector<1x128xf32>
    %c5_287 = arith.constant 5 : index
    %c0_288 = arith.constant 0 : index
    %c0_289 = arith.constant 0 : index
    %439 = vector.load %arg8[%c5_287, %c0_288, %c0_289] : memref<9x1x128xf32, #tpu.memory_space<vmem>>, vector<1x1x128xf32>
    %440 = vector.shape_cast %439 : vector<1x1x128xf32> to vector<1x128xf32>
    %441 = arith.mulf %438, %440 : vector<1x128xf32>
    %c5_290 = arith.constant 5 : index
    %c0_291 = arith.constant 0 : index
    %c0_292 = arith.constant 0 : index
    %442 = vector.load %arg9[%c5_290, %c0_291, %c0_292] : memref<9x1x128xf32, #tpu.memory_space<vmem>>, vector<1x1x128xf32>
    %443 = vector.shape_cast %442 : vector<1x1x128xf32> to vector<1x128xf32>
    %444 = arith.addf %441, %443 : vector<1x128xf32>
    %c0_293 = arith.constant 0 : index
    %c0_294 = arith.constant 0 : index
    %445 = vector.load %arg11[%c0_293, %c0_294] : memref<24x128xf32, #tpu.memory_space<vmem>>, vector<1x128xf32>
    tpu.vector_store %arg11[%c0_293, %c0_294], %0 {strides = array<i32>} : memref<24x128xf32, #tpu.memory_space<vmem>>, vector<1x128xf32>,
    %c1_295 = arith.constant 1 : index
    %c0_296 = arith.constant 0 : index
    %446 = vector.load %arg11[%c1_295, %c0_296] : memref<24x128xf32, #tpu.memory_space<vmem>>, vector<1x128xf32>
    tpu.vector_store %arg11[%c1_295, %c0_296], %444 {strides = array<i32>} : memref<24x128xf32, #tpu.memory_space<vmem>>, vector<1x128xf32>,
    %c2_297 = arith.constant 2 : index
    %c0_298 = arith.constant 0 : index
    %447 = vector.load %arg11[%c2_297, %c0_298] : memref<24x128xf32, #tpu.memory_space<vmem>>, vector<4x128xf32>
    tpu.vector_store %arg11[%c2_297, %c0_298], %434 {strides = array<i32>} : memref<24x128xf32, #tpu.memory_space<vmem>>, vector<4x128xf32>,
    %c6_299 = arith.constant 6 : index
    %c0_300 = arith.constant 0 : index
    %448 = vector.load %arg11[%c6_299, %c0_300] : memref<24x128xf32, #tpu.memory_space<vmem>>, vector<1x128xf32>
    tpu.vector_store %arg11[%c6_299, %c0_300], %444 {strides = array<i32>} : memref<24x128xf32, #tpu.memory_space<vmem>>, vector<1x128xf32>,
    %c7_301 = arith.constant 7 : index
    %c0_302 = arith.constant 0 : index
    %449 = vector.load %arg11[%c7_301, %c0_302] : memref<24x128xf32, #tpu.memory_space<vmem>>, vector<1x128xf32>
    tpu.vector_store %arg11[%c7_301, %c0_302], %0 {strides = array<i32>} : memref<24x128xf32, #tpu.memory_space<vmem>>, vector<1x128xf32>,
    %c0_303 = arith.constant 0 : index
    %c0_304 = arith.constant 0 : index
    %450 = vector.load %arg11[%c0_303, %c0_304] : memref<24x128xf32, #tpu.memory_space<vmem>>, vector<8x128xf32>
    %451 = vector.extract_strided_slice %450 {offsets = [0, 0], sizes = [7, 128], strides = [1, 1]} : vector<8x128xf32> to vector<7x128xf32>
    %452 = vector.extract_strided_slice %450 {offsets = [1, 0], sizes = [7, 128], strides = [1, 1]} : vector<8x128xf32> to vector<7x128xf32>
    %453 = arith.maximumf %451, %452 : vector<7x128xf32>
    %454 = tpu.iota {dimensions = array<i32: 0>} : vector<6x7xi32>
    %455 = tpu.iota {dimensions = array<i32: 1>} : vector<6x7xi32>
    %c1_i32_305 = arith.constant 1 : i32
    %456 = vector.broadcast %c1_i32_305 : i32 to vector<6x7xi32>
    %457 = arith.subi %454, %456 : vector<6x7xi32>
    %c2_i32_306 = arith.constant 2 : i32
    %458 = vector.broadcast %c2_i32_306 : i32 to vector<6x7xi32>
    %459 = arith.muli %458, %457 : vector<6x7xi32>
    %460 = arith.cmpi eq, %455, %459 : vector<6x7xi32>
    %cst_307 = arith.constant 1.000000e+00 : f32
    %cst_308 = arith.constant 0.000000e+00 : f32
    %461 = vector.broadcast %cst_307 : f32 to vector<6x7xf32>
    %462 = vector.broadcast %cst_308 : f32 to vector<6x7xf32>
    %463 = arith.select %460, %461, %462 : vector<6x7xi1>, vector<6x7xf32>
    %cst_309 = arith.constant dense<0.000000e+00> : vector<6x128xf32>
    %464 = tpu.matmul %463, %453, %cst_309 {dimension_numbers = #tpu.dot_dimension_numbers<[1], [0], [0], [1], [0, 0, 1, 1], [], []>} : vector<6x7xf32>, vector<7x128xf32>, vector<6x128xf32> -> vector<6x128xf32>
    %c6_310 = arith.constant 6 : index
    %c0_311 = arith.constant 0 : index
    %c0_312 = arith.constant 0 : index
    %465 = vector.load %arg2[%c6_310, %c0_311, %c0_312] : memref<9x3x128xf32, #tpu.memory_space<vmem>>, vector<1x3x128xf32>
    %466 = vector.shape_cast %465 : vector<1x3x128xf32> to vector<3x128xf32>
    %467 = vector.extract_strided_slice %464 {offsets = [0, 0], sizes = [4, 128], strides = [1, 1]} : vector<6x128xf32> to vector<4x128xf32>
    %468 = vector.extract_strided_slice %466 {offsets = [0, 0], sizes = [1, 128], strides = [1, 1]} : vector<3x128xf32> to vector<1x128xf32>
    %469 = vector.broadcast %468 : vector<1x128xf32> to vector<4x128xf32>
    %470 = arith.mulf %467, %469 : vector<4x128xf32>
    %471 = vector.extract_strided_slice %464 {offsets = [1, 0], sizes = [4, 128], strides = [1, 1]} : vector<6x128xf32> to vector<4x128xf32>
    %472 = vector.extract_strided_slice %466 {offsets = [1, 0], sizes = [1, 128], strides = [1, 1]} : vector<3x128xf32> to vector<1x128xf32>
    %473 = vector.broadcast %472 : vector<1x128xf32> to vector<4x128xf32>
    %474 = arith.mulf %471, %473 : vector<4x128xf32>
    %475 = arith.addf %470, %474 : vector<4x128xf32>
    %476 = vector.extract_strided_slice %464 {offsets = [2, 0], sizes = [4, 128], strides = [1, 1]} : vector<6x128xf32> to vector<4x128xf32>
    %477 = vector.extract_strided_slice %466 {offsets = [2, 0], sizes = [1, 128], strides = [1, 1]} : vector<3x128xf32> to vector<1x128xf32>
    %478 = vector.broadcast %477 : vector<1x128xf32> to vector<4x128xf32>
    %479 = arith.mulf %476, %478 : vector<4x128xf32>
    %480 = arith.addf %475, %479 : vector<4x128xf32>
    %c6_313 = arith.constant 6 : index
    %c0_314 = arith.constant 0 : index
    %c0_315 = arith.constant 0 : index
    %481 = vector.load %arg3[%c6_313, %c0_314, %c0_315] : memref<9x1x128xf32, #tpu.memory_space<vmem>>, vector<1x1x128xf32>
    %482 = vector.shape_cast %481 : vector<1x1x128xf32> to vector<1x128xf32>
    %483 = vector.broadcast %482 : vector<1x128xf32> to vector<4x128xf32>
    %484 = arith.addf %480, %483 : vector<4x128xf32>
    %cst_316 = arith.constant 0.000000e+00 : f32
    %485 = vector.broadcast %cst_316 : f32 to vector<4x128xf32>
    %486 = arith.maximumf %484, %485 : vector<4x128xf32>
    %c6_317 = arith.constant 6 : index
    %c0_318 = arith.constant 0 : index
    %c0_319 = arith.constant 0 : index
    %487 = vector.load %arg4[%c6_317, %c0_318, %c0_319] : memref<9x1x128xf32, #tpu.memory_space<vmem>>, vector<1x1x128xf32>
    %488 = vector.shape_cast %487 : vector<1x1x128xf32> to vector<1x128xf32>
    %489 = vector.broadcast %488 : vector<1x128xf32> to vector<4x128xf32>
    %490 = arith.mulf %486, %489 : vector<4x128xf32>
    %c6_320 = arith.constant 6 : index
    %c0_321 = arith.constant 0 : index
    %c0_322 = arith.constant 0 : index
    %491 = vector.load %arg5[%c6_320, %c0_321, %c0_322] : memref<9x1x128xf32, #tpu.memory_space<vmem>>, vector<1x1x128xf32>
    %492 = vector.shape_cast %491 : vector<1x1x128xf32> to vector<1x128xf32>
    %493 = vector.broadcast %492 : vector<1x128xf32> to vector<4x128xf32>
    %494 = arith.addf %490, %493 : vector<4x128xf32>
    %c6_323 = arith.constant 6 : index
    %c0_324 = arith.constant 0 : index
    %c0_325 = arith.constant 0 : index
    %495 = vector.load %arg6[%c6_323, %c0_324, %c0_325] : memref<9x128x128xf32, #tpu.memory_space<vmem>>, vector<1x128x128xf32>
    %496 = vector.shape_cast %495 : vector<1x128x128xf32> to vector<128x128xf32>
    %cst_326 = arith.constant dense<0.000000e+00> : vector<4x128xf32>
    %497 = tpu.matmul %494, %496, %cst_326 {dimension_numbers = #tpu.dot_dimension_numbers<[1], [0], [0], [1], [0, 0, 1, 1], [], []>} : vector<4x128xf32>, vector<128x128xf32>, vector<4x128xf32> -> vector<4x128xf32>
    %c6_327 = arith.constant 6 : index
    %c0_328 = arith.constant 0 : index
    %c0_329 = arith.constant 0 : index
    %498 = vector.load %arg7[%c6_327, %c0_328, %c0_329] : memref<9x1x128xf32, #tpu.memory_space<vmem>>, vector<1x1x128xf32>
    %499 = vector.shape_cast %498 : vector<1x1x128xf32> to vector<1x128xf32>
    %500 = vector.broadcast %499 : vector<1x128xf32> to vector<4x128xf32>
    %501 = arith.addf %497, %500 : vector<4x128xf32>
    %cst_330 = arith.constant 0.000000e+00 : f32
    %502 = vector.broadcast %cst_330 : f32 to vector<4x128xf32>
    %503 = arith.maximumf %501, %502 : vector<4x128xf32>
    %c6_331 = arith.constant 6 : index
    %c0_332 = arith.constant 0 : index
    %c0_333 = arith.constant 0 : index
    %504 = vector.load %arg8[%c6_331, %c0_332, %c0_333] : memref<9x1x128xf32, #tpu.memory_space<vmem>>, vector<1x1x128xf32>
    %505 = vector.shape_cast %504 : vector<1x1x128xf32> to vector<1x128xf32>
    %506 = vector.broadcast %505 : vector<1x128xf32> to vector<4x128xf32>
    %507 = arith.mulf %503, %506 : vector<4x128xf32>
    %c6_334 = arith.constant 6 : index
    %c0_335 = arith.constant 0 : index
    %c0_336 = arith.constant 0 : index
    %508 = vector.load %arg9[%c6_334, %c0_335, %c0_336] : memref<9x1x128xf32, #tpu.memory_space<vmem>>, vector<1x1x128xf32>
    %509 = vector.shape_cast %508 : vector<1x1x128xf32> to vector<1x128xf32>
    %510 = vector.broadcast %509 : vector<1x128xf32> to vector<4x128xf32>
    %511 = arith.addf %507, %510 : vector<4x128xf32>
    %c6_337 = arith.constant 6 : index
    %c0_338 = arith.constant 0 : index
    %c0_339 = arith.constant 0 : index
    %512 = vector.load %arg7[%c6_337, %c0_338, %c0_339] : memref<9x1x128xf32, #tpu.memory_space<vmem>>, vector<1x1x128xf32>
    %513 = vector.shape_cast %512 : vector<1x1x128xf32> to vector<1x128xf32>
    %cst_340 = arith.constant 0.000000e+00 : f32
    %514 = vector.broadcast %cst_340 : f32 to vector<1x128xf32>
    %515 = arith.maximumf %513, %514 : vector<1x128xf32>
    %c6_341 = arith.constant 6 : index
    %c0_342 = arith.constant 0 : index
    %c0_343 = arith.constant 0 : index
    %516 = vector.load %arg8[%c6_341, %c0_342, %c0_343] : memref<9x1x128xf32, #tpu.memory_space<vmem>>, vector<1x1x128xf32>
    %517 = vector.shape_cast %516 : vector<1x1x128xf32> to vector<1x128xf32>
    %518 = arith.mulf %515, %517 : vector<1x128xf32>
    %c6_344 = arith.constant 6 : index
    %c0_345 = arith.constant 0 : index
    %c0_346 = arith.constant 0 : index
    %519 = vector.load %arg9[%c6_344, %c0_345, %c0_346] : memref<9x1x128xf32, #tpu.memory_space<vmem>>, vector<1x1x128xf32>
    %520 = vector.shape_cast %519 : vector<1x1x128xf32> to vector<1x128xf32>
    %521 = arith.addf %518, %520 : vector<1x128xf32>
    %c0_347 = arith.constant 0 : index
    %c0_348 = arith.constant 0 : index
    %522 = vector.load %arg11[%c0_347, %c0_348] : memref<24x128xf32, #tpu.memory_space<vmem>>, vector<1x128xf32>
    tpu.vector_store %arg11[%c0_347, %c0_348], %0 {strides = array<i32>} : memref<24x128xf32, #tpu.memory_space<vmem>>, vector<1x128xf32>,
    %c1_349 = arith.constant 1 : index
    %c0_350 = arith.constant 0 : index
    %523 = vector.load %arg11[%c1_349, %c0_350] : memref<24x128xf32, #tpu.memory_space<vmem>>, vector<1x128xf32>
    tpu.vector_store %arg11[%c1_349, %c0_350], %521 {strides = array<i32>} : memref<24x128xf32, #tpu.memory_space<vmem>>, vector<1x128xf32>,
    %c2_351 = arith.constant 2 : index
    %c0_352 = arith.constant 0 : index
    %524 = vector.load %arg11[%c2_351, %c0_352] : memref<24x128xf32, #tpu.memory_space<vmem>>, vector<4x128xf32>
    tpu.vector_store %arg11[%c2_351, %c0_352], %511 {strides = array<i32>} : memref<24x128xf32, #tpu.memory_space<vmem>>, vector<4x128xf32>,
    %c6_353 = arith.constant 6 : index
    %c0_354 = arith.constant 0 : index
    %525 = vector.load %arg11[%c6_353, %c0_354] : memref<24x128xf32, #tpu.memory_space<vmem>>, vector<1x128xf32>
    tpu.vector_store %arg11[%c6_353, %c0_354], %521 {strides = array<i32>} : memref<24x128xf32, #tpu.memory_space<vmem>>, vector<1x128xf32>,
    %c7_355 = arith.constant 7 : index
    %c0_356 = arith.constant 0 : index
    %526 = vector.load %arg11[%c7_355, %c0_356] : memref<24x128xf32, #tpu.memory_space<vmem>>, vector<1x128xf32>
    tpu.vector_store %arg11[%c7_355, %c0_356], %0 {strides = array<i32>} : memref<24x128xf32, #tpu.memory_space<vmem>>, vector<1x128xf32>,
    %c0_357 = arith.constant 0 : index
    %c0_358 = arith.constant 0 : index
    %527 = vector.load %arg11[%c0_357, %c0_358] : memref<24x128xf32, #tpu.memory_space<vmem>>, vector<8x128xf32>
    %528 = vector.extract_strided_slice %527 {offsets = [0, 0], sizes = [7, 128], strides = [1, 1]} : vector<8x128xf32> to vector<7x128xf32>
    %529 = vector.extract_strided_slice %527 {offsets = [1, 0], sizes = [7, 128], strides = [1, 1]} : vector<8x128xf32> to vector<7x128xf32>
    %530 = arith.maximumf %528, %529 : vector<7x128xf32>
    %531 = tpu.iota {dimensions = array<i32: 0>} : vector<6x7xi32>
    %532 = tpu.iota {dimensions = array<i32: 1>} : vector<6x7xi32>
    %c1_i32_359 = arith.constant 1 : i32
    %533 = vector.broadcast %c1_i32_359 : i32 to vector<6x7xi32>
    %534 = arith.subi %531, %533 : vector<6x7xi32>
    %c2_i32_360 = arith.constant 2 : i32
    %535 = vector.broadcast %c2_i32_360 : i32 to vector<6x7xi32>
    %536 = arith.muli %535, %534 : vector<6x7xi32>
    %537 = arith.cmpi eq, %532, %536 : vector<6x7xi32>
    %cst_361 = arith.constant 1.000000e+00 : f32
    %cst_362 = arith.constant 0.000000e+00 : f32
    %538 = vector.broadcast %cst_361 : f32 to vector<6x7xf32>
    %539 = vector.broadcast %cst_362 : f32 to vector<6x7xf32>
    %540 = arith.select %537, %538, %539 : vector<6x7xi1>, vector<6x7xf32>
    %cst_363 = arith.constant dense<0.000000e+00> : vector<6x128xf32>
    %541 = tpu.matmul %540, %530, %cst_363 {dimension_numbers = #tpu.dot_dimension_numbers<[1], [0], [0], [1], [0, 0, 1, 1], [], []>} : vector<6x7xf32>, vector<7x128xf32>, vector<6x128xf32> -> vector<6x128xf32>
    %c7_364 = arith.constant 7 : index
    %c0_365 = arith.constant 0 : index
    %c0_366 = arith.constant 0 : index
    %542 = vector.load %arg2[%c7_364, %c0_365, %c0_366] : memref<9x3x128xf32, #tpu.memory_space<vmem>>, vector<1x3x128xf32>
    %543 = vector.shape_cast %542 : vector<1x3x128xf32> to vector<3x128xf32>
    %544 = vector.extract_strided_slice %541 {offsets = [0, 0], sizes = [4, 128], strides = [1, 1]} : vector<6x128xf32> to vector<4x128xf32>
    %545 = vector.extract_strided_slice %543 {offsets = [0, 0], sizes = [1, 128], strides = [1, 1]} : vector<3x128xf32> to vector<1x128xf32>
    %546 = vector.broadcast %545 : vector<1x128xf32> to vector<4x128xf32>
    %547 = arith.mulf %544, %546 : vector<4x128xf32>
    %548 = vector.extract_strided_slice %541 {offsets = [1, 0], sizes = [4, 128], strides = [1, 1]} : vector<6x128xf32> to vector<4x128xf32>
    %549 = vector.extract_strided_slice %543 {offsets = [1, 0], sizes = [1, 128], strides = [1, 1]} : vector<3x128xf32> to vector<1x128xf32>
    %550 = vector.broadcast %549 : vector<1x128xf32> to vector<4x128xf32>
    %551 = arith.mulf %548, %550 : vector<4x128xf32>
    %552 = arith.addf %547, %551 : vector<4x128xf32>
    %553 = vector.extract_strided_slice %541 {offsets = [2, 0], sizes = [4, 128], strides = [1, 1]} : vector<6x128xf32> to vector<4x128xf32>
    %554 = vector.extract_strided_slice %543 {offsets = [2, 0], sizes = [1, 128], strides = [1, 1]} : vector<3x128xf32> to vector<1x128xf32>
    %555 = vector.broadcast %554 : vector<1x128xf32> to vector<4x128xf32>
    %556 = arith.mulf %553, %555 : vector<4x128xf32>
    %557 = arith.addf %552, %556 : vector<4x128xf32>
    %c7_367 = arith.constant 7 : index
    %c0_368 = arith.constant 0 : index
    %c0_369 = arith.constant 0 : index
    %558 = vector.load %arg3[%c7_367, %c0_368, %c0_369] : memref<9x1x128xf32, #tpu.memory_space<vmem>>, vector<1x1x128xf32>
    %559 = vector.shape_cast %558 : vector<1x1x128xf32> to vector<1x128xf32>
    %560 = vector.broadcast %559 : vector<1x128xf32> to vector<4x128xf32>
    %561 = arith.addf %557, %560 : vector<4x128xf32>
    %cst_370 = arith.constant 0.000000e+00 : f32
    %562 = vector.broadcast %cst_370 : f32 to vector<4x128xf32>
    %563 = arith.maximumf %561, %562 : vector<4x128xf32>
    %c7_371 = arith.constant 7 : index
    %c0_372 = arith.constant 0 : index
    %c0_373 = arith.constant 0 : index
    %564 = vector.load %arg4[%c7_371, %c0_372, %c0_373] : memref<9x1x128xf32, #tpu.memory_space<vmem>>, vector<1x1x128xf32>
    %565 = vector.shape_cast %564 : vector<1x1x128xf32> to vector<1x128xf32>
    %566 = vector.broadcast %565 : vector<1x128xf32> to vector<4x128xf32>
    %567 = arith.mulf %563, %566 : vector<4x128xf32>
    %c7_374 = arith.constant 7 : index
    %c0_375 = arith.constant 0 : index
    %c0_376 = arith.constant 0 : index
    %568 = vector.load %arg5[%c7_374, %c0_375, %c0_376] : memref<9x1x128xf32, #tpu.memory_space<vmem>>, vector<1x1x128xf32>
    %569 = vector.shape_cast %568 : vector<1x1x128xf32> to vector<1x128xf32>
    %570 = vector.broadcast %569 : vector<1x128xf32> to vector<4x128xf32>
    %571 = arith.addf %567, %570 : vector<4x128xf32>
    %c7_377 = arith.constant 7 : index
    %c0_378 = arith.constant 0 : index
    %c0_379 = arith.constant 0 : index
    %572 = vector.load %arg6[%c7_377, %c0_378, %c0_379] : memref<9x128x128xf32, #tpu.memory_space<vmem>>, vector<1x128x128xf32>
    %573 = vector.shape_cast %572 : vector<1x128x128xf32> to vector<128x128xf32>
    %cst_380 = arith.constant dense<0.000000e+00> : vector<4x128xf32>
    %574 = tpu.matmul %571, %573, %cst_380 {dimension_numbers = #tpu.dot_dimension_numbers<[1], [0], [0], [1], [0, 0, 1, 1], [], []>} : vector<4x128xf32>, vector<128x128xf32>, vector<4x128xf32> -> vector<4x128xf32>
    %c7_381 = arith.constant 7 : index
    %c0_382 = arith.constant 0 : index
    %c0_383 = arith.constant 0 : index
    %575 = vector.load %arg7[%c7_381, %c0_382, %c0_383] : memref<9x1x128xf32, #tpu.memory_space<vmem>>, vector<1x1x128xf32>
    %576 = vector.shape_cast %575 : vector<1x1x128xf32> to vector<1x128xf32>
    %577 = vector.broadcast %576 : vector<1x128xf32> to vector<4x128xf32>
    %578 = arith.addf %574, %577 : vector<4x128xf32>
    %cst_384 = arith.constant 0.000000e+00 : f32
    %579 = vector.broadcast %cst_384 : f32 to vector<4x128xf32>
    %580 = arith.maximumf %578, %579 : vector<4x128xf32>
    %c7_385 = arith.constant 7 : index
    %c0_386 = arith.constant 0 : index
    %c0_387 = arith.constant 0 : index
    %581 = vector.load %arg8[%c7_385, %c0_386, %c0_387] : memref<9x1x128xf32, #tpu.memory_space<vmem>>, vector<1x1x128xf32>
    %582 = vector.shape_cast %581 : vector<1x1x128xf32> to vector<1x128xf32>
    %583 = vector.broadcast %582 : vector<1x128xf32> to vector<4x128xf32>
    %584 = arith.mulf %580, %583 : vector<4x128xf32>
    %c7_388 = arith.constant 7 : index
    %c0_389 = arith.constant 0 : index
    %c0_390 = arith.constant 0 : index
    %585 = vector.load %arg9[%c7_388, %c0_389, %c0_390] : memref<9x1x128xf32, #tpu.memory_space<vmem>>, vector<1x1x128xf32>
    %586 = vector.shape_cast %585 : vector<1x1x128xf32> to vector<1x128xf32>
    %587 = vector.broadcast %586 : vector<1x128xf32> to vector<4x128xf32>
    %588 = arith.addf %584, %587 : vector<4x128xf32>
    %c7_391 = arith.constant 7 : index
    %c0_392 = arith.constant 0 : index
    %c0_393 = arith.constant 0 : index
    %589 = vector.load %arg7[%c7_391, %c0_392, %c0_393] : memref<9x1x128xf32, #tpu.memory_space<vmem>>, vector<1x1x128xf32>
    %590 = vector.shape_cast %589 : vector<1x1x128xf32> to vector<1x128xf32>
    %cst_394 = arith.constant 0.000000e+00 : f32
    %591 = vector.broadcast %cst_394 : f32 to vector<1x128xf32>
    %592 = arith.maximumf %590, %591 : vector<1x128xf32>
    %c7_395 = arith.constant 7 : index
    %c0_396 = arith.constant 0 : index
    %c0_397 = arith.constant 0 : index
    %593 = vector.load %arg8[%c7_395, %c0_396, %c0_397] : memref<9x1x128xf32, #tpu.memory_space<vmem>>, vector<1x1x128xf32>
    %594 = vector.shape_cast %593 : vector<1x1x128xf32> to vector<1x128xf32>
    %595 = arith.mulf %592, %594 : vector<1x128xf32>
    %c7_398 = arith.constant 7 : index
    %c0_399 = arith.constant 0 : index
    %c0_400 = arith.constant 0 : index
    %596 = vector.load %arg9[%c7_398, %c0_399, %c0_400] : memref<9x1x128xf32, #tpu.memory_space<vmem>>, vector<1x1x128xf32>
    %597 = vector.shape_cast %596 : vector<1x1x128xf32> to vector<1x128xf32>
    %598 = arith.addf %595, %597 : vector<1x128xf32>
    %c0_401 = arith.constant 0 : index
    %c0_402 = arith.constant 0 : index
    %599 = vector.load %arg11[%c0_401, %c0_402] : memref<24x128xf32, #tpu.memory_space<vmem>>, vector<1x128xf32>
    tpu.vector_store %arg11[%c0_401, %c0_402], %0 {strides = array<i32>} : memref<24x128xf32, #tpu.memory_space<vmem>>, vector<1x128xf32>,
    %c1_403 = arith.constant 1 : index
    %c0_404 = arith.constant 0 : index
    %600 = vector.load %arg11[%c1_403, %c0_404] : memref<24x128xf32, #tpu.memory_space<vmem>>, vector<1x128xf32>
    tpu.vector_store %arg11[%c1_403, %c0_404], %598 {strides = array<i32>} : memref<24x128xf32, #tpu.memory_space<vmem>>, vector<1x128xf32>,
    %c2_405 = arith.constant 2 : index
    %c0_406 = arith.constant 0 : index
    %601 = vector.load %arg11[%c2_405, %c0_406] : memref<24x128xf32, #tpu.memory_space<vmem>>, vector<4x128xf32>
    tpu.vector_store %arg11[%c2_405, %c0_406], %588 {strides = array<i32>} : memref<24x128xf32, #tpu.memory_space<vmem>>, vector<4x128xf32>,
    %c6_407 = arith.constant 6 : index
    %c0_408 = arith.constant 0 : index
    %602 = vector.load %arg11[%c6_407, %c0_408] : memref<24x128xf32, #tpu.memory_space<vmem>>, vector<1x128xf32>
    tpu.vector_store %arg11[%c6_407, %c0_408], %598 {strides = array<i32>} : memref<24x128xf32, #tpu.memory_space<vmem>>, vector<1x128xf32>,
    %c7_409 = arith.constant 7 : index
    %c0_410 = arith.constant 0 : index
    %603 = vector.load %arg11[%c7_409, %c0_410] : memref<24x128xf32, #tpu.memory_space<vmem>>, vector<1x128xf32>
    tpu.vector_store %arg11[%c7_409, %c0_410], %0 {strides = array<i32>} : memref<24x128xf32, #tpu.memory_space<vmem>>, vector<1x128xf32>,
    %c0_411 = arith.constant 0 : index
    %c0_412 = arith.constant 0 : index
    %604 = vector.load %arg11[%c0_411, %c0_412] : memref<24x128xf32, #tpu.memory_space<vmem>>, vector<8x128xf32>
    %605 = vector.extract_strided_slice %604 {offsets = [0, 0], sizes = [7, 128], strides = [1, 1]} : vector<8x128xf32> to vector<7x128xf32>
    %606 = vector.extract_strided_slice %604 {offsets = [1, 0], sizes = [7, 128], strides = [1, 1]} : vector<8x128xf32> to vector<7x128xf32>
    %607 = arith.maximumf %605, %606 : vector<7x128xf32>
    %608 = tpu.iota {dimensions = array<i32: 0>} : vector<6x7xi32>
    %609 = tpu.iota {dimensions = array<i32: 1>} : vector<6x7xi32>
    %c1_i32_413 = arith.constant 1 : i32
    %610 = vector.broadcast %c1_i32_413 : i32 to vector<6x7xi32>
    %611 = arith.subi %608, %610 : vector<6x7xi32>
    %c2_i32_414 = arith.constant 2 : i32
    %612 = vector.broadcast %c2_i32_414 : i32 to vector<6x7xi32>
    %613 = arith.muli %612, %611 : vector<6x7xi32>
    %614 = arith.cmpi eq, %609, %613 : vector<6x7xi32>
    %cst_415 = arith.constant 1.000000e+00 : f32
    %cst_416 = arith.constant 0.000000e+00 : f32
    %615 = vector.broadcast %cst_415 : f32 to vector<6x7xf32>
    %616 = vector.broadcast %cst_416 : f32 to vector<6x7xf32>
    %617 = arith.select %614, %615, %616 : vector<6x7xi1>, vector<6x7xf32>
    %cst_417 = arith.constant dense<0.000000e+00> : vector<6x128xf32>
    %618 = tpu.matmul %617, %607, %cst_417 {dimension_numbers = #tpu.dot_dimension_numbers<[1], [0], [0], [1], [0, 0, 1, 1], [], []>} : vector<6x7xf32>, vector<7x128xf32>, vector<6x128xf32> -> vector<6x128xf32>
    %c8_418 = arith.constant 8 : index
    %c0_419 = arith.constant 0 : index
    %c0_420 = arith.constant 0 : index
    %619 = vector.load %arg2[%c8_418, %c0_419, %c0_420] : memref<9x3x128xf32, #tpu.memory_space<vmem>>, vector<1x3x128xf32>
    %620 = vector.shape_cast %619 : vector<1x3x128xf32> to vector<3x128xf32>
    %621 = vector.extract_strided_slice %618 {offsets = [0, 0], sizes = [4, 128], strides = [1, 1]} : vector<6x128xf32> to vector<4x128xf32>
    %622 = vector.extract_strided_slice %620 {offsets = [0, 0], sizes = [1, 128], strides = [1, 1]} : vector<3x128xf32> to vector<1x128xf32>
    %623 = vector.broadcast %622 : vector<1x128xf32> to vector<4x128xf32>
    %624 = arith.mulf %621, %623 : vector<4x128xf32>
    %625 = vector.extract_strided_slice %618 {offsets = [1, 0], sizes = [4, 128], strides = [1, 1]} : vector<6x128xf32> to vector<4x128xf32>
    %626 = vector.extract_strided_slice %620 {offsets = [1, 0], sizes = [1, 128], strides = [1, 1]} : vector<3x128xf32> to vector<1x128xf32>
    %627 = vector.broadcast %626 : vector<1x128xf32> to vector<4x128xf32>
    %628 = arith.mulf %625, %627 : vector<4x128xf32>
    %629 = arith.addf %624, %628 : vector<4x128xf32>
    %630 = vector.extract_strided_slice %618 {offsets = [2, 0], sizes = [4, 128], strides = [1, 1]} : vector<6x128xf32> to vector<4x128xf32>
    %631 = vector.extract_strided_slice %620 {offsets = [2, 0], sizes = [1, 128], strides = [1, 1]} : vector<3x128xf32> to vector<1x128xf32>
    %632 = vector.broadcast %631 : vector<1x128xf32> to vector<4x128xf32>
    %633 = arith.mulf %630, %632 : vector<4x128xf32>
    %634 = arith.addf %629, %633 : vector<4x128xf32>
    %c8_421 = arith.constant 8 : index
    %c0_422 = arith.constant 0 : index
    %c0_423 = arith.constant 0 : index
    %635 = vector.load %arg3[%c8_421, %c0_422, %c0_423] : memref<9x1x128xf32, #tpu.memory_space<vmem>>, vector<1x1x128xf32>
    %636 = vector.shape_cast %635 : vector<1x1x128xf32> to vector<1x128xf32>
    %637 = vector.broadcast %636 : vector<1x128xf32> to vector<4x128xf32>
    %638 = arith.addf %634, %637 : vector<4x128xf32>
    %cst_424 = arith.constant 0.000000e+00 : f32
    %639 = vector.broadcast %cst_424 : f32 to vector<4x128xf32>
    %640 = arith.maximumf %638, %639 : vector<4x128xf32>
    %c8_425 = arith.constant 8 : index
    %c0_426 = arith.constant 0 : index
    %c0_427 = arith.constant 0 : index
    %641 = vector.load %arg4[%c8_425, %c0_426, %c0_427] : memref<9x1x128xf32, #tpu.memory_space<vmem>>, vector<1x1x128xf32>
    %642 = vector.shape_cast %641 : vector<1x1x128xf32> to vector<1x128xf32>
    %643 = vector.broadcast %642 : vector<1x128xf32> to vector<4x128xf32>
    %644 = arith.mulf %640, %643 : vector<4x128xf32>
    %c8_428 = arith.constant 8 : index
    %c0_429 = arith.constant 0 : index
    %c0_430 = arith.constant 0 : index
    %645 = vector.load %arg5[%c8_428, %c0_429, %c0_430] : memref<9x1x128xf32, #tpu.memory_space<vmem>>, vector<1x1x128xf32>
    %646 = vector.shape_cast %645 : vector<1x1x128xf32> to vector<1x128xf32>
    %647 = vector.broadcast %646 : vector<1x128xf32> to vector<4x128xf32>
    %648 = arith.addf %644, %647 : vector<4x128xf32>
    %c8_431 = arith.constant 8 : index
    %c0_432 = arith.constant 0 : index
    %c0_433 = arith.constant 0 : index
    %649 = vector.load %arg6[%c8_431, %c0_432, %c0_433] : memref<9x128x128xf32, #tpu.memory_space<vmem>>, vector<1x128x128xf32>
    %650 = vector.shape_cast %649 : vector<1x128x128xf32> to vector<128x128xf32>
    %cst_434 = arith.constant dense<0.000000e+00> : vector<4x128xf32>
    %651 = tpu.matmul %648, %650, %cst_434 {dimension_numbers = #tpu.dot_dimension_numbers<[1], [0], [0], [1], [0, 0, 1, 1], [], []>} : vector<4x128xf32>, vector<128x128xf32>, vector<4x128xf32> -> vector<4x128xf32>
    %c8_435 = arith.constant 8 : index
    %c0_436 = arith.constant 0 : index
    %c0_437 = arith.constant 0 : index
    %652 = vector.load %arg7[%c8_435, %c0_436, %c0_437] : memref<9x1x128xf32, #tpu.memory_space<vmem>>, vector<1x1x128xf32>
    %653 = vector.shape_cast %652 : vector<1x1x128xf32> to vector<1x128xf32>
    %654 = vector.broadcast %653 : vector<1x128xf32> to vector<4x128xf32>
    %655 = arith.addf %651, %654 : vector<4x128xf32>
    %cst_438 = arith.constant 0.000000e+00 : f32
    %656 = vector.broadcast %cst_438 : f32 to vector<4x128xf32>
    %657 = arith.maximumf %655, %656 : vector<4x128xf32>
    %c8_439 = arith.constant 8 : index
    %c0_440 = arith.constant 0 : index
    %c0_441 = arith.constant 0 : index
    %658 = vector.load %arg8[%c8_439, %c0_440, %c0_441] : memref<9x1x128xf32, #tpu.memory_space<vmem>>, vector<1x1x128xf32>
    %659 = vector.shape_cast %658 : vector<1x1x128xf32> to vector<1x128xf32>
    %660 = vector.broadcast %659 : vector<1x128xf32> to vector<4x128xf32>
    %661 = arith.mulf %657, %660 : vector<4x128xf32>
    %c8_442 = arith.constant 8 : index
    %c0_443 = arith.constant 0 : index
    %c0_444 = arith.constant 0 : index
    %662 = vector.load %arg9[%c8_442, %c0_443, %c0_444] : memref<9x1x128xf32, #tpu.memory_space<vmem>>, vector<1x1x128xf32>
    %663 = vector.shape_cast %662 : vector<1x1x128xf32> to vector<1x128xf32>
    %664 = vector.broadcast %663 : vector<1x128xf32> to vector<4x128xf32>
    %665 = arith.addf %661, %664 : vector<4x128xf32>
    %c8_445 = arith.constant 8 : index
    %c0_446 = arith.constant 0 : index
    %c0_447 = arith.constant 0 : index
    %666 = vector.load %arg7[%c8_445, %c0_446, %c0_447] : memref<9x1x128xf32, #tpu.memory_space<vmem>>, vector<1x1x128xf32>
    %667 = vector.shape_cast %666 : vector<1x1x128xf32> to vector<1x128xf32>
    %cst_448 = arith.constant 0.000000e+00 : f32
    %668 = vector.broadcast %cst_448 : f32 to vector<1x128xf32>
    %669 = arith.maximumf %667, %668 : vector<1x128xf32>
    %c8_449 = arith.constant 8 : index
    %c0_450 = arith.constant 0 : index
    %c0_451 = arith.constant 0 : index
    %670 = vector.load %arg8[%c8_449, %c0_450, %c0_451] : memref<9x1x128xf32, #tpu.memory_space<vmem>>, vector<1x1x128xf32>
    %671 = vector.shape_cast %670 : vector<1x1x128xf32> to vector<1x128xf32>
    %672 = arith.mulf %669, %671 : vector<1x128xf32>
    %c8_452 = arith.constant 8 : index
    %c0_453 = arith.constant 0 : index
    %c0_454 = arith.constant 0 : index
    %673 = vector.load %arg9[%c8_452, %c0_453, %c0_454] : memref<9x1x128xf32, #tpu.memory_space<vmem>>, vector<1x1x128xf32>
    %674 = vector.shape_cast %673 : vector<1x1x128xf32> to vector<1x128xf32>
    %675 = arith.addf %672, %674 : vector<1x128xf32>
    %c0_455 = arith.constant 0 : index
    %c0_456 = arith.constant 0 : index
    %676 = vector.load %arg11[%c0_455, %c0_456] : memref<24x128xf32, #tpu.memory_space<vmem>>, vector<1x128xf32>
    tpu.vector_store %arg11[%c0_455, %c0_456], %0 {strides = array<i32>} : memref<24x128xf32, #tpu.memory_space<vmem>>, vector<1x128xf32>,
    %c1_457 = arith.constant 1 : index
    %c0_458 = arith.constant 0 : index
    %677 = vector.load %arg11[%c1_457, %c0_458] : memref<24x128xf32, #tpu.memory_space<vmem>>, vector<1x128xf32>
    tpu.vector_store %arg11[%c1_457, %c0_458], %675 {strides = array<i32>} : memref<24x128xf32, #tpu.memory_space<vmem>>, vector<1x128xf32>,
    %c2_459 = arith.constant 2 : index
    %c0_460 = arith.constant 0 : index
    %678 = vector.load %arg11[%c2_459, %c0_460] : memref<24x128xf32, #tpu.memory_space<vmem>>, vector<4x128xf32>
    tpu.vector_store %arg11[%c2_459, %c0_460], %665 {strides = array<i32>} : memref<24x128xf32, #tpu.memory_space<vmem>>, vector<4x128xf32>,
    %c6_461 = arith.constant 6 : index
    %c0_462 = arith.constant 0 : index
    %679 = vector.load %arg11[%c6_461, %c0_462] : memref<24x128xf32, #tpu.memory_space<vmem>>, vector<1x128xf32>
    tpu.vector_store %arg11[%c6_461, %c0_462], %675 {strides = array<i32>} : memref<24x128xf32, #tpu.memory_space<vmem>>, vector<1x128xf32>,
    %c7_463 = arith.constant 7 : index
    %c0_464 = arith.constant 0 : index
    %680 = vector.load %arg11[%c7_463, %c0_464] : memref<24x128xf32, #tpu.memory_space<vmem>>, vector<1x128xf32>
    tpu.vector_store %arg11[%c7_463, %c0_464], %0 {strides = array<i32>} : memref<24x128xf32, #tpu.memory_space<vmem>>, vector<1x128xf32>,
    %c0_465 = arith.constant 0 : index
    %c0_466 = arith.constant 0 : index
    %681 = vector.load %arg11[%c0_465, %c0_466] : memref<24x128xf32, #tpu.memory_space<vmem>>, vector<8x128xf32>
    %682 = vector.extract_strided_slice %681 {offsets = [0, 0], sizes = [7, 128], strides = [1, 1]} : vector<8x128xf32> to vector<7x128xf32>
    %683 = vector.extract_strided_slice %681 {offsets = [1, 0], sizes = [7, 128], strides = [1, 1]} : vector<8x128xf32> to vector<7x128xf32>
    %684 = arith.maximumf %682, %683 : vector<7x128xf32>
    %685 = tpu.iota {dimensions = array<i32: 0>} : vector<6x7xi32>
    %686 = tpu.iota {dimensions = array<i32: 1>} : vector<6x7xi32>
    %c1_i32_467 = arith.constant 1 : i32
    %687 = vector.broadcast %c1_i32_467 : i32 to vector<6x7xi32>
    %688 = arith.subi %685, %687 : vector<6x7xi32>
    %c2_i32_468 = arith.constant 2 : i32
    %689 = vector.broadcast %c2_i32_468 : i32 to vector<6x7xi32>
    %690 = arith.muli %689, %688 : vector<6x7xi32>
    %691 = arith.cmpi eq, %686, %690 : vector<6x7xi32>
    %cst_469 = arith.constant 1.000000e+00 : f32
    %cst_470 = arith.constant 0.000000e+00 : f32
    %692 = vector.broadcast %cst_469 : f32 to vector<6x7xf32>
    %693 = vector.broadcast %cst_470 : f32 to vector<6x7xf32>
    %694 = arith.select %691, %692, %693 : vector<6x7xi1>, vector<6x7xf32>
    %cst_471 = arith.constant dense<0.000000e+00> : vector<6x128xf32>
    %695 = tpu.matmul %694, %684, %cst_471 {dimension_numbers = #tpu.dot_dimension_numbers<[1], [0], [0], [1], [0, 0, 1, 1], [], []>} : vector<6x7xf32>, vector<7x128xf32>, vector<6x128xf32> -> vector<6x128xf32>
    %696 = vector.extract_strided_slice %695 {offsets = [1, 0], sizes = [4, 128], strides = [1, 1]} : vector<6x128xf32> to vector<4x128xf32>
    %c0_472 = arith.constant 0 : index
    %c0_473 = arith.constant 0 : index
    %c0_474 = arith.constant 0 : index
    %697 = vector.load %arg10[%c0_472, %c0_473, %c0_474] : memref<1x4x128xf32, #tpu.memory_space<vmem>>, vector<1x4x128xf32>
    %698 = vector.shape_cast %697 : vector<1x4x128xf32> to vector<4x128xf32>
    %699 = vector.shape_cast %696 : vector<4x128xf32> to vector<1x4x128xf32>
    tpu.vector_store %arg10[%c0_472, %c0_473, %c0_474], %699 {strides = array<i32>} : memref<1x4x128xf32, #tpu.memory_space<vmem>>, vector<1x4x128xf32>,
    return
  }
  func.func @transform_0(%arg0: i32) -> (i32, i32, i32) {
    %c0_i32 = arith.constant 0 : i32
    %c0_i32_0 = arith.constant 0 : i32
    %c0_i32_1 = arith.constant 0 : i32
    return %arg0, %c0_i32, %c0_i32_0 : i32, i32, i32
  }
  func.func @transform_1(%arg0: i32) -> (i32, i32, i32) {
    %c0_i32 = arith.constant 0 : i32
    %c0_i32_0 = arith.constant 0 : i32
    %c0_i32_1 = arith.constant 0 : i32
    %c0_i32_2 = arith.constant 0 : i32
    return %c0_i32, %c0_i32_0, %c0_i32_1 : i32, i32, i32
  }
  func.func @transform_2(%arg0: i32) -> (i32, i32, i32) {
    %c0_i32 = arith.constant 0 : i32
    %c0_i32_0 = arith.constant 0 : i32
    %c0_i32_1 = arith.constant 0 : i32
    %c0_i32_2 = arith.constant 0 : i32
    return %c0_i32, %c0_i32_0, %c0_i32_1 : i32, i32, i32
  }
  func.func @transform_3(%arg0: i32) -> (i32, i32, i32) {
    %c0_i32 = arith.constant 0 : i32
    %c0_i32_0 = arith.constant 0 : i32
    %c0_i32_1 = arith.constant 0 : i32
    %c0_i32_2 = arith.constant 0 : i32
    return %c0_i32, %c0_i32_0, %c0_i32_1 : i32, i32, i32
  }
  func.func @transform_4(%arg0: i32) -> (i32, i32, i32) {
    %c0_i32 = arith.constant 0 : i32
    %c0_i32_0 = arith.constant 0 : i32
    %c0_i32_1 = arith.constant 0 : i32
    %c0_i32_2 = arith.constant 0 : i32
    return %c0_i32, %c0_i32_0, %c0_i32_1 : i32, i32, i32
  }
  func.func @transform_5(%arg0: i32) -> (i32, i32, i32) {
    %c0_i32 = arith.constant 0 : i32
    %c0_i32_0 = arith.constant 0 : i32
    %c0_i32_1 = arith.constant 0 : i32
    %c0_i32_2 = arith.constant 0 : i32
    return %c0_i32, %c0_i32_0, %c0_i32_1 : i32, i32, i32
  }
  func.func @transform_6(%arg0: i32) -> (i32, i32, i32) {
    %c0_i32 = arith.constant 0 : i32
    %c0_i32_0 = arith.constant 0 : i32
    %c0_i32_1 = arith.constant 0 : i32
    %c0_i32_2 = arith.constant 0 : i32
    return %c0_i32, %c0_i32_0, %c0_i32_1 : i32, i32, i32
  }
  func.func @transform_7(%arg0: i32) -> (i32, i32, i32) {
    %c0_i32 = arith.constant 0 : i32
    %c0_i32_0 = arith.constant 0 : i32
    %c0_i32_1 = arith.constant 0 : i32
    %c0_i32_2 = arith.constant 0 : i32
    return %c0_i32, %c0_i32_0, %c0_i32_1 : i32, i32, i32
  }
  func.func @transform_8(%arg0: i32) -> (i32, i32, i32) {
    %c0_i32 = arith.constant 0 : i32
    %c0_i32_0 = arith.constant 0 : i32
    %c0_i32_1 = arith.constant 0 : i32
    %c0_i32_2 = arith.constant 0 : i32
    return %c0_i32, %c0_i32_0, %c0_i32_1 : i32, i32, i32
  }
  func.func @transform_9(%arg0: i32) -> (i32, i32, i32) {
    %c0_i32 = arith.constant 0 : i32
    %c0_i32_0 = arith.constant 0 : i32
    %c0_i32_1 = arith.constant 0 : i32
    return %arg0, %c0_i32, %c0_i32_0 : i32, i32, i32
  }
}

module attributes {stable_mosaic.version = 11 : i64} {
  func.func @head_kernel(%arg0: i32, %arg1: memref<4x512xf32, #tpu.memory_space<vmem>>, %arg2: memref<512x256xf32, #tpu.memory_space<vmem>>, %arg3: memref<1x256xf32, #tpu.memory_space<vmem>>, %arg4: memref<256x256xf32, #tpu.memory_space<vmem>>, %arg5: memref<1x256xf32, #tpu.memory_space<vmem>>, %arg6: memref<256x128xf32, #tpu.memory_space<vmem>>, %arg7: memref<256x128xf32, #tpu.memory_space<vmem>>, %arg8: memref<1x128xf32, #tpu.memory_space<vmem>>, %arg9: memref<128x3xf32, #tpu.memory_space<vmem>>, %arg10: memref<1x3xf32, #tpu.memory_space<vmem>>, %arg11: memref<2x3xf32, #tpu.memory_space<vmem>>) attributes {dimension_semantics = [#tpu.dimension_semantics<arbitrary>], iteration_bounds = array<i64: 1>, scalar_prefetch = 0 : i64, scratch_operands = 0 : i64, tpu.core_type = #tpu.core_type<tc>, window_params = [{pipeline_mode = #tpu.pipeline_mode<synchronous>, transform_indices = @transform_0, window_bounds = array<i64: 4, 512>}, {pipeline_mode = #tpu.pipeline_mode<synchronous>, transform_indices = @transform_1, window_bounds = array<i64: 512, 256>}, {pipeline_mode = #tpu.pipeline_mode<synchronous>, transform_indices = @transform_2, window_bounds = array<i64: 1, 256>}, {pipeline_mode = #tpu.pipeline_mode<synchronous>, transform_indices = @transform_3, window_bounds = array<i64: 256, 256>}, {pipeline_mode = #tpu.pipeline_mode<synchronous>, transform_indices = @transform_4, window_bounds = array<i64: 1, 256>}, {pipeline_mode = #tpu.pipeline_mode<synchronous>, transform_indices = @transform_5, window_bounds = array<i64: 256, 128>}, {pipeline_mode = #tpu.pipeline_mode<synchronous>, transform_indices = @transform_6, window_bounds = array<i64: 256, 128>}, {pipeline_mode = #tpu.pipeline_mode<synchronous>, transform_indices = @transform_7, window_bounds = array<i64: 1, 128>}, {pipeline_mode = #tpu.pipeline_mode<synchronous>, transform_indices = @transform_8, window_bounds = array<i64: 128, 3>}, {pipeline_mode = #tpu.pipeline_mode<synchronous>, transform_indices = @transform_9, window_bounds = array<i64: 1, 3>}, {pipeline_mode = #tpu.pipeline_mode<synchronous>, transform_indices = @transform_10, window_bounds = array<i64: 2, 3>}]} {
    %c0 = arith.constant 0 : index
    %c0_0 = arith.constant 0 : index
    %0 = vector.load %arg1[%c0, %c0_0] : memref<4x512xf32, #tpu.memory_space<vmem>>, vector<4x512xf32>
    %c0_1 = arith.constant 0 : index
    %c0_2 = arith.constant 0 : index
    %1 = vector.load %arg2[%c0_1, %c0_2] : memref<512x256xf32, #tpu.memory_space<vmem>>, vector<512x256xf32>
    %cst = arith.constant dense<0.000000e+00> : vector<4x256xf32>
    %2 = tpu.matmul %0, %1, %cst {dimension_numbers = #tpu.dot_dimension_numbers<[1], [0], [0], [1], [0, 0, 1, 1], [], []>} : vector<4x512xf32>, vector<512x256xf32>, vector<4x256xf32> -> vector<4x256xf32>
    %c0_3 = arith.constant 0 : index
    %c0_4 = arith.constant 0 : index
    %3 = vector.load %arg3[%c0_3, %c0_4] : memref<1x256xf32, #tpu.memory_space<vmem>>, vector<1x256xf32>
    %4 = vector.broadcast %3 : vector<1x256xf32> to vector<4x256xf32>
    %5 = arith.addf %2, %4 : vector<4x256xf32>
    %6 = math.tanh %5 : vector<4x256xf32>
    %c0_5 = arith.constant 0 : index
    %c0_6 = arith.constant 0 : index
    %7 = vector.load %arg4[%c0_5, %c0_6] : memref<256x256xf32, #tpu.memory_space<vmem>>, vector<256x256xf32>
    %cst_7 = arith.constant dense<0.000000e+00> : vector<4x256xf32>
    %8 = tpu.matmul %6, %7, %cst_7 {dimension_numbers = #tpu.dot_dimension_numbers<[1], [0], [0], [1], [0, 0, 1, 1], [], []>} : vector<4x256xf32>, vector<256x256xf32>, vector<4x256xf32> -> vector<4x256xf32>
    %c0_8 = arith.constant 0 : index
    %c0_9 = arith.constant 0 : index
    %9 = vector.load %arg5[%c0_8, %c0_9] : memref<1x256xf32, #tpu.memory_space<vmem>>, vector<1x256xf32>
    %10 = vector.broadcast %9 : vector<1x256xf32> to vector<4x256xf32>
    %11 = arith.addf %8, %10 : vector<4x256xf32>
    %12 = math.tanh %11 : vector<4x256xf32>
    %13 = vector.extract_strided_slice %12 {offsets = [0, 0], sizes = [2, 256], strides = [1, 1]} : vector<4x256xf32> to vector<2x256xf32>
    %14 = vector.extract_strided_slice %12 {offsets = [2, 0], sizes = [2, 256], strides = [1, 1]} : vector<4x256xf32> to vector<2x256xf32>
    %c0_10 = arith.constant 0 : index
    %c0_11 = arith.constant 0 : index
    %15 = vector.load %arg6[%c0_10, %c0_11] : memref<256x128xf32, #tpu.memory_space<vmem>>, vector<256x128xf32>
    %cst_12 = arith.constant dense<0.000000e+00> : vector<2x128xf32>
    %16 = tpu.matmul %13, %15, %cst_12 {dimension_numbers = #tpu.dot_dimension_numbers<[1], [0], [0], [1], [0, 0, 1, 1], [], []>} : vector<2x256xf32>, vector<256x128xf32>, vector<2x128xf32> -> vector<2x128xf32>
    %c0_13 = arith.constant 0 : index
    %c0_14 = arith.constant 0 : index
    %17 = vector.load %arg7[%c0_13, %c0_14] : memref<256x128xf32, #tpu.memory_space<vmem>>, vector<256x128xf32>
    %cst_15 = arith.constant dense<0.000000e+00> : vector<2x128xf32>
    %18 = tpu.matmul %14, %17, %cst_15 {dimension_numbers = #tpu.dot_dimension_numbers<[1], [0], [0], [1], [0, 0, 1, 1], [], []>} : vector<2x256xf32>, vector<256x128xf32>, vector<2x128xf32> -> vector<2x128xf32>
    %19 = arith.addf %16, %18 : vector<2x128xf32>
    %c0_16 = arith.constant 0 : index
    %c0_17 = arith.constant 0 : index
    %20 = vector.load %arg8[%c0_16, %c0_17] : memref<1x128xf32, #tpu.memory_space<vmem>>, vector<1x128xf32>
    %21 = vector.broadcast %20 : vector<1x128xf32> to vector<2x128xf32>
    %22 = arith.addf %19, %21 : vector<2x128xf32>
    %c0_18 = arith.constant 0 : index
    %c0_19 = arith.constant 0 : index
    %23 = vector.load %arg9[%c0_18, %c0_19] : memref<128x3xf32, #tpu.memory_space<vmem>>, vector<128x3xf32>
    %cst_20 = arith.constant dense<0.000000e+00> : vector<2x3xf32>
    %24 = tpu.matmul %22, %23, %cst_20 {dimension_numbers = #tpu.dot_dimension_numbers<[1], [0], [0], [1], [0, 0, 1, 1], [], []>} : vector<2x128xf32>, vector<128x3xf32>, vector<2x3xf32> -> vector<2x3xf32>
    %c0_21 = arith.constant 0 : index
    %c0_22 = arith.constant 0 : index
    %25 = vector.load %arg10[%c0_21, %c0_22] : memref<1x3xf32, #tpu.memory_space<vmem>>, vector<1x3xf32>
    %26 = vector.broadcast %25 : vector<1x3xf32> to vector<2x3xf32>
    %27 = arith.addf %24, %26 : vector<2x3xf32>
    %c0_23 = arith.constant 0 : index
    %c0_24 = arith.constant 0 : index
    %28 = vector.load %arg11[%c0_23, %c0_24] : memref<2x3xf32, #tpu.memory_space<vmem>>, vector<2x3xf32>
    tpu.vector_store %arg11[%c0_23, %c0_24], %27 {strides = array<i32>} : memref<2x3xf32, #tpu.memory_space<vmem>>, vector<2x3xf32>,
    return
  }
  func.func @transform_0(%arg0: i32) -> (i32, i32) {
    %c0_i32 = arith.constant 0 : i32
    %c0_i32_0 = arith.constant 0 : i32
    %c0_i32_1 = arith.constant 0 : i32
    return %c0_i32, %c0_i32_0 : i32, i32
  }
  func.func @transform_1(%arg0: i32) -> (i32, i32) {
    %c0_i32 = arith.constant 0 : i32
    %c0_i32_0 = arith.constant 0 : i32
    %c0_i32_1 = arith.constant 0 : i32
    return %c0_i32, %c0_i32_0 : i32, i32
  }
  func.func @transform_2(%arg0: i32) -> (i32, i32) {
    %c0_i32 = arith.constant 0 : i32
    %c0_i32_0 = arith.constant 0 : i32
    %c0_i32_1 = arith.constant 0 : i32
    return %c0_i32, %c0_i32_0 : i32, i32
  }
  func.func @transform_3(%arg0: i32) -> (i32, i32) {
    %c0_i32 = arith.constant 0 : i32
    %c0_i32_0 = arith.constant 0 : i32
    %c0_i32_1 = arith.constant 0 : i32
    return %c0_i32, %c0_i32_0 : i32, i32
  }
  func.func @transform_4(%arg0: i32) -> (i32, i32) {
    %c0_i32 = arith.constant 0 : i32
    %c0_i32_0 = arith.constant 0 : i32
    %c0_i32_1 = arith.constant 0 : i32
    return %c0_i32, %c0_i32_0 : i32, i32
  }
  func.func @transform_5(%arg0: i32) -> (i32, i32) {
    %c0_i32 = arith.constant 0 : i32
    %c0_i32_0 = arith.constant 0 : i32
    %c0_i32_1 = arith.constant 0 : i32
    return %c0_i32, %c0_i32_0 : i32, i32
  }
  func.func @transform_6(%arg0: i32) -> (i32, i32) {
    %c0_i32 = arith.constant 0 : i32
    %c0_i32_0 = arith.constant 0 : i32
    %c0_i32_1 = arith.constant 0 : i32
    return %c0_i32, %c0_i32_0 : i32, i32
  }
  func.func @transform_7(%arg0: i32) -> (i32, i32) {
    %c0_i32 = arith.constant 0 : i32
    %c0_i32_0 = arith.constant 0 : i32
    %c0_i32_1 = arith.constant 0 : i32
    return %c0_i32, %c0_i32_0 : i32, i32
  }
  func.func @transform_8(%arg0: i32) -> (i32, i32) {
    %c0_i32 = arith.constant 0 : i32
    %c0_i32_0 = arith.constant 0 : i32
    %c0_i32_1 = arith.constant 0 : i32
    return %c0_i32, %c0_i32_0 : i32, i32
  }
  func.func @transform_9(%arg0: i32) -> (i32, i32) {
    %c0_i32 = arith.constant 0 : i32
    %c0_i32_0 = arith.constant 0 : i32
    %c0_i32_1 = arith.constant 0 : i32
    return %c0_i32, %c0_i32_0 : i32, i32
  }
  func.func @transform_10(%arg0: i32) -> (i32, i32) {
    %c0_i32 = arith.constant 0 : i32
    %c0_i32_0 = arith.constant 0 : i32
    %c0_i32_1 = arith.constant 0 : i32
    return %c0_i32, %c0_i32_0 : i32, i32
  }
}

</mosaic_0001>

<llo_original>
// kernel: _lambda_.3
$region0: #{_lambda_.3}
  #allocation0 [shape = 'u32[]', space=smem, size = 0x4, offset = 0x4, fixed_abs, tag = 'smem constant byte address 0x4 - core index']
  #allocation1 [shape = 'u32[72,128]{1,0:T(1,128)}', space=vmem, size = 0x9000, scoped, tag = 'internal scratch']
  %s0 = inlined_call_operand.vmem [shape: f32[4,512], index: 0, kind: input, shape index: {}]
  %s1 = inlined_call_operand.hbm [shape: f32[512,256], index: 1, kind: input, shape index: {}]
  %s2 = inlined_call_operand.hbm [shape: f32[1,256], index: 2, kind: input, shape index: {}]
  %s3 = inlined_call_operand.hbm [shape: f32[256,256], index: 3, kind: input, shape index: {}]
  %s4 = inlined_call_operand.hbm [shape: f32[1,256], index: 4, kind: input, shape index: {}]
  %s5 = inlined_call_operand.hbm [shape: f32[256,128], index: 5, kind: input, shape index: {}]
  %s6 = inlined_call_operand.vmem [shape: f32[256,128], index: 6, kind: input, shape index: {}]
  %s7 = inlined_call_operand.hbm [shape: f32[1,128], index: 7, kind: input, shape index: {}]
  %s8 = inlined_call_operand.hbm [shape: f32[128,3], index: 8, kind: input, shape index: {}]
  %s9 = inlined_call_operand.hbm [shape: f32[1,3], index: 9, kind: input, shape index: {}]
  %s10 = inlined_call_operand.hbm [shape: f32[2,3], index: 10, kind: output, shape index: {}]
  %s11 = sld [smem:[#allocation0]]
  $region82: #{_lambda_.3} parent=0
    _
  %s13 = ssub.s32 1, %s11
  %s14 = scalar_select 0, %s13, %s11
  $region1: #{_lambda_.3} parent=0
    #allocation2 [shape = 'u8[524288]{0}', space=vmem, size = 0x80000, scoped, tag = 'input window, operand 1, single buffered']
    #allocation3 [shape = 's32[1]{0}', space=sflag, size = 0x4, scoped, tag = 'scoped memory for _lambda_.3']
    #allocation4 [shape = 's32[1]{0}', space=sflag, size = 0x4, scoped, tag = 'scoped memory for _lambda_.3']
    #allocation5 [shape = 'u8[1024]{0}', space=vmem, size = 0x400, scoped, tag = 'input window, operand 2, single buffered']
    #allocation6 [shape = 's32[1]{0}', space=sflag, size = 0x4, scoped, tag = 'scoped memory for _lambda_.3']
    #allocation7 [shape = 'u8[262144]{0}', space=vmem, size = 0x40000, scoped, tag = 'input window, operand 3, single buffered']
    #allocation8 [shape = 'u8[1024]{0}', space=vmem, size = 0x400, scoped, tag = 'input window, operand 4, single buffered']
    #allocation9 [shape = 's32[1]{0}', space=sflag, size = 0x4, scoped, tag = 'scoped memory for _lambda_.3']
    #allocation10 [shape = 'u8[131072]{0}', space=vmem, size = 0x20000, scoped, tag = 'input window, operand 5, single buffered']
    #allocation11 [shape = 'u8[512]{0}', space=vmem, size = 0x400, scoped, tag = 'input window, operand 7, single buffered']
    #allocation12 [shape = 's32[1]{0}', space=sflag, size = 0x4, scoped, tag = 'scoped memory for _lambda_.3']
    #allocation13 [shape = 'u8[65536]{0}', space=vmem, size = 0x10000, scoped, tag = 'input window, operand 8, single buffered']
    #allocation14 [shape = 'u8[512]{0}', space=vmem, size = 0x400, scoped, tag = 'input window, operand 9, single buffered']
    #allocation15 [shape = 's32[1]{0}', space=sflag, size = 0x4, scoped, tag = 'scoped memory for _lambda_.3']
    #allocation16 [shape = 'u8[1024]{0}', space=vmem, size = 0x400, scoped, tag = 'output window, operand 0, single buffered']
    %15 = vsyncpa [#allocation3], 0
    %16 = vsyncpa [#allocation6], 0
    %17 = vsyncpa [#allocation9], 0
    %18 = vsyncpa [#allocation12], 0
    %19 = vsyncpa [#allocation15], 0
    %20 = vsyncpa [#allocation4], 0
    // Predicated region
    $region2: #{_lambda_.3} parent=1 // pred_check
      _
    $region3: #{_lambda_.3} parent=1 // pred_check_branch
      %22 = sbr.rel (0) target = $region5
    $region4: #{_lambda_.3} parent=1 // pred_region
      _
    $region5: #{_lambda_.3} parent=1 // pred_fallthru
      _
    // Predicated region
    $region6: #{_lambda_.3} parent=1 // pred_check
      _
    $region7: #{_lambda_.3} parent=1 // pred_check_branch
      %24 = sbr.rel (0) target = $region9
    $region8: #{_lambda_.3} parent=1 // pred_region
      %26 = vsyncadd [#allocation3], 0
      %s27 = sshll.u32 %s1, 4
      %s28 = int_to_ptr.hbm [resolvable:$true] %s27
      %s29 = sshll.u32 [#allocation2], 4
      %s30 = int_to_ptr.vmem [resolvable:$true] %s29
      %35 = dma.hbm_to_vmem [thread:$0]  %s28, 16384, %s30, [#allocation3], 256, 256, 16
    $region9: #{_lambda_.3} parent=1 // pred_fallthru
      _
    // Predicated region
    $region10: #{_lambda_.3} parent=1 // pred_check
      _
    $region11: #{_lambda_.3} parent=1 // pred_check_branch
      %37 = sbr.rel (0) target = $region13
    $region12: #{_lambda_.3} parent=1 // pred_region
      %39 = vsyncadd [#allocation6], 0
      %s41 = sshll.u32 %s2, 4
      %s42 = int_to_ptr.hbm [resolvable:$true] %s41
      %s43 = sshll.u32 [#allocation5], 4
      %s44 = int_to_ptr.vmem [resolvable:$true] %s43
      %46 = dma.hbm_to_vmem [thread:$0]  %s42, 32, %s44, [#allocation6]
    $region13: #{_lambda_.3} parent=1 // pred_fallthru
      _
    // Predicated region
    $region14: #{_lambda_.3} parent=1 // pred_check
      _
    $region15: #{_lambda_.3} parent=1 // pred_check_branch
      %48 = sbr.rel (0) target = $region17
    $region16: #{_lambda_.3} parent=1 // pred_region
      %50 = vsyncadd [#allocation6], 0
      %s51 = sshll.u32 %s3, 4
      %s52 = int_to_ptr.hbm [resolvable:$true] %s51
      %s53 = sshll.u32 [#allocation7], 4
      %s54 = int_to_ptr.vmem [resolvable:$true] %s53
      %59 = dma.hbm_to_vmem [thread:$0]  %s52, 8192, %s54, [#allocation6], 256, 256, 16
    $region17: #{_lambda_.3} parent=1 // pred_fallthru
      _
    // Predicated region
    $region18: #{_lambda_.3} parent=1 // pred_check
      _
    $region19: #{_lambda_.3} parent=1 // pred_check_branch
      %61 = sbr.rel (0) target = $region21
    $region20: #{_lambda_.3} parent=1 // pred_region
      %63 = vsyncadd [#allocation9], 0
      %s65 = sshll.u32 %s4, 4
      %s66 = int_to_ptr.hbm [resolvable:$true] %s65
      %s67 = sshll.u32 [#allocation8], 4
      %s68 = int_to_ptr.vmem [resolvable:$true] %s67
      %70 = dma.hbm_to_vmem [thread:$0]  %s66, 32, %s68, [#allocation9]
    $region21: #{_lambda_.3} parent=1 // pred_fallthru
      _
    // Predicated region
    $region22: #{_lambda_.3} parent=1 // pred_check
      _
    $region23: #{_lambda_.3} parent=1 // pred_check_branch
      %72 = sbr.rel (0) target = $region25
    $region24: #{_lambda_.3} parent=1 // pred_region
      %74 = vsyncadd [#allocation9], 0
      %s75 = sshll.u32 %s5, 4
      %s76 = int_to_ptr.hbm [resolvable:$true] %s75
      %s77 = sshll.u32 [#allocation10], 4
      %s78 = int_to_ptr.vmem [resolvable:$true] %s77
      %83 = dma.hbm_to_vmem [thread:$0]  %s76, 4096, %s78, [#allocation9], 128, 128, 8
    $region25: #{_lambda_.3} parent=1 // pred_fallthru
      _
    // Predicated region
    $region26: #{_lambda_.3} parent=1 // pred_check
      _
    $region27: #{_lambda_.3} parent=1 // pred_check_branch
      %85 = sbr.rel (0) target = $region29
    $region28: #{_lambda_.3} parent=1 // pred_region
      _
    $region29: #{_lambda_.3} parent=1 // pred_fallthru
      _
    // Predicated region
    $region30: #{_lambda_.3} parent=1 // pred_check
      _
    $region31: #{_lambda_.3} parent=1 // pred_check_branch
      %87 = sbr.rel (0) target = $region33
    $region32: #{_lambda_.3} parent=1 // pred_region
      %89 = vsyncadd [#allocation12], 0
      %s91 = sshll.u32 %s7, 4
      %s92 = int_to_ptr.hbm [resolvable:$true] %s91
      %s93 = sshll.u32 [#allocation11], 4
      %s94 = int_to_ptr.vmem [resolvable:$true] %s93
      %96 = dma.hbm_to_vmem [thread:$0]  %s92, 16, %s94, [#allocation12]
    $region33: #{_lambda_.3} parent=1 // pred_fallthru
      _
    // Predicated region
    $region34: #{_lambda_.3} parent=1 // pred_check
      _
    $region35: #{_lambda_.3} parent=1 // pred_check_branch
      %98 = sbr.rel (0) target = $region37
    $region36: #{_lambda_.3} parent=1 // pred_region
      %100 = vsyncadd [#allocation12], 0
      %s101 = sshll.u32 %s8, 4
      %s102 = int_to_ptr.hbm [resolvable:$true] %s101
      %s103 = sshll.u32 [#allocation13], 4
      %s104 = int_to_ptr.vmem [resolvable:$true] %s103
      %109 = dma.hbm_to_vmem [thread:$0]  %s102, 2048, %s104, [#allocation12], 128, 128, 8
    $region37: #{_lambda_.3} parent=1 // pred_fallthru
      _
    // Predicated region
    $region38: #{_lambda_.3} parent=1 // pred_check
      _
    $region39: #{_lambda_.3} parent=1 // pred_check_branch
      %111 = sbr.rel (0) target = $region41
    $region40: #{_lambda_.3} parent=1 // pred_region
      %113 = vsyncadd [#allocation15], 0
      %s115 = sshll.u32 %s9, 4
      %s116 = int_to_ptr.hbm [resolvable:$true] %s115
      %s117 = sshll.u32 [#allocation14], 4
      %s118 = int_to_ptr.vmem [resolvable:$true] %s117
      %120 = dma.hbm_to_vmem [thread:$0]  %s116, 16, %s118, [#allocation15]
    $region41: #{_lambda_.3} parent=1 // pred_fallthru
      _
    // Predicated region
    $region42: #{_lambda_.3} parent=1 // pred_check
      _
    $region43: #{_lambda_.3} parent=1 // pred_check_branch
      %122 = sbr.rel (0) target = $region45
    $region44: #{_lambda_.3} parent=1 // pred_region
      %124 = dma.done [#allocation3], 16384
    $region45: #{_lambda_.3} parent=1 // pred_fallthru
      _
    // Predicated region
    $region46: #{_lambda_.3} parent=1 // pred_check
      _
    $region47: #{_lambda_.3} parent=1 // pred_check_branch
      %126 = sbr.rel (0) target = $region49
    $region48: #{_lambda_.3} parent=1 // pred_region
      %128 = dma.done [#allocation6], 32
    $region49: #{_lambda_.3} parent=1 // pred_fallthru
      _
    // Predicated region
    $region50: #{_lambda_.3} parent=1 // pred_check
      _
    $region51: #{_lambda_.3} parent=1 // pred_check_branch
      %130 = sbr.rel (0) target = $region53
    $region52: #{_lambda_.3} parent=1 // pred_region
      %132 = dma.done [#allocation6], 8192
    $region53: #{_lambda_.3} parent=1 // pred_fallthru
      _
    // Predicated region
    $region54: #{_lambda_.3} parent=1 // pred_check
      _
    $region55: #{_lambda_.3} parent=1 // pred_check_branch
      %134 = sbr.rel (0) target = $region57
    $region56: #{_lambda_.3} parent=1 // pred_region
      %136 = dma.done [#allocation9], 32
    $region57: #{_lambda_.3} parent=1 // pred_fallthru
      _
    // Predicated region
    $region58: #{_lambda_.3} parent=1 // pred_check
      _
    $region59: #{_lambda_.3} parent=1 // pred_check_branch
      %138 = sbr.rel (0) target = $region61
    $region60: #{_lambda_.3} parent=1 // pred_region
      %140 = dma.done [#allocation9], 4096
    $region61: #{_lambda_.3} parent=1 // pred_fallthru
      _
    // Predicated region
    $region62: #{_lambda_.3} parent=1 // pred_check
      _
    $region63: #{_lambda_.3} parent=1 // pred_check_branch
      %142 = sbr.rel (0) target = $region65
    $region64: #{_lambda_.3} parent=1 // pred_region
      %144 = dma.done [#allocation12], 16
    $region65: #{_lambda_.3} parent=1 // pred_fallthru
      _
    // Predicated region
    $region66: #{_lambda_.3} parent=1 // pred_check
      _
    $region67: #{_lambda_.3} parent=1 // pred_check_branch
      %146 = sbr.rel (0) target = $region69
    $region68: #{_lambda_.3} parent=1 // pred_region
      %148 = dma.done [#allocation12], 2048
    $region69: #{_lambda_.3} parent=1 // pred_fallthru
      _
    // Predicated region
    $region70: #{_lambda_.3} parent=1 // pred_check
      _
    $region71: #{_lambda_.3} parent=1 // pred_check_branch
      %150 = sbr.rel (0) target = $region73
    $region72: #{_lambda_.3} parent=1 // pred_region
      %152 = dma.done [#allocation15], 16
    $region73: #{_lambda_.3} parent=1 // pred_fallthru
      _
    %v153 = vld [vmem:[%s0] sm:$0xff]
    %v154 = vld [vmem:[%s0 + $0x8] sm:$0xff]
    %v155 = vld [vmem:[#allocation2] sm:$0xff]
    %v156 = vld [vmem:[#allocation2 + $0x8] sm:$0xff]
    %v157 = vld [vmem:[#allocation2 + $0x10] sm:$0xff]
    %v158 = vld [vmem:[#allocation2 + $0x18] sm:$0xff]
    %v159 = vld [vmem:[#allocation2 + $0x20] sm:$0xff]
    %v160 = vld [vmem:[#allocation2 + $0x28] sm:$0xff]
    %v161 = vld [vmem:[#allocation2 + $0x30] sm:$0xff]
    %v162 = vld [vmem:[#allocation2 + $0x38] sm:$0xff]
    %v163 = vld [vmem:[#allocation2 + $0x40] sm:$0xff]
    %v164 = vld [vmem:[#allocation2 + $0x48] sm:$0xff]
    %v165 = vld [vmem:[#allocation2 + $0x50] sm:$0xff]
    %v166 = vld [vmem:[#allocation2 + $0x58] sm:$0xff]
    %v167 = vld [vmem:[#allocation2 + $0x60] sm:$0xff]
    %v168 = vld [vmem:[#allocation2 + $0x68] sm:$0xff]
    %v169 = vld [vmem:[#allocation2 + $0x70] sm:$0xff]
    %v170 = vld [vmem:[#allocation2 + $0x78] sm:$0xff]
    %v171 = vld [vmem:[#allocation2 + $0x80] sm:$0xff]
    %v172 = vld [vmem:[#allocation2 + $0x88] sm:$0xff]
    %v173 = vld [vmem:[#allocation2 + $0x90] sm:$0xff]
    %v174 = vld [vmem:[#allocation2 + $0x98] sm:$0xff]
    %v175 = vld [vmem:[#allocation2 + $0xa0] sm:$0xff]
    %v176 = vld [vmem:[#allocation2 + $0xa8] sm:$0xff]
    %v177 = vld [vmem:[#allocation2 + $0xb0] sm:$0xff]
    %v178 = vld [vmem:[#allocation2 + $0xb8] sm:$0xff]
    %v179 = vld [vmem:[#allocation2 + $0xc0] sm:$0xff]
    %v180 = vld [vmem:[#allocation2 + $0xc8] sm:$0xff]
    %v181 = vld [vmem:[#allocation2 + $0xd0] sm:$0xff]
    %v182 = vld [vmem:[#allocation2 + $0xd8] sm:$0xff]
    %v183 = vld [vmem:[#allocation2 + $0xe0] sm:$0xff]
    %v184 = vld [vmem:[#allocation2 + $0xe8] sm:$0xff]
    %v185 = vld [vmem:[#allocation2 + $0xf0] sm:$0xff]
    %v186 = vld [vmem:[#allocation2 + $0xf8] sm:$0xff]
    %v187 = vld [vmem:[#allocation2 + $0x100] sm:$0xff]
    %v188 = vld [vmem:[#allocation2 + $0x108] sm:$0xff]
    %v189 = vld [vmem:[#allocation2 + $0x110] sm:$0xff]
    %v190 = vld [vmem:[#allocation2 + $0x118] sm:$0xff]
    %v191 = vld [vmem:[#allocation2 + $0x120] sm:$0xff]
    %v192 = vld [vmem:[#allocation2 + $0x128] sm:$0xff]
    %v193 = vld [vmem:[#allocation2 + $0x130] sm:$0xff]
    %v194 = vld [vmem:[#allocation2 + $0x138] sm:$0xff]
    %v195 = vld [vmem:[#allocation2 + $0x140] sm:$0xff]
    %v196 = vld [vmem:[#allocation2 + $0x148] sm:$0xff]
    %v197 = vld [vmem:[#allocation2 + $0x150] sm:$0xff]
    %v198 = vld [vmem:[#allocation2 + $0x158] sm:$0xff]
    %v199 = vld [vmem:[#allocation2 + $0x160] sm:$0xff]
    %v200 = vld [vmem:[#allocation2 + $0x168] sm:$0xff]
    %v201 = vld [vmem:[#allocation2 + $0x170] sm:$0xff]
    %v202 = vld [vmem:[#allocation2 + $0x178] sm:$0xff]
    %v203 = vld [vmem:[#allocation2 + $0x180] sm:$0xff]
    %v204 = vld [vmem:[#allocation2 + $0x188] sm:$0xff]
    %v205 = vld [vmem:[#allocation2 + $0x190] sm:$0xff]
    %v206 = vld [vmem:[#allocation2 + $0x198] sm:$0xff]
    %v207 = vld [vmem:[#allocation2 + $0x1a0] sm:$0xff]
    %v208 = vld [vmem:[#allocation2 + $0x1a8] sm:$0xff]
    %v209 = vld [vmem:[#allocation2 + $0x1b0] sm:$0xff]
    %v210 = vld [vmem:[#allocation2 + $0x1b8] sm:$0xff]
    %v211 = vld [vmem:[#allocation2 + $0x1c0] sm:$0xff]
    %v212 = vld [vmem:[#allocation2 + $0x1c8] sm:$0xff]
    %v213 = vld [vmem:[#allocation2 + $0x1d0] sm:$0xff]
    %v214 = vld [vmem:[#allocation2 + $0x1d8] sm:$0xff]
    %v215 = vld [vmem:[#allocation2 + $0x1e0] sm:$0xff]
    %v216 = vld [vmem:[#allocation2 + $0x1e8] sm:$0xff]
    %v217 = vld [vmem:[#allocation2 + $0x1f0] sm:$0xff]
    %v218 = vld [vmem:[#allocation2 + $0x1f8] sm:$0xff]
    %v219 = vld [vmem:[#allocation2 + $0x200] sm:$0xff]
    %v220 = vld [vmem:[#allocation2 + $0x208] sm:$0xff]
    %v221 = vld [vmem:[#allocation2 + $0x210] sm:$0xff]
    %v222 = vld [vmem:[#allocation2 + $0x218] sm:$0xff]
    %v223 = vld [vmem:[#allocation2 + $0x220] sm:$0xff]
    %v224 = vld [vmem:[#allocation2 + $0x228] sm:$0xff]
    %v225 = vld [vmem:[#allocation2 + $0x230] sm:$0xff]
    %v226 = vld [vmem:[#allocation2 + $0x238] sm:$0xff]
    %v227 = vld [vmem:[#allocation2 + $0x240] sm:$0xff]
    %v228 = vld [vmem:[#allocation2 + $0x248] sm:$0xff]
    %v229 = vld [vmem:[#allocation2 + $0x250] sm:$0xff]
    %v230 = vld [vmem:[#allocation2 + $0x258] sm:$0xff]
    %v231 = vld [vmem:[#allocation2 + $0x260] sm:$0xff]
    %v232 = vld [vmem:[#allocation2 + $0x268] sm:$0xff]
    %v233 = vld [vmem:[#allocation2 + $0x270] sm:$0xff]
    %v234 = vld [vmem:[#allocation2 + $0x278] sm:$0xff]
    %v235 = vld [vmem:[#allocation2 + $0x280] sm:$0xff]
    %v236 = vld [vmem:[#allocation2 + $0x288] sm:$0xff]
    %v237 = vld [vmem:[#allocation2 + $0x290] sm:$0xff]
    %v238 = vld [vmem:[#allocation2 + $0x298] sm:$0xff]
    %v239 = vld [vmem:[#allocation2 + $0x2a0] sm:$0xff]
    %v240 = vld [vmem:[#allocation2 + $0x2a8] sm:$0xff]
    %v241 = vld [vmem:[#allocation2 + $0x2b0] sm:$0xff]
    %v242 = vld [vmem:[#allocation2 + $0x2b8] sm:$0xff]
    %v243 = vld [vmem:[#allocation2 + $0x2c0] sm:$0xff]
    %v244 = vld [vmem:[#allocation2 + $0x2c8] sm:$0xff]
    %v245 = vld [vmem:[#allocation2 + $0x2d0] sm:$0xff]
    %v246 = vld [vmem:[#allocation2 + $0x2d8] sm:$0xff]
    %v247 = vld [vmem:[#allocation2 + $0x2e0] sm:$0xff]
    %v248 = vld [vmem:[#allocation2 + $0x2e8] sm:$0xff]
    %v249 = vld [vmem:[#allocation2 + $0x2f0] sm:$0xff]
    %v250 = vld [vmem:[#allocation2 + $0x2f8] sm:$0xff]
    %v251 = vld [vmem:[#allocation2 + $0x300] sm:$0xff]
    %v252 = vld [vmem:[#allocation2 + $0x308] sm:$0xff]
    %v253 = vld [vmem:[#allocation2 + $0x310] sm:$0xff]
    %v254 = vld [vmem:[#allocation2 + $0x318] sm:$0xff]
    %v255 = vld [vmem:[#allocation2 + $0x320] sm:$0xff]
    %v256 = vld [vmem:[#allocation2 + $0x328] sm:$0xff]
    %v257 = vld [vmem:[#allocation2 + $0x330] sm:$0xff]
    %v258 = vld [vmem:[#allocation2 + $0x338] sm:$0xff]
    %v259 = vld [vmem:[#allocation2 + $0x340] sm:$0xff]
    %v260 = vld [vmem:[#allocation2 + $0x348] sm:$0xff]
    %v261 = vld [vmem:[#allocation2 + $0x350] sm:$0xff]
    %v262 = vld [vmem:[#allocation2 + $0x358] sm:$0xff]
    %v263 = vld [vmem:[#allocation2 + $0x360] sm:$0xff]
    %v264 = vld [vmem:[#allocation2 + $0x368] sm:$0xff]
    %v265 = vld [vmem:[#allocation2 + $0x370] sm:$0xff]
    %v266 = vld [vmem:[#allocation2 + $0x378] sm:$0xff]
    %v267 = vld [vmem:[#allocation2 + $0x380] sm:$0xff]
    %v268 = vld [vmem:[#allocation2 + $0x388] sm:$0xff]
    %v269 = vld [vmem:[#allocation2 + $0x390] sm:$0xff]
    %v270 = vld [vmem:[#allocation2 + $0x398] sm:$0xff]
    %v271 = vld [vmem:[#allocation2 + $0x3a0] sm:$0xff]
    %v272 = vld [vmem:[#allocation2 + $0x3a8] sm:$0xff]
    %v273 = vld [vmem:[#allocation2 + $0x3b0] sm:$0xff]
    %v274 = vld [vmem:[#allocation2 + $0x3b8] sm:$0xff]
    %v275 = vld [vmem:[#allocation2 + $0x3c0] sm:$0xff]
    %v276 = vld [vmem:[#allocation2 + $0x3c8] sm:$0xff]
    %v277 = vld [vmem:[#allocation2 + $0x3d0] sm:$0xff]
    %v278 = vld [vmem:[#allocation2 + $0x3d8] sm:$0xff]
    %v279 = vld [vmem:[#allocation2 + $0x3e0] sm:$0xff]
    %v280 = vld [vmem:[#allocation2 + $0x3e8] sm:$0xff]
    %v281 = vld [vmem:[#allocation2 + $0x3f0] sm:$0xff]
    %v282 = vld [vmem:[#allocation2 + $0x3f8] sm:$0xff]
    %v283 = vld [vmem:[#allocation5] sm:$0x3]
    %v285 = vperm.slane %v283, 0
    %v286 = vperm.slane %v283, 1
    %291 = vst [vmem:[#allocation1] ss:$2 sm:$0xff] %v153
    %s292 = scalar_lea.vmem [#allocation1], 16
    %293 = vst [vmem:[%s292] ss:$2 sm:$0xff] %v154
    %v294 = vld.sshfl [vmem:[#allocation1] sm:$0xff pattern:$0x75316420]
    %v295 = vld.sshfl [vmem:[#allocation1 + $0x8] sm:$0xff pattern:$0x75316420]
    %v296 = vld.sshfl [vmem:[#allocation1 + $0x10] sm:$0xff pattern:$0x75316420]
    %v297 = vld.sshfl [vmem:[#allocation1 + $0x18] sm:$0xff pattern:$0x75316420]
    %302 = vmatpush.msra.mxu0 %v185
    %303 = vmatpush.msra.mxu0 %v183
    %304 = vmatpush.msra.mxu0 %v181
    %305 = vmatpush.msra.mxu0 %v179
    %306 = vmatpush.msra.mxu0 %v177
    %307 = vmatpush.msra.mxu0 %v175
    %308 = vmatpush.msra.mxu0 %v173
    %309 = vmatpush.msra.mxu0 %v171
    %310 = vmatpush.msra.mxu0 %v169
    %311 = vmatpush.msra.mxu0 %v167
    %312 = vmatpush.msra.mxu0 %v165
    %313 = vmatpush.msra.mxu0 %v163
    %314 = vmatpush.msra.mxu0 %v161
    %315 = vmatpush.msra.mxu0 %v159
    %316 = vmatpush.msra.mxu0 %v157
    %317 = vmatpush.msra.mxu0 %v155
    %318 = vmatmul.f32.gmra.mxu0 %v294
    %v319 = vpop.f32.mrf.mxu0
    %v320 = vadd.f32 %v285, %v319
    %321 = vdwg.mxu0
    %322 = vmatpush.msra.mxu0 %v217
    %323 = vmatpush.msra.mxu0 %v215
    %324 = vmatpush.msra.mxu0 %v213
    %325 = vmatpush.msra.mxu0 %v211
    %326 = vmatpush.msra.mxu0 %v209
    %327 = vmatpush.msra.mxu0 %v207
    %328 = vmatpush.msra.mxu0 %v205
    %329 = vmatpush.msra.mxu0 %v203
    %330 = vmatpush.msra.mxu0 %v201
    %331 = vmatpush.msra.mxu0 %v199
    %332 = vmatpush.msra.mxu0 %v197
    %333 = vmatpush.msra.mxu0 %v195
    %334 = vmatpush.msra.mxu0 %v193
    %335 = vmatpush.msra.mxu0 %v191
    %336 = vmatpush.msra.mxu0 %v189
    %337 = vmatpush.msra.mxu0 %v187
    %338 = vmatmul.f32.gmra.mxu0 %v295
    %v339 = vpop.f32.mrf.mxu0
    %v340 = vadd.f32 %v320, %v339
    %341 = vdwg.mxu0
    %342 = vmatpush.msra.mxu0 %v249
    %343 = vmatpush.msra.mxu0 %v247
    %344 = vmatpush.msra.mxu0 %v245
    %345 = vmatpush.msra.mxu0 %v243
    %346 = vmatpush.msra.mxu0 %v241
    %347 = vmatpush.msra.mxu0 %v239
    %348 = vmatpush.msra.mxu0 %v237
    %349 = vmatpush.msra.mxu0 %v235
    %350 = vmatpush.msra.mxu0 %v233
    %351 = vmatpush.msra.mxu0 %v231
    %352 = vmatpush.msra.mxu0 %v229
    %353 = vmatpush.msra.mxu0 %v227
    %354 = vmatpush.msra.mxu0 %v225
    %355 = vmatpush.msra.mxu0 %v223
    %356 = vmatpush.msra.mxu0 %v221
    %357 = vmatpush.msra.mxu0 %v219
    %358 = vmatmul.f32.gmra.mxu0 %v296
    %v359 = vpop.f32.mrf.mxu0
    %v360 = vadd.f32 %v340, %v359
    %361 = vdwg.mxu0
    %362 = vmatpush.msra.mxu0 %v281
    %363 = vmatpush.msra.mxu0 %v279
    %364 = vmatpush.msra.mxu0 %v277
    %365 = vmatpush.msra.mxu0 %v275
    %366 = vmatpush.msra.mxu0 %v273
    %367 = vmatpush.msra.mxu0 %v271
    %368 = vmatpush.msra.mxu0 %v269
    %369 = vmatpush.msra.mxu0 %v267
    %370 = vmatpush.msra.mxu0 %v265
    %371 = vmatpush.msra.mxu0 %v263
    %372 = vmatpush.msra.mxu0 %v261
    %373 = vmatpush.msra.mxu0 %v259
    %374 = vmatpush.msra.mxu0 %v257
    %375 = vmatpush.msra.mxu0 %v255
    %376 = vmatpush.msra.mxu0 %v253
    %377 = vmatpush.msra.mxu0 %v251
    %378 = vmatmul.f32.gmra.mxu0 %v297
    %v379 = vpop.f32.mrf.mxu0
    %v380 = vadd.f32 %v360, %v379
    %381 = vdwg.mxu0
    %382 = vmatpush.msra.mxu0 %v186
    %383 = vmatpush.msra.mxu0 %v184
    %384 = vmatpush.msra.mxu0 %v182
    %385 = vmatpush.msra.mxu0 %v180
    %386 = vmatpush.msra.mxu0 %v178
    %387 = vmatpush.msra.mxu0 %v176
    %388 = vmatpush.msra.mxu0 %v174
    %389 = vmatpush.msra.mxu0 %v172
    %390 = vmatpush.msra.mxu0 %v170
    %391 = vmatpush.msra.mxu0 %v168
    %392 = vmatpush.msra.mxu0 %v166
    %393 = vmatpush.msra.mxu0 %v164
    %394 = vmatpush.msra.mxu0 %v162
    %395 = vmatpush.msra.mxu0 %v160
    %396 = vmatpush.msra.mxu0 %v158
    %397 = vmatpush.msra.mxu0 %v156
    %398 = vmatmul.f32.gmra.mxu0 %v294
    %v399 = vpop.f32.mrf.mxu0
    %v400 = vadd.f32 %v286, %v399
    %401 = vdwg.mxu0
    %402 = vmatpush.msra.mxu0 %v218
    %403 = vmatpush.msra.mxu0 %v216
    %404 = vmatpush.msra.mxu0 %v214
    %405 = vmatpush.msra.mxu0 %v212
    %406 = vmatpush.msra.mxu0 %v210
    %407 = vmatpush.msra.mxu0 %v208
    %408 = vmatpush.msra.mxu0 %v206
    %409 = vmatpush.msra.mxu0 %v204
    %410 = vmatpush.msra.mxu0 %v202
    %411 = vmatpush.msra.mxu0 %v200
    %412 = vmatpush.msra.mxu0 %v198
    %413 = vmatpush.msra.mxu0 %v196
    %414 = vmatpush.msra.mxu0 %v194
    %415 = vmatpush.msra.mxu0 %v192
    %416 = vmatpush.msra.mxu0 %v190
    %417 = vmatpush.msra.mxu0 %v188
    %418 = vmatmul.f32.gmra.mxu0 %v295
    %v419 = vpop.f32.mrf.mxu0
    %v420 = vadd.f32 %v400, %v419
    %421 = vdwg.mxu0
    %422 = vmatpush.msra.mxu0 %v250
    %423 = vmatpush.msra.mxu0 %v248
    %424 = vmatpush.msra.mxu0 %v246
    %425 = vmatpush.msra.mxu0 %v244
    %426 = vmatpush.msra.mxu0 %v242
    %427 = vmatpush.msra.mxu0 %v240
    %428 = vmatpush.msra.mxu0 %v238
    %429 = vmatpush.msra.mxu0 %v236
    %430 = vmatpush.msra.mxu0 %v234
    %431 = vmatpush.msra.mxu0 %v232
    %432 = vmatpush.msra.mxu0 %v230
    %433 = vmatpush.msra.mxu0 %v228
    %434 = vmatpush.msra.mxu0 %v226
    %435 = vmatpush.msra.mxu0 %v224
    %436 = vmatpush.msra.mxu0 %v222
    %437 = vmatpush.msra.mxu0 %v220
    %438 = vmatmul.f32.gmra.mxu0 %v296
    %v439 = vpop.f32.mrf.mxu0
    %v440 = vadd.f32 %v420, %v439
    %441 = vdwg.mxu0
    %442 = vmatpush.msra.mxu0 %v282
    %443 = vmatpush.msra.mxu0 %v280
    %444 = vmatpush.msra.mxu0 %v278
    %445 = vmatpush.msra.mxu0 %v276
    %446 = vmatpush.msra.mxu0 %v274
    %447 = vmatpush.msra.mxu0 %v272
    %448 = vmatpush.msra.mxu0 %v270
    %449 = vmatpush.msra.mxu0 %v268
    %450 = vmatpush.msra.mxu0 %v266
    %451 = vmatpush.msra.mxu0 %v264
    %452 = vmatpush.msra.mxu0 %v262
    %453 = vmatpush.msra.mxu0 %v260
    %454 = vmatpush.msra.mxu0 %v258
    %455 = vmatpush.msra.mxu0 %v256
    %456 = vmatpush.msra.mxu0 %v254
    %457 = vmatpush.msra.mxu0 %v252
    %458 = vmatmul.f32.gmra.mxu0 %v297
    %v459 = vpop.f32.mrf.mxu0
    %v460 = vadd.f32 %v440, %v459
    %461 = vdwg.mxu0
    %v462 = vtanh.pop %v380
    %v463 = vtanh.pop %v460
    %v464 = vld [vmem:[#allocation7] sm:$0xff]
    %v465 = vld [vmem:[#allocation7 + $0x8] sm:$0xff]
    %v466 = vld [vmem:[#allocation7 + $0x10] sm:$0xff]
    %v467 = vld [vmem:[#allocation7 + $0x18] sm:$0xff]
    %v468 = vld [vmem:[#allocation7 + $0x20] sm:$0xff]
    %v469 = vld [vmem:[#allocation7 + $0x28] sm:$0xff]
    %v470 = vld [vmem:[#allocation7 + $0x30] sm:$0xff]
    %v471 = vld [vmem:[#allocation7 + $0x38] sm:$0xff]
    %v472 = vld [vmem:[#allocation7 + $0x40] sm:$0xff]
    %v473 = vld [vmem:[#allocation7 + $0x48] sm:$0xff]
    %v474 = vld [vmem:[#allocation7 + $0x50] sm:$0xff]
    %v475 = vld [vmem:[#allocation7 + $0x58] sm:$0xff]
    %v476 = vld [vmem:[#allocation7 + $0x60] sm:$0xff]
    %v477 = vld [vmem:[#allocation7 + $0x68] sm:$0xff]
    %v478 = vld [vmem:[#allocation7 + $0x70] sm:$0xff]
    %v479 = vld [vmem:[#allocation7 + $0x78] sm:$0xff]
    %v480 = vld [vmem:[#allocation7 + $0x80] sm:$0xff]
    %v481 = vld [vmem:[#allocation7 + $0x88] sm:$0xff]
    %v482 = vld [vmem:[#allocation7 + $0x90] sm:$0xff]
    %v483 = vld [vmem:[#allocation7 + $0x98] sm:$0xff]
    %v484 = vld [vmem:[#allocation7 + $0xa0] sm:$0xff]
    %v485 = vld [vmem:[#allocation7 + $0xa8] sm:$0xff]
    %v486 = vld [vmem:[#allocation7 + $0xb0] sm:$0xff]
    %v487 = vld [vmem:[#allocation7 + $0xb8] sm:$0xff]
    %v488 = vld [vmem:[#allocation7 + $0xc0] sm:$0xff]
    %v489 = vld [vmem:[#allocation7 + $0xc8] sm:$0xff]
    %v490 = vld [vmem:[#allocation7 + $0xd0] sm:$0xff]
    %v491 = vld [vmem:[#allocation7 + $0xd8] sm:$0xff]
    %v492 = vld [vmem:[#allocation7 + $0xe0] sm:$0xff]
    %v493 = vld [vmem:[#allocation7 + $0xe8] sm:$0xff]
    %v494 = vld [vmem:[#allocation7 + $0xf0] sm:$0xff]
    %v495 = vld [vmem:[#allocation7 + $0xf8] sm:$0xff]
    %v496 = vld [vmem:[#allocation7 + $0x100] sm:$0xff]
    %v497 = vld [vmem:[#allocation7 + $0x108] sm:$0xff]
    %v498 = vld [vmem:[#allocation7 + $0x110] sm:$0xff]
    %v499 = vld [vmem:[#allocation7 + $0x118] sm:$0xff]
    %v500 = vld [vmem:[#allocation7 + $0x120] sm:$0xff]
    %v501 = vld [vmem:[#allocation7 + $0x128] sm:$0xff]
    %v502 = vld [vmem:[#allocation7 + $0x130] sm:$0xff]
    %v503 = vld [vmem:[#allocation7 + $0x138] sm:$0xff]
    %v504 = vld [vmem:[#allocation7 + $0x140] sm:$0xff]
    %v505 = vld [vmem:[#allocation7 + $0x148] sm:$0xff]
    %v506 = vld [vmem:[#allocation7 + $0x150] sm:$0xff]
    %v507 = vld [vmem:[#allocation7 + $0x158] sm:$0xff]
    %v508 = vld [vmem:[#allocation7 + $0x160] sm:$0xff]
    %v509 = vld [vmem:[#allocation7 + $0x168] sm:$0xff]
    %v510 = vld [vmem:[#allocation7 + $0x170] sm:$0xff]
    %v511 = vld [vmem:[#allocation7 + $0x178] sm:$0xff]
    %v512 = vld [vmem:[#allocation7 + $0x180] sm:$0xff]
    %v513 = vld [vmem:[#allocation7 + $0x188] sm:$0xff]
    %v514 = vld [vmem:[#allocation7 + $0x190] sm:$0xff]
    %v515 = vld [vmem:[#allocation7 + $0x198] sm:$0xff]
    %v516 = vld [vmem:[#allocation7 + $0x1a0] sm:$0xff]
    %v517 = vld [vmem:[#allocation7 + $0x1a8] sm:$0xff]
    %v518 = vld [vmem:[#allocation7 + $0x1b0] sm:$0xff]
    %v519 = vld [vmem:[#allocation7 + $0x1b8] sm:$0xff]
    %v520 = vld [vmem:[#allocation7 + $0x1c0] sm:$0xff]
    %v521 = vld [vmem:[#allocation7 + $0x1c8] sm:$0xff]
    %v522 = vld [vmem:[#allocation7 + $0x1d0] sm:$0xff]
    %v523 = vld [vmem:[#allocation7 + $0x1d8] sm:$0xff]
    %v524 = vld [vmem:[#allocation7 + $0x1e0] sm:$0xff]
    %v525 = vld [vmem:[#allocation7 + $0x1e8] sm:$0xff]
    %v526 = vld [vmem:[#allocation7 + $0x1f0] sm:$0xff]
    %v527 = vld [vmem:[#allocation7 + $0x1f8] sm:$0xff]
    %v528 = vld [vmem:[#allocation8] sm:$0x3]
    %v530 = vperm.slane %v528, 0
    %v531 = vperm.slane %v528, 1
    %534 = vmatpush.msra.mxu0 %v494
    %535 = vmatpush.msra.mxu0 %v492
    %536 = vmatpush.msra.mxu0 %v490
    %537 = vmatpush.msra.mxu0 %v488
    %538 = vmatpush.msra.mxu0 %v486
    %539 = vmatpush.msra.mxu0 %v484
    %540 = vmatpush.msra.mxu0 %v482
    %541 = vmatpush.msra.mxu0 %v480
    %542 = vmatpush.msra.mxu0 %v478
    %543 = vmatpush.msra.mxu0 %v476
    %544 = vmatpush.msra.mxu0 %v474
    %545 = vmatpush.msra.mxu0 %v472
    %546 = vmatpush.msra.mxu0 %v470
    %547 = vmatpush.msra.mxu0 %v468
    %548 = vmatpush.msra.mxu0 %v466
    %549 = vmatpush.msra.mxu0 %v464
    %550 = vmatmul.f32.gmra.mxu0 %v462
    %v551 = vpop.f32.mrf.mxu0
    %v552 = vadd.f32 %v530, %v551
    %553 = vdwg.mxu0
    %554 = vmatpush.msra.mxu0 %v526
    %555 = vmatpush.msra.mxu0 %v524
    %556 = vmatpush.msra.mxu0 %v522
    %557 = vmatpush.msra.mxu0 %v520
    %558 = vmatpush.msra.mxu0 %v518
    %559 = vmatpush.msra.mxu0 %v516
    %560 = vmatpush.msra.mxu0 %v514
    %561 = vmatpush.msra.mxu0 %v512
    %562 = vmatpush.msra.mxu0 %v510
    %563 = vmatpush.msra.mxu0 %v508
    %564 = vmatpush.msra.mxu0 %v506
    %565 = vmatpush.msra.mxu0 %v504
    %566 = vmatpush.msra.mxu0 %v502
    %567 = vmatpush.msra.mxu0 %v500
    %568 = vmatpush.msra.mxu0 %v498
    %569 = vmatpush.msra.mxu0 %v496
    %570 = vmatmul.f32.gmra.mxu0 %v463
    %v571 = vpop.f32.mrf.mxu0
    %v572 = vadd.f32 %v552, %v571
    %573 = vdwg.mxu0
    %574 = vmatpush.msra.mxu0 %v495
    %575 = vmatpush.msra.mxu0 %v493
    %576 = vmatpush.msra.mxu0 %v491
    %577 = vmatpush.msra.mxu0 %v489
    %578 = vmatpush.msra.mxu0 %v487
    %579 = vmatpush.msra.mxu0 %v485
    %580 = vmatpush.msra.mxu0 %v483
    %581 = vmatpush.msra.mxu0 %v481
    %582 = vmatpush.msra.mxu0 %v479
    %583 = vmatpush.msra.mxu0 %v477
    %584 = vmatpush.msra.mxu0 %v475
    %585 = vmatpush.msra.mxu0 %v473
    %586 = vmatpush.msra.mxu0 %v471
    %587 = vmatpush.msra.mxu0 %v469
    %588 = vmatpush.msra.mxu0 %v467
    %589 = vmatpush.msra.mxu0 %v465
    %590 = vmatmul.f32.gmra.mxu0 %v462
    %v591 = vpop.f32.mrf.mxu0
    %v592 = vadd.f32 %v531, %v591
    %593 = vdwg.mxu0
    %594 = vmatpush.msra.mxu0 %v527
    %595 = vmatpush.msra.mxu0 %v525
    %596 = vmatpush.msra.mxu0 %v523
    %597 = vmatpush.msra.mxu0 %v521
    %598 = vmatpush.msra.mxu0 %v519
    %599 = vmatpush.msra.mxu0 %v517
    %600 = vmatpush.msra.mxu0 %v515
    %601 = vmatpush.msra.mxu0 %v513
    %602 = vmatpush.msra.mxu0 %v511
    %603 = vmatpush.msra.mxu0 %v509
    %604 = vmatpush.msra.mxu0 %v507
    %605 = vmatpush.msra.mxu0 %v505
    %606 = vmatpush.msra.mxu0 %v503
    %607 = vmatpush.msra.mxu0 %v501
    %608 = vmatpush.msra.mxu0 %v499
    %609 = vmatpush.msra.mxu0 %v497
    %610 = vmatmul.f32.gmra.mxu0 %v463
    %v611 = vpop.f32.mrf.mxu0
    %v612 = vadd.f32 %v592, %v611
    %613 = vdwg.mxu0
    %v614 = vtanh.pop %v572
    %v615 = vtanh.pop %v612
    %v616 = vld [vmem:[#allocation10] sm:$0xff]
    %v617 = vld [vmem:[#allocation10 + $0x8] sm:$0xff]
    %v618 = vld [vmem:[#allocation10 + $0x10] sm:$0xff]
    %v619 = vld [vmem:[#allocation10 + $0x18] sm:$0xff]
    %v620 = vld [vmem:[#allocation10 + $0x20] sm:$0xff]
    %v621 = vld [vmem:[#allocation10 + $0x28] sm:$0xff]
    %v622 = vld [vmem:[#allocation10 + $0x30] sm:$0xff]
    %v623 = vld [vmem:[#allocation10 + $0x38] sm:$0xff]
    %v624 = vld [vmem:[#allocation10 + $0x40] sm:$0xff]
    %v625 = vld [vmem:[#allocation10 + $0x48] sm:$0xff]
    %v626 = vld [vmem:[#allocation10 + $0x50] sm:$0xff]
    %v627 = vld [vmem:[#allocation10 + $0x58] sm:$0xff]
    %v628 = vld [vmem:[#allocation10 + $0x60] sm:$0xff]
    %v629 = vld [vmem:[#allocation10 + $0x68] sm:$0xff]
    %v630 = vld [vmem:[#allocation10 + $0x70] sm:$0xff]
    %v631 = vld [vmem:[#allocation10 + $0x78] sm:$0xff]
    %v632 = vld [vmem:[#allocation10 + $0x80] sm:$0xff]
    %v633 = vld [vmem:[#allocation10 + $0x88] sm:$0xff]
    %v634 = vld [vmem:[#allocation10 + $0x90] sm:$0xff]
    %v635 = vld [vmem:[#allocation10 + $0x98] sm:$0xff]
    %v636 = vld [vmem:[#allocation10 + $0xa0] sm:$0xff]
    %v637 = vld [vmem:[#allocation10 + $0xa8] sm:$0xff]
    %v638 = vld [vmem:[#allocation10 + $0xb0] sm:$0xff]
    %v639 = vld [vmem:[#allocation10 + $0xb8] sm:$0xff]
    %v640 = vld [vmem:[#allocation10 + $0xc0] sm:$0xff]
    %v641 = vld [vmem:[#allocation10 + $0xc8] sm:$0xff]
    %v642 = vld [vmem:[#allocation10 + $0xd0] sm:$0xff]
    %v643 = vld [vmem:[#allocation10 + $0xd8] sm:$0xff]
    %v644 = vld [vmem:[#allocation10 + $0xe0] sm:$0xff]
    %v645 = vld [vmem:[#allocation10 + $0xe8] sm:$0xff]
    %v646 = vld [vmem:[#allocation10 + $0xf0] sm:$0xff]
    %v647 = vld [vmem:[#allocation10 + $0xf8] sm:$0xff]
    %v648 = vld [vmem:[%s6] sm:$0xff]
    %v649 = vld [vmem:[%s6 + $0x8] sm:$0xff]
    %v650 = vld [vmem:[%s6 + $0x10] sm:$0xff]
    %v651 = vld [vmem:[%s6 + $0x18] sm:$0xff]
    %v652 = vld [vmem:[%s6 + $0x20] sm:$0xff]
    %v653 = vld [vmem:[%s6 + $0x28] sm:$0xff]
    %v654 = vld [vmem:[%s6 + $0x30] sm:$0xff]
    %v655 = vld [vmem:[%s6 + $0x38] sm:$0xff]
    %v656 = vld [vmem:[%s6 + $0x40] sm:$0xff]
    %v657 = vld [vmem:[%s6 + $0x48] sm:$0xff]
    %v658 = vld [vmem:[%s6 + $0x50] sm:$0xff]
    %v659 = vld [vmem:[%s6 + $0x58] sm:$0xff]
    %v660 = vld [vmem:[%s6 + $0x60] sm:$0xff]
    %v661 = vld [vmem:[%s6 + $0x68] sm:$0xff]
    %v662 = vld [vmem:[%s6 + $0x70] sm:$0xff]
    %v663 = vld [vmem:[%s6 + $0x78] sm:$0xff]
    %v664 = vld [vmem:[%s6 + $0x80] sm:$0xff]
    %v665 = vld [vmem:[%s6 + $0x88] sm:$0xff]
    %v666 = vld [vmem:[%s6 + $0x90] sm:$0xff]
    %v667 = vld [vmem:[%s6 + $0x98] sm:$0xff]
    %v668 = vld [vmem:[%s6 + $0xa0] sm:$0xff]
    %v669 = vld [vmem:[%s6 + $0xa8] sm:$0xff]
    %v670 = vld [vmem:[%s6 + $0xb0] sm:$0xff]
    %v671 = vld [vmem:[%s6 + $0xb8] sm:$0xff]
    %v672 = vld [vmem:[%s6 + $0xc0] sm:$0xff]
    %v673 = vld [vmem:[%s6 + $0xc8] sm:$0xff]
    %v674 = vld [vmem:[%s6 + $0xd0] sm:$0xff]
    %v675 = vld [vmem:[%s6 + $0xd8] sm:$0xff]
    %v676 = vld [vmem:[%s6 + $0xe0] sm:$0xff]
    %v677 = vld [vmem:[%s6 + $0xe8] sm:$0xff]
    %v678 = vld [vmem:[%s6 + $0xf0] sm:$0xff]
    %v679 = vld [vmem:[%s6 + $0xf8] sm:$0xff]
    %v682 = vrot.slane %v614, 2
    %v683 = vrot.slane %v615, 2
    %686 = vmatpush.msra.mxu0 %v663
    %687 = vmatpush.msra.mxu0 %v662
    %688 = vmatpush.msra.mxu0 %v661
    %689 = vmatpush.msra.mxu0 %v660
    %690 = vmatpush.msra.mxu0 %v659
    %691 = vmatpush.msra.mxu0 %v658
    %692 = vmatpush.msra.mxu0 %v657
    %693 = vmatpush.msra.mxu0 %v656
    %694 = vmatpush.msra.mxu0 %v655
    %695 = vmatpush.msra.mxu0 %v654
    %696 = vmatpush.msra.mxu0 %v653
    %697 = vmatpush.msra.mxu0 %v652
    %698 = vmatpush.msra.mxu0 %v651
    %699 = vmatpush.msra.mxu0 %v650
    %700 = vmatpush.msra.mxu0 %v649
    %701 = vmatpush.msra.mxu0 %v648
    %702 = vmatmul.f32.gmra.mxu0 %v682
    %v703 = vpop.f32.mrf.mxu0
    %v704 = vadd.f32 0.0, %v703
    %705 = vdwg.mxu0
    %706 = vmatpush.msra.mxu0 %v679
    %707 = vmatpush.msra.mxu0 %v678
    %708 = vmatpush.msra.mxu0 %v677
    %709 = vmatpush.msra.mxu0 %v676
    %710 = vmatpush.msra.mxu0 %v675
    %711 = vmatpush.msra.mxu0 %v674
    %712 = vmatpush.msra.mxu0 %v673
    %713 = vmatpush.msra.mxu0 %v672
    %714 = vmatpush.msra.mxu0 %v671
    %715 = vmatpush.msra.mxu0 %v670
    %716 = vmatpush.msra.mxu0 %v669
    %717 = vmatpush.msra.mxu0 %v668
    %718 = vmatpush.msra.mxu0 %v667
    %719 = vmatpush.msra.mxu0 %v666
    %720 = vmatpush.msra.mxu0 %v665
    %721 = vmatpush.msra.mxu0 %v664
    %722 = vmatmul.f32.gmra.mxu0 %v683
    %v723 = vpop.f32.mrf.mxu0
    %v724 = vadd.f32 %v704, %v723
    %725 = vdwg.mxu0
    %726 = vmatpush.msra.mxu0 %v631
    %727 = vmatpush.msra.mxu0 %v630
    %728 = vmatpush.msra.mxu0 %v629
    %729 = vmatpush.msra.mxu0 %v628
    %730 = vmatpush.msra.mxu0 %v627
    %731 = vmatpush.msra.mxu0 %v626
    %732 = vmatpush.msra.mxu0 %v625
    %733 = vmatpush.msra.mxu0 %v624
    %734 = vmatpush.msra.mxu0 %v623
    %735 = vmatpush.msra.mxu0 %v622
    %736 = vmatpush.msra.mxu0 %v621
    %737 = vmatpush.msra.mxu0 %v620
    %738 = vmatpush.msra.mxu0 %v619
    %739 = vmatpush.msra.mxu0 %v618
    %740 = vmatpush.msra.mxu0 %v617
    %741 = vmatpush.msra.mxu0 %v616
    %742 = vmatmul.f32.gmra.mxu0 %v614
    %v743 = vpop.f32.mrf.mxu0
    %v744 = vadd.f32 %v724, %v743
    %745 = vdwg.mxu0
    %746 = vmatpush.msra.mxu0 %v647
    %747 = vmatpush.msra.mxu0 %v646
    %748 = vmatpush.msra.mxu0 %v645
    %749 = vmatpush.msra.mxu0 %v644
    %750 = vmatpush.msra.mxu0 %v643
    %751 = vmatpush.msra.mxu0 %v642
    %752 = vmatpush.msra.mxu0 %v641
    %753 = vmatpush.msra.mxu0 %v640
    %754 = vmatpush.msra.mxu0 %v639
    %755 = vmatpush.msra.mxu0 %v638
    %756 = vmatpush.msra.mxu0 %v637
    %757 = vmatpush.msra.mxu0 %v636
    %758 = vmatpush.msra.mxu0 %v635
    %759 = vmatpush.msra.mxu0 %v634
    %760 = vmatpush.msra.mxu0 %v633
    %761 = vmatpush.msra.mxu0 %v632
    %762 = vmatmul.f32.gmra.mxu0 %v615
    %v763 = vpop.f32.mrf.mxu0
    %v764 = vadd.f32 %v744, %v763
    %765 = vdwg.mxu0
    %v766 = vld [vmem:[#allocation11] sm:$0x1]
    %v768 = vperm.slane %v766, 0
    %v770 = vadd.f32 %v764, %v768
    %v771 = vld [vmem:[#allocation13] sm:$0xff]
    %v772 = vld [vmem:[#allocation13 + $0x8] sm:$0xff]
    %v773 = vld [vmem:[#allocation13 + $0x10] sm:$0xff]
    %v774 = vld [vmem:[#allocation13 + $0x18] sm:$0xff]
    %v775 = vld [vmem:[#allocation13 + $0x20] sm:$0xff]
    %v776 = vld [vmem:[#allocation13 + $0x28] sm:$0xff]
    %v777 = vld [vmem:[#allocation13 + $0x30] sm:$0xff]
    %v778 = vld [vmem:[#allocation13 + $0x38] sm:$0xff]
    %v779 = vld [vmem:[#allocation13 + $0x40] sm:$0xff]
    %v780 = vld [vmem:[#allocation13 + $0x48] sm:$0xff]
    %v781 = vld [vmem:[#allocation13 + $0x50] sm:$0xff]
    %v782 = vld [vmem:[#allocation13 + $0x58] sm:$0xff]
    %v783 = vld [vmem:[#allocation13 + $0x60] sm:$0xff]
    %v784 = vld [vmem:[#allocation13 + $0x68] sm:$0xff]
    %v785 = vld [vmem:[#allocation13 + $0x70] sm:$0xff]
    %v786 = vld [vmem:[#allocation13 + $0x78] sm:$0xff]
    %v787 = vld [vmem:[#allocation14] sm:$0x1]
    %v789 = vperm.slane %v787, 0
    %791 = vmatpush.msra.mxu0 %v786
    %792 = vmatpush.msra.mxu0 %v785
    %793 = vmatpush.msra.mxu0 %v784
    %794 = vmatpush.msra.mxu0 %v783
    %795 = vmatpush.msra.mxu0 %v782
    %796 = vmatpush.msra.mxu0 %v781
    %797 = vmatpush.msra.mxu0 %v780
    %798 = vmatpush.msra.mxu0 %v779
    %799 = vmatpush.msra.mxu0 %v778
    %800 = vmatpush.msra.mxu0 %v777
    %801 = vmatpush.msra.mxu0 %v776
    %802 = vmatpush.msra.mxu0 %v775
    %803 = vmatpush.msra.mxu0 %v774
    %804 = vmatpush.msra.mxu0 %v773
    %805 = vmatpush.msra.mxu0 %v772
    %806 = vmatpush.msra.mxu0 %v771
    %807 = vmatmul.f32.gmra.mxu0 %v770
    %v808 = vpop.f32.mrf.mxu0
    %v809 = vadd.f32 %v789, %v808
    %810 = vdwg.mxu0
    %vm811 = vcmask 17408
    %812 = vst.msk [vmem:[#allocation16] sm:$0x3] %vm811, %v809
    // Predicated region
    $region74: #{_lambda_.3} parent=1 // pred_check
      _
    $region75: #{_lambda_.3} parent=1 // pred_check_branch
      %814 = sbr.rel (0) target = $region77
    $region76: #{_lambda_.3} parent=1 // pred_region
      %816 = vsyncadd [#allocation4], 0
      %s818 = sshll.u32 [#allocation16], 4
      %s819 = int_to_ptr.vmem [resolvable:$true] %s818
      %s820 = sshll.u32 %s10, 4
      %s821 = int_to_ptr.hbm [resolvable:$true] %s820
      %823 = dma.vmem_to_hbm [thread:$0]  %s819, 32, %s821, [#allocation4]
    $region77: #{_lambda_.3} parent=1 // pred_fallthru
      _
    // Predicated region
    $region78: #{_lambda_.3} parent=1 // pred_check
      _
    $region79: #{_lambda_.3} parent=1 // pred_check_branch
      %825 = sbr.rel (0) target = $region81
    $region80: #{_lambda_.3} parent=1 // pred_region
      %827 = dma.done [#allocation4], 32
    $region81: #{_lambda_.3} parent=1 // pred_fallthru
      _
    %828 = vsyncpa [#allocation3], 1
    %829 = vsyncpa [#allocation6], 1
    %830 = vsyncpa [#allocation9], 1
    %831 = vsyncpa [#allocation12], 1
    %832 = vsyncpa [#allocation15], 1
    %833 = vsyncpa [#allocation4], 1

// kernel: _lambda_.2
$region0: #{_lambda_.2}
  #allocation0 [shape = 'u32[]', space=smem, size = 0x4, offset = 0x4, fixed_abs, tag = 'smem constant byte address 0x4 - core index']
  #allocation1 [shape = 'u32[72,128]{1,0:T(1,128)}', space=vmem, size = 0x9000, scoped, tag = 'internal scratch']
  #allocation2 [shape = 'f32[24,128]{1,0:T(8,128)}', space=vmem, size = 0x3000, scoped, tag = 'scratch operand']
  %s0 = inlined_call_operand.vmem [shape: f32[4,18,128], index: 0, kind: input, shape index: {}]
  %s1 = inlined_call_operand.hbm [shape: f32[9,3,128], index: 1, kind: input, shape index: {}]
  %s2 = inlined_call_operand.hbm [shape: f32[9,1,128], index: 2, kind: input, shape index: {}]
  %s3 = inlined_call_operand.hbm [shape: f32[9,1,128], index: 3, kind: input, shape index: {}]
  %s4 = inlined_call_operand.hbm [shape: f32[9,1,128], index: 4, kind: input, shape index: {}]
  %s5 = inlined_call_operand.hbm [shape: f32[9,128,128], index: 5, kind: input, shape index: {}]
  %s6 = inlined_call_operand.vmem [shape: f32[9,1,128], index: 6, kind: input, shape index: {}]
  %s7 = inlined_call_operand.vmem [shape: f32[9,1,128], index: 7, kind: input, shape index: {}]
  %s8 = inlined_call_operand.vmem [shape: f32[9,1,128], index: 8, kind: input, shape index: {}]
  %s9 = inlined_call_operand.vmem [shape: f32[4,4,128], index: 9, kind: output, shape index: {}]
  %s10 = sld [smem:[#allocation0]]
  $region89: #{_lambda_.2} parent=0
    _
  %s12 = ssub.s32 1, %s10
  %s13 = scalar_select 0, %s12, %s10
  $region1: #{_lambda_.2} parent=0
    #allocation3 [shape = 'u8[18432]{0}', space=vmem, size = 0x4800, scoped, tag = 'input window, operand 1, single buffered']
    #allocation4 [shape = 's32[2]{0}', space=sflag, size = 0x8, scoped, tag = 'scoped memory for _lambda_.2']
    #allocation5 [shape = 'u8[4608]{0}', space=vmem, size = 0x1400, scoped, tag = 'input window, operand 2, single buffered']
    #allocation6 [shape = 's32[1]{0}', space=sflag, size = 0x4, scoped, tag = 'scoped memory for _lambda_.2']
    #allocation7 [shape = 'u8[4608]{0}', space=vmem, size = 0x1400, scoped, tag = 'input window, operand 3, single buffered']
    #allocation8 [shape = 'u8[4608]{0}', space=vmem, size = 0x1400, scoped, tag = 'input window, operand 4, single buffered']
    #allocation9 [shape = 's32[1]{0}', space=sflag, size = 0x4, scoped, tag = 'scoped memory for _lambda_.2']
    #allocation10 [shape = 'u8[589824]{0}', space=vmem, size = 0x90000, scoped, tag = 'input window, operand 5, single buffered']
    %14 = vsyncpa [#allocation4], 0
    %15 = vsyncpa [#allocation6], 0
    %16 = vsyncpa [#allocation9], 0
    loop: start=0, step=1, limit=6
    $region2: #{_lambda_.2} parent=1 // loop_pre_header
      _
    $region3: #{_lambda_.2} parent=1 // loop_header
      %s18 = sphi 0, %s22
      %p19 = scmp.ge.s32.totalorder %s18, 6
      %s28 = sphi 0, %s30
      %s31 = sphi 0, %s28
      %s32 = sphi 0, %s31
      %s48 = sphi 0, %s32
      %s52 = sphi 0, %s52
      %s54 = sphi 0, %s52
      %s55 = sphi 0, %s54
      %s69 = sphi 0, %s55
      %s73 = sphi 0, %s73
      %s75 = sphi 0, %s73
      %s76 = sphi 0, %s75
      %s90 = sphi 0, %s76
      %s94 = sphi 0, %s94
      %s96 = sphi 0, %s94
      %s97 = sphi 0, %s96
      %s111 = sphi 0, %s97
      %s115 = sphi 0, %s115
      %s117 = sphi 0, %s115
      %s118 = sphi 0, %s117
      %s132 = sphi 0, %s118
      %s136 = sphi 0, %s136
      %s138 = sphi 0, %s136
      %s139 = sphi 0, %s138
      %s153 = sphi 0, %s139
      %s157 = sphi 0, %s157
      %s159 = sphi 0, %s157
      %s160 = sphi 0, %s159
      %s174 = sphi 0, %s160
      %s178 = sphi 0, %s178
      %s180 = sphi 0, %s178
      %s181 = sphi 0, %s180
      %s195 = sphi 0, %s181
      %s199 = sphi 0, %s199
      %s201 = sphi 0, %s199
      %s202 = sphi 0, %s201
      %s216 = sphi 0, %s202
      %s222 = sphi 0, %s224
      %s225 = sphi 0, %s222
      %s226 = sphi 0, %s225
      %s242 = sphi 0, %s226
    $region4: #{_lambda_.2} parent=1 // loop_header_branch
      %21 = sbr.rel (%p19) target = $region8
    $region5: #{_lambda_.2} parent=1 // loop_body
      %s23 = ssub.s32 %s18, 1
      %s24 = ssub.s32 %s18, 2
      %s25 = sadd.s32 %s18, 1
      %s26 = ssub.s32 %s18, %s25
      %p27 = scmp.eq.s32.totalorder %s26, 0
      %s29 = sadd.s32 %s28, 1
      %s30 = scalar_select %p27, %s28, %s29
      %p33 = pneg %p27
      %p34 = scmp.eq.s32.totalorder %s18, 3
      %p35 = por %p33, %p34
      %p36 = scmp.ne.s32.totalorder %s28, %s31
      %p37 = scmp.eq.s32.totalorder %s18, 0
      %p38 = por %p36, %p37
      %p39 = scmp.ne.s32.totalorder %s28, %s31
      %p40 = scmp.eq.s32.totalorder %s23, 3
      %p41 = por %p39, %p40
      %p42 = scmp.ne.s32.totalorder %s31, %s32
      %p43 = scmp.eq.s32.totalorder %s23, 0
      %p44 = por %p42, %p43
      %p45 = scmp.ne.s32.totalorder %s31, %s32
      %p46 = scmp.eq.s32.totalorder %s24, 3
      %p47 = por %p45, %p46
      %p49 = scmp.ne.s32.totalorder %s32, %s48
      %p50 = scmp.eq.s32.totalorder %s24, 0
      %p51 = por %p49, %p50
      %s53 = sadd.s32 %s52, 1
      %p56 = scmp.eq.s32.totalorder %s18, 3
      %p57 = scmp.ne.s32.totalorder %s52, %s54
      %p58 = scmp.eq.s32.totalorder %s18, 0
      %p59 = por %p57, %p58
      %p60 = scmp.ne.s32.totalorder %s52, %s54
      %p61 = scmp.eq.s32.totalorder %s23, 3
      %p62 = por %p60, %p61
      %p63 = scmp.ne.s32.totalorder %s54, %s55
      %p64 = scmp.eq.s32.totalorder %s23, 0
      %p65 = por %p63, %p64
      %p66 = scmp.ne.s32.totalorder %s54, %s55
      %p67 = scmp.eq.s32.totalorder %s24, 3
      %p68 = por %p66, %p67
      %p70 = scmp.ne.s32.totalorder %s55, %s69
      %p71 = scmp.eq.s32.totalorder %s24, 0
      %p72 = por %p70, %p71
      %s74 = sadd.s32 %s73, 1
      %p77 = scmp.eq.s32.totalorder %s18, 3
      %p78 = scmp.ne.s32.totalorder %s73, %s75
      %p79 = scmp.eq.s32.totalorder %s18, 0
      %p80 = por %p78, %p79
      %p81 = scmp.ne.s32.totalorder %s73, %s75
      %p82 = scmp.eq.s32.totalorder %s23, 3
      %p83 = por %p81, %p82
      %p84 = scmp.ne.s32.totalorder %s75, %s76
      %p85 = scmp.eq.s32.totalorder %s23, 0
      %p86 = por %p84, %p85
      %p87 = scmp.ne.s32.totalorder %s75, %s76
      %p88 = scmp.eq.s32.totalorder %s24, 3
      %p89 = por %p87, %p88
      %p91 = scmp.ne.s32.totalorder %s76, %s90
      %p92 = scmp.eq.s32.totalorder %s24, 0
      %p93 = por %p91, %p92
      %s95 = sadd.s32 %s94, 1
      %p98 = scmp.eq.s32.totalorder %s18, 3
      %p99 = scmp.ne.s32.totalorder %s94, %s96
      %p100 = scmp.eq.s32.totalorder %s18, 0
      %p101 = por %p99, %p100
      %p102 = scmp.ne.s32.totalorder %s94, %s96
      %p103 = scmp.eq.s32.totalorder %s23, 3
      %p104 = por %p102, %p103
      %p105 = scmp.ne.s32.totalorder %s96, %s97
      %p106 = scmp.eq.s32.totalorder %s23, 0
      %p107 = por %p105, %p106
      %p108 = scmp.ne.s32.totalorder %s96, %s97
      %p109 = scmp.eq.s32.totalorder %s24, 3
      %p110 = por %p108, %p109
      %p112 = scmp.ne.s32.totalorder %s97, %s111
      %p113 = scmp.eq.s32.totalorder %s24, 0
      %p114 = por %p112, %p113
      %s116 = sadd.s32 %s115, 1
      %p119 = scmp.eq.s32.totalorder %s18, 3
      %p120 = scmp.ne.s32.totalorder %s115, %s117
      %p121 = scmp.eq.s32.totalorder %s18, 0
      %p122 = por %p120, %p121
      %p123 = scmp.ne.s32.totalorder %s115, %s117
      %p124 = scmp.eq.s32.totalorder %s23, 3
      %p125 = por %p123, %p124
      %p126 = scmp.ne.s32.totalorder %s117, %s118
      %p127 = scmp.eq.s32.totalorder %s23, 0
      %p128 = por %p126, %p127
      %p129 = scmp.ne.s32.totalorder %s117, %s118
      %p130 = scmp.eq.s32.totalorder %s24, 3
      %p131 = por %p129, %p130
      %p133 = scmp.ne.s32.totalorder %s118, %s132
      %p134 = scmp.eq.s32.totalorder %s24, 0
      %p135 = por %p133, %p134
      %s137 = sadd.s32 %s136, 1
      %p140 = scmp.eq.s32.totalorder %s18, 3
      %p141 = scmp.ne.s32.totalorder %s136, %s138
      %p142 = scmp.eq.s32.totalorder %s18, 0
      %p143 = por %p141, %p142
      %p144 = scmp.ne.s32.totalorder %s136, %s138
      %p145 = scmp.eq.s32.totalorder %s23, 3
      %p146 = por %p144, %p145
      %p147 = scmp.ne.s32.totalorder %s138, %s139
      %p148 = scmp.eq.s32.totalorder %s23, 0
      %p149 = por %p147, %p148
      %p150 = scmp.ne.s32.totalorder %s138, %s139
      %p151 = scmp.eq.s32.totalorder %s24, 3
      %p152 = por %p150, %p151
      %p154 = scmp.ne.s32.totalorder %s139, %s153
      %p155 = scmp.eq.s32.totalorder %s24, 0
      %p156 = por %p154, %p155
      %s158 = sadd.s32 %s157, 1
      %p161 = scmp.eq.s32.totalorder %s18, 3
      %p162 = scmp.ne.s32.totalorder %s157, %s159
      %p163 = scmp.eq.s32.totalorder %s18, 0
      %p164 = por %p162, %p163
      %p165 = scmp.ne.s32.totalorder %s157, %s159
      %p166 = scmp.eq.s32.totalorder %s23, 3
      %p167 = por %p165, %p166
      %p168 = scmp.ne.s32.totalorder %s159, %s160
      %p169 = scmp.eq.s32.totalorder %s23, 0
      %p170 = por %p168, %p169
      %p171 = scmp.ne.s32.totalorder %s159, %s160
      %p172 = scmp.eq.s32.totalorder %s24, 3
      %p173 = por %p171, %p172
      %p175 = scmp.ne.s32.totalorder %s160, %s174
      %p176 = scmp.eq.s32.totalorder %s24, 0
      %p177 = por %p175, %p176
      %s179 = sadd.s32 %s178, 1
      %p182 = scmp.eq.s32.totalorder %s18, 3
      %p183 = scmp.ne.s32.totalorder %s178, %s180
      %p184 = scmp.eq.s32.totalorder %s18, 0
      %p185 = por %p183, %p184
      %p186 = scmp.ne.s32.totalorder %s178, %s180
      %p187 = scmp.eq.s32.totalorder %s23, 3
      %p188 = por %p186, %p187
      %p189 = scmp.ne.s32.totalorder %s180, %s181
      %p190 = scmp.eq.s32.totalorder %s23, 0
      %p191 = por %p189, %p190
      %p192 = scmp.ne.s32.totalorder %s180, %s181
      %p193 = scmp.eq.s32.totalorder %s24, 3
      %p194 = por %p192, %p193
      %p196 = scmp.ne.s32.totalorder %s181, %s195
      %p197 = scmp.eq.s32.totalorder %s24, 0
      %p198 = por %p196, %p197
      %s200 = sadd.s32 %s199, 1
      %p203 = scmp.eq.s32.totalorder %s18, 3
      %p204 = scmp.ne.s32.totalorder %s199, %s201
      %p205 = scmp.eq.s32.totalorder %s18, 0
      %p206 = por %p204, %p205
      %p207 = scmp.ne.s32.totalorder %s199, %s201
      %p208 = scmp.eq.s32.totalorder %s23, 3
      %p209 = por %p207, %p208
      %p210 = scmp.ne.s32.totalorder %s201, %s202
      %p211 = scmp.eq.s32.totalorder %s23, 0
      %p212 = por %p210, %p211
      %p213 = scmp.ne.s32.totalorder %s201, %s202
      %p214 = scmp.eq.s32.totalorder %s24, 3
      %p215 = por %p213, %p214
      %p217 = scmp.ne.s32.totalorder %s202, %s216
      %p218 = scmp.eq.s32.totalorder %s24, 0
      %p219 = por %p217, %p218
      %s220 = ssub.s32 %s18, %s25
      %p221 = scmp.eq.s32.totalorder %s220, 0
      %s223 = sadd.s32 %s222, 1
      %s224 = scalar_select %p221, %s222, %s223
      %p227 = pneg %p221
      %p228 = scmp.eq.s32.totalorder %s18, 3
      %p229 = por %p227, %p228
      %p230 = scmp.ne.s32.totalorder %s222, %s225
      %p231 = scmp.eq.s32.totalorder %s18, 0
      %p232 = por %p230, %p231
      %p233 = scmp.ne.s32.totalorder %s222, %s225
      %p234 = scmp.eq.s32.totalorder %s23, 3
      %p235 = por %p233, %p234
      %p236 = scmp.ne.s32.totalorder %s225, %s226
      %p237 = scmp.eq.s32.totalorder %s23, 0
      %p238 = por %p236, %p237
      %p239 = scmp.ne.s32.totalorder %s225, %s226
      %p240 = scmp.eq.s32.totalorder %s24, 3
      %p241 = por %p239, %p240
      %p243 = scmp.ne.s32.totalorder %s226, %s242
      %p244 = scmp.eq.s32.totalorder %s24, 0
      %p245 = por %p243, %p244
      %p246 = scmp.le.s32.totalorder 1, %s18
      %p247 = scmp.lt.s32.totalorder %s18, 5
      %p248 = pnand %p246, %p247
      %p249 = pneg %p248
      // Predicated region
      $region9: #{_lambda_.2} parent=5 // pred_check
        _
      $region10: #{_lambda_.2} parent=5 // pred_check_branch
        %251 = sbr.rel (%p248) target = $region12
      $region11: #{_lambda_.2} parent=5 // pred_region
        %s252 = ssub.s32 %s18, 1
        // Predicated region
        $region13: #{_lambda_.2} parent=11 // pred_check
          %p253 = pneg %p65
        $region14: #{_lambda_.2} parent=11 // pred_check_branch
          %255 = sbr.rel (%p253) target = $region16
        $region15: #{_lambda_.2} parent=11 // pred_region
          %257 = vsyncadd [#allocation4], 0
          %s258 = sshll.u32 %s1, 4
          %s259 = int_to_ptr.hbm [resolvable:$true] %s258
          %s260 = sshll.u32 [#allocation3], 4
          %s261 = int_to_ptr.vmem [resolvable:$true] %s260
          %266 = dma.hbm_to_vmem [thread:$0]  %s259, 576, %s261, [#allocation4], 64, 64, 4
        $region16: #{_lambda_.2} parent=11 // pred_fallthru
          _
        // Predicated region
        $region17: #{_lambda_.2} parent=11 // pred_check
          %p267 = pneg %p86
        $region18: #{_lambda_.2} parent=11 // pred_check_branch
          %269 = sbr.rel (%p267) target = $region20
        $region19: #{_lambda_.2} parent=11 // pred_region
          %271 = vsyncadd [#allocation6], 0
          %s272 = sshll.u32 %s2, 4
          %s273 = int_to_ptr.hbm [resolvable:$true] %s272
          %s274 = sshll.u32 [#allocation5], 4
          %s275 = int_to_ptr.vmem [resolvable:$true] %s274
          %280 = dma.hbm_to_vmem [thread:$0]  %s273, 144, %s275, [#allocation6], 16, 16, 1
        $region20: #{_lambda_.2} parent=11 // pred_fallthru
          _
        // Predicated region
        $region21: #{_lambda_.2} parent=11 // pred_check
          %p281 = pneg %p107
        $region22: #{_lambda_.2} parent=11 // pred_check_branch
          %283 = sbr.rel (%p281) target = $region24
        $region23: #{_lambda_.2} parent=11 // pred_region
          %285 = vsyncadd [#allocation6], 0
          %s286 = sshll.u32 %s3, 4
          %s287 = int_to_ptr.hbm [resolvable:$true] %s286
          %s288 = sshll.u32 [#allocation7], 4
          %s289 = int_to_ptr.vmem [resolvable:$true] %s288
          %294 = dma.hbm_to_vmem [thread:$0]  %s287, 144, %s289, [#allocation6], 16, 16, 1
        $region24: #{_lambda_.2} parent=11 // pred_fallthru
          _
        // Predicated region
        $region25: #{_lambda_.2} parent=11 // pred_check
          %p295 = pneg %p128
        $region26: #{_lambda_.2} parent=11 // pred_check_branch
          %297 = sbr.rel (%p295) target = $region28
        $region27: #{_lambda_.2} parent=11 // pred_region
          %299 = vsyncadd [#allocation9], 0
          %s300 = sshll.u32 %s4, 4
          %s301 = int_to_ptr.hbm [resolvable:$true] %s300
          %s302 = sshll.u32 [#allocation8], 4
          %s303 = int_to_ptr.vmem [resolvable:$true] %s302
          %308 = dma.hbm_to_vmem [thread:$0]  %s301, 144, %s303, [#allocation9], 16, 16, 1
        $region28: #{_lambda_.2} parent=11 // pred_fallthru
          _
        // Predicated region
        $region29: #{_lambda_.2} parent=11 // pred_check
          %p309 = pneg %p149
        $region30: #{_lambda_.2} parent=11 // pred_check_branch
          %311 = sbr.rel (%p309) target = $region32
        $region31: #{_lambda_.2} parent=11 // pred_region
          %313 = vsyncadd [#allocation9], 0
          %s314 = sshll.u32 %s5, 4
          %s315 = int_to_ptr.hbm [resolvable:$true] %s314
          %s316 = sshll.u32 [#allocation10], 4
          %s317 = int_to_ptr.vmem [resolvable:$true] %s316
          %322 = dma.hbm_to_vmem [thread:$0]  %s315, 18432, %s317, [#allocation9], 128, 128, 8
        $region32: #{_lambda_.2} parent=11 // pred_fallthru
          _
        // Predicated region
        $region33: #{_lambda_.2} parent=11 // pred_check
          %p323 = pneg %p170
        $region34: #{_lambda_.2} parent=11 // pred_check_branch
          %325 = sbr.rel (%p323) target = $region36
        $region35: #{_lambda_.2} parent=11 // pred_region
          _
        $region36: #{_lambda_.2} parent=11 // pred_fallthru
          _
        // Predicated region
        $region37: #{_lambda_.2} parent=11 // pred_check
          %p326 = pneg %p191
        $region38: #{_lambda_.2} parent=11 // pred_check_branch
          %328 = sbr.rel (%p326) target = $region40
        $region39: #{_lambda_.2} parent=11 // pred_region
          _
        $region40: #{_lambda_.2} parent=11 // pred_fallthru
          _
        // Predicated region
        $region41: #{_lambda_.2} parent=11 // pred_check
          %p329 = pneg %p212
        $region42: #{_lambda_.2} parent=11 // pred_check_branch
          %331 = sbr.rel (%p329) target = $region44
        $region43: #{_lambda_.2} parent=11 // pred_region
          _
        $region44: #{_lambda_.2} parent=11 // pred_fallthru
          _
      $region12: #{_lambda_.2} parent=5 // pred_fallthru
        _
      %p332 = scmp.lt.s32.totalorder %s18, 4
      // Predicated region
      $region45: #{_lambda_.2} parent=5 // pred_check
        %p333 = pneg %p332
      $region46: #{_lambda_.2} parent=5 // pred_check_branch
        %335 = sbr.rel (%p333) target = $region48
      $region47: #{_lambda_.2} parent=5 // pred_region
        // Predicated region
        $region49: #{_lambda_.2} parent=47 // pred_check
          %p336 = pneg %p38
        $region50: #{_lambda_.2} parent=47 // pred_check_branch
          %338 = sbr.rel (%p336) target = $region52
        $region51: #{_lambda_.2} parent=47 // pred_region
          %p339 = scmp.lt.s32.totalorder %s18, 3
          %s340 = scalar_select %p339, %s18, 3
          %s341 = smul.addr %s340, 3
          %s342 = smul.addr %s341, 8
          %s343 = scalar_lea.vmem %s0, %s342
        $region52: #{_lambda_.2} parent=47 // pred_fallthru
          _
      $region48: #{_lambda_.2} parent=5 // pred_fallthru
        _
      %p344 = scmp.le.s32.totalorder 1, %s18
      %p345 = scmp.lt.s32.totalorder %s18, 5
      %p346 = pnand %p344, %p345
      %p347 = pneg %p346
      // Predicated region
      $region53: #{_lambda_.2} parent=5 // pred_check
        _
      $region54: #{_lambda_.2} parent=5 // pred_check_branch
        %349 = sbr.rel (%p346) target = $region56
      $region55: #{_lambda_.2} parent=5 // pred_region
        %s350 = ssub.s32 %s18, 1
        // Predicated region
        $region57: #{_lambda_.2} parent=55 // pred_check
          %p351 = pneg %p65
        $region58: #{_lambda_.2} parent=55 // pred_check_branch
          %353 = sbr.rel (%p351) target = $region60
        $region59: #{_lambda_.2} parent=55 // pred_region
          %355 = dma.done [#allocation4], 576
        $region60: #{_lambda_.2} parent=55 // pred_fallthru
          _
        // Predicated region
        $region61: #{_lambda_.2} parent=55 // pred_check
          %p356 = pneg %p86
        $region62: #{_lambda_.2} parent=55 // pred_check_branch
          %358 = sbr.rel (%p356) target = $region64
        $region63: #{_lambda_.2} parent=55 // pred_region
          %360 = dma.done [#allocation6], 144
        $region64: #{_lambda_.2} parent=55 // pred_fallthru
          _
        // Predicated region
        $region65: #{_lambda_.2} parent=55 // pred_check
          %p361 = pneg %p107
        $region66: #{_lambda_.2} parent=55 // pred_check_branch
          %363 = sbr.rel (%p361) target = $region68
        $region67: #{_lambda_.2} parent=55 // pred_region
          %365 = dma.done [#allocation6], 144
        $region68: #{_lambda_.2} parent=55 // pred_fallthru
          _
        // Predicated region
        $region69: #{_lambda_.2} parent=55 // pred_check
          %p366 = pneg %p128
        $region70: #{_lambda_.2} parent=55 // pred_check_branch
          %368 = sbr.rel (%p366) target = $region72
        $region71: #{_lambda_.2} parent=55 // pred_region
          %370 = dma.done [#allocation9], 144
        $region72: #{_lambda_.2} parent=55 // pred_fallthru
          _
        // Predicated region
        $region73: #{_lambda_.2} parent=55 // pred_check
          %p371 = pneg %p149
        $region74: #{_lambda_.2} parent=55 // pred_check_branch
          %373 = sbr.rel (%p371) target = $region76
        $region75: #{_lambda_.2} parent=55 // pred_region
          %375 = dma.done [#allocation9], 18432
        $region76: #{_lambda_.2} parent=55 // pred_fallthru
          _
        %p376 = scmp.lt.s32.totalorder %s23, 3
        %s377 = scalar_select %p376, %s23, 3
        %s378 = smul.addr %s377, 3
        %s379 = smul.addr %s378, 8
        %s380 = scalar_lea.vmem %s0, %s379
        %p381 = pneg %p44
        %p382 = pneg %p41
        %p383 = pneg %p65
        %p384 = pneg %p62
        %p385 = pneg %p86
        %p386 = pneg %p83
        %p387 = pneg %p107
        %p388 = pneg %p104
        %p389 = pneg %p128
        %p390 = pneg %p125
        %p391 = pneg %p149
        %p392 = pneg %p146
        %p393 = pneg %p170
        %p394 = pneg %p167
        %p395 = pneg %p191
        %p396 = pneg %p188
        %p397 = pneg %p212
        %p398 = pneg %p209
        %p399 = pneg %p238
        %p400 = pneg %p235
        %p401 = scmp.lt.s32.totalorder %s23, 3
        %s402 = scalar_select %p401, %s23, 3
        %s403 = smul.addr %s402, 4
        %s404 = scalar_lea.vmem %s9, %s403
        %p405 = scmp.lt.s32.totalorder %s23, 3
        %s406 = scalar_select %p405, %s23, 3
        %s407 = smul.addr %s406, 3
        %s408 = smul.addr %s407, 8
        %s409 = scalar_lea.vmem %s0, %s408
        %p410 = scmp.lt.s32.totalorder %s23, 3
        %s411 = scalar_select %p410, %s23, 3
        %s412 = smul.addr %s411, 4
        %s413 = scalar_lea.vmem %s9, %s412
        %v414 = vld [vmem:[%s409] sm:$0xff]
        %v415 = vld [vmem:[%s409 + $0x8] sm:$0xff]
        %v416 = vld [vmem:[%s409 + $0x10] sm:$0x3]
        %v417 = vld [vmem:[#allocation3] sm:$0x7]
        %v418 = vperm.slane %v417, 0
        %v419 = vmul.f32 %v414, %v418
        %v420 = vmul.f32 %v415, %v418
        %v421 = vperm.slane %v417, 1
        %v422 = vmul.f32 %v414, %v421
        %v423 = vmul.f32 %v415, %v421
        %v424 = vmul.f32 %v416, %v421
        %vm428 = vcmask 1046528
        %v429 = vrot.slane %v422, 1
        %v430 = vrot.slane %v423, 1
        %v431 = vsel %vm428, %v429, %v430
        %v432 = vrot.slane %v424, 1
        %v433 = vsel %vm428, %v430, %v432
        %v436 = vadd.f32 %v419, %v431
        %v437 = vadd.f32 %v420, %v433
        %v438 = vperm.slane %v417, 2
        %v439 = vmul.f32 %v414, %v438
        %v440 = vmul.f32 %v415, %v438
        %v441 = vmul.f32 %v416, %v438
        %vm445 = vcmask 1045504
        %v446 = vrot.slane %v439, 2
        %v447 = vrot.slane %v440, 2
        %v448 = vsel %vm445, %v446, %v447
        %v449 = vrot.slane %v441, 2
        %v450 = vsel %vm445, %v447, %v449
        %v453 = vadd.f32 %v436, %v448
        %v454 = vadd.f32 %v437, %v450
        %v455 = vld [vmem:[#allocation5] sm:$0x1]
        %v457 = vperm.slane %v455, 0
        %v459 = vadd.f32 %v453, %v457
        %v460 = vadd.f32 %v454, %v457
        %v461 = vmax.f32 %v459, 0.0
        %v462 = vmax.f32 %v460, 0.0
        %v463 = vld [vmem:[#allocation7] sm:$0x1]
        %v465 = vperm.slane %v463, 0
        %v467 = vmul.f32 %v461, %v465
        %v468 = vmul.f32 %v462, %v465
        %v469 = vld [vmem:[#allocation8] sm:$0x1]
        %v471 = vperm.slane %v469, 0
        %v473 = vadd.f32 %v467, %v471
        %v474 = vadd.f32 %v468, %v471
        %v475 = vld [vmem:[#allocation10] sm:$0xff]
        %v476 = vld [vmem:[#allocation10 + $0x8] sm:$0xff]
        %v477 = vld [vmem:[#allocation10 + $0x10] sm:$0xff]
        %v478 = vld [vmem:[#allocation10 + $0x18] sm:$0xff]
        %v479 = vld [vmem:[#allocation10 + $0x20] sm:$0xff]
        %v480 = vld [vmem:[#allocation10 + $0x28] sm:$0xff]
        %v481 = vld [vmem:[#allocation10 + $0x30] sm:$0xff]
        %v482 = vld [vmem:[#allocation10 + $0x38] sm:$0xff]
        %v483 = vld [vmem:[#allocation10 + $0x40] sm:$0xff]
        %v484 = vld [vmem:[#allocation10 + $0x48] sm:$0xff]
        %v485 = vld [vmem:[#allocation10 + $0x50] sm:$0xff]
        %v486 = vld [vmem:[#allocation10 + $0x58] sm:$0xff]
        %v487 = vld [vmem:[#allocation10 + $0x60] sm:$0xff]
        %v488 = vld [vmem:[#allocation10 + $0x68] sm:$0xff]
        %v489 = vld [vmem:[#allocation10 + $0x70] sm:$0xff]
        %v490 = vld [vmem:[#allocation10 + $0x78] sm:$0xff]
        %v491 = vld [vmem:[%s6] sm:$0x1]
        %v493 = vperm.slane %v491, 0
        %495 = vmatpush.msra.mxu0 %v490
        %496 = vmatpush.msra.mxu0 %v489
        %497 = vmatpush.msra.mxu0 %v488
        %498 = vmatpush.msra.mxu0 %v487
        %499 = vmatpush.msra.mxu0 %v486
        %500 = vmatpush.msra.mxu0 %v485
        %501 = vmatpush.msra.mxu0 %v484
        %502 = vmatpush.msra.mxu0 %v483
        %503 = vmatpush.msra.mxu0 %v482
        %504 = vmatpush.msra.mxu0 %v481
        %505 = vmatpush.msra.mxu0 %v480
        %506 = vmatpush.msra.mxu0 %v479
        %507 = vmatpush.msra.mxu0 %v478
        %508 = vmatpush.msra.mxu0 %v477
        %509 = vmatpush.msra.mxu0 %v476
        %510 = vmatpush.msra.mxu0 %v475
        %511 = vmatmul.f32.gmra.mxu0 %v473
        %v512 = vpop.f32.mrf.mxu0
        %v513 = vadd.f32 %v493, %v512
        %514 = vmatmul.f32.gmra.mxu0 %v474
        %v515 = vpop.f32.mrf.mxu0
        %v516 = vadd.f32 %v493, %v515
        %517 = vdwg.mxu0
        %v518 = vmax.f32 %v513, 0.0
        %v519 = vmax.f32 %v516, 0.0
        %v520 = vld [vmem:[%s7] sm:$0x1]
        %v522 = vperm.slane %v520, 0
        %v524 = vmul.f32 %v518, %v522
        %v525 = vmul.f32 %v519, %v522
        %v526 = vld [vmem:[%s8] sm:$0x1]
        %v528 = vperm.slane %v526, 0
        %v530 = vadd.f32 %v524, %v528
        %v531 = vadd.f32 %v525, %v528
        %v532 = vmax.f32 %v491, 0.0
        %v533 = vmul.f32 %v532, %v520
        %v534 = vadd.f32 %v533, %v526
        %535 = vst [vmem:[#allocation2] sm:$0x1] -1e+30
        %536 = vst [vmem:[#allocation2 + $0x1] sm:$0x1] %v534
        %537 = vst [vmem:[#allocation2 + $0x2] sm:$0xff] %v530
        %538 = vst [vmem:[#allocation2 + $0xa] sm:$0xff] %v531
        %539 = vst [vmem:[#allocation2 + $0x12] sm:$0x1] %v534
        %540 = vst [vmem:[#allocation2 + $0x13] sm:$0x1] -1e+30
        %v541 = vld [vmem:[#allocation2] sm:$0xff]
        %v542 = vld [vmem:[#allocation2 + $0x8] sm:$0xff]
        %v543 = vld [vmem:[#allocation2 + $0x10] sm:$0xf]
        %v547 = vrot.slane %v541, 1
        %v548 = vrot.slane %v542, 1
        %v549 = vsel %vm428, %v547, %v548
        %v550 = vrot.slane %v543, 1
        %v551 = vsel %vm428, %v548, %v550
        %v555 = vmax.f32 %v541, %v549
        %v556 = vmax.f32 %v542, %v551
        %v557 = vmax.f32 %v543, %v550
        %v558 = vlaneseq
        %v559 = vshrl.u32 %v558, 7
        %v560 = vadd.s32 %v559, 8
        %v561 = vlaneseq
        %v562 = vand.u32 %v561, 127
        %v563 = vsub.s32 %v559, 1
        %v564 = vsub.s32 %v560, 1
        %v565 = vmul.u32 %v563, 2
        %v566 = vmul.u32 %v564, 2
        %vm567 = vcmp.eq.s32.totalorder %v562, %v565
        %vm568 = vcmp.eq.s32.totalorder %v562, %v566
        %v569 = vsel %vm567, 1.0, 0.0
        %v570 = vsel %vm568, 1.0, 0.0
        %vm571 = vcmask 154624
        %v573 = vsel %vm571, %v569, 0
        %v576 = vsel %vm571, %v570, 0
        %vm578 = vcmask 1042432
        %v580 = vsel %vm578, %v557, 0
        %582 = vmatpush.msra.mxu0 0.0
        %583 = vmatpush.msra.mxu0 0.0
        %584 = vmatpush.msra.mxu0 0.0
        %585 = vmatpush.msra.mxu0 0.0
        %586 = vmatpush.msra.mxu0 0.0
        %587 = vmatpush.msra.mxu0 0.0
        %588 = vmatpush.msra.mxu0 0.0
        %589 = vmatpush.msra.mxu0 0.0
        %590 = vmatpush.msra.mxu0 0.0
        %591 = vmatpush.msra.mxu0 0.0
        %592 = vmatpush.msra.mxu0 0.0
        %593 = vmatpush.msra.mxu0 0.0
        %594 = vmatpush.msra.mxu0 0.0
        %595 = vmatpush.msra.mxu0 %v580
        %596 = vmatpush.msra.mxu0 %v556
        %597 = vmatpush.msra.mxu0 %v555
        %598 = vmatmul.f32.gmra.mxu0 %v573
        %v599 = vpop.f32.mrf.mxu0
        %v600 = vadd.f32 0.0, %v599
        %601 = vmatmul.f32.gmra.mxu0 %v576
        %v602 = vpop.f32.mrf.mxu0
        %v603 = vadd.f32 0.0, %v602
        %604 = vdwg.mxu0
        %s605 = scalar_lea.vmem [#allocation3], 4
        %v606 = vld [vmem:[%s605] sm:$0x7]
        %v607 = vperm.slane %v606, 0
        %v608 = vmul.f32 %v600, %v607
        %v609 = vmul.f32 %v603, %v607
        %v610 = vperm.slane %v606, 1
        %v611 = vmul.f32 %v600, %v610
        %v612 = vmul.f32 %v603, %v610
        %v615 = vrot.slane %v611, 1
        %v616 = vrot.slane %v612, 1
        %v617 = vsel %vm428, %v615, %v616
        %v620 = vadd.f32 %v608, %v617
        %v621 = vadd.f32 %v609, %v616
        %v622 = vperm.slane %v606, 2
        %v623 = vmul.f32 %v600, %v622
        %v624 = vmul.f32 %v603, %v622
        %v627 = vrot.slane %v623, 2
        %v628 = vrot.slane %v624, 2
        %v629 = vsel %vm445, %v627, %v628
        %v632 = vadd.f32 %v620, %v629
        %v633 = vadd.f32 %v621, %v628
        %s634 = scalar_lea.vmem [#allocation5], 1
        %v635 = vld [vmem:[%s634] sm:$0x1]
        %v637 = vperm.slane %v635, 0
        %v639 = vadd.f32 %v632, %v637
        %v640 = vadd.f32 %v633, %v637
        %v641 = vmax.f32 %v639, 0.0
        %v642 = vmax.f32 %v640, 0.0
        %s643 = scalar_lea.vmem [#allocation7], 1
        %v644 = vld [vmem:[%s643] sm:$0x1]
        %v646 = vperm.slane %v644, 0
        %v648 = vmul.f32 %v641, %v646
        %v649 = vmul.f32 %v642, %v646
        %s650 = scalar_lea.vmem [#allocation8], 1
        %v651 = vld [vmem:[%s650] sm:$0x1]
        %v653 = vperm.slane %v651, 0
        %v655 = vadd.f32 %v648, %v653
        %v656 = vadd.f32 %v649, %v653
        %s657 = scalar_lea.vmem [#allocation10], 128
        %v658 = vld [vmem:[%s657] sm:$0xff]
        %v659 = vld [vmem:[%s657 + $0x8] sm:$0xff]
        %v660 = vld [vmem:[%s657 + $0x10] sm:$0xff]
        %v661 = vld [vmem:[%s657 + $0x18] sm:$0xff]
        %v662 = vld [vmem:[%s657 + $0x20] sm:$0xff]
        %v663 = vld [vmem:[%s657 + $0x28] sm:$0xff]
        %v664 = vld [vmem:[%s657 + $0x30] sm:$0xff]
        %v665 = vld [vmem:[%s657 + $0x38] sm:$0xff]
        %v666 = vld [vmem:[%s657 + $0x40] sm:$0xff]
        %v667 = vld [vmem:[%s657 + $0x48] sm:$0xff]
        %v668 = vld [vmem:[%s657 + $0x50] sm:$0xff]
        %v669 = vld [vmem:[%s657 + $0x58] sm:$0xff]
        %v670 = vld [vmem:[%s657 + $0x60] sm:$0xff]
        %v671 = vld [vmem:[%s657 + $0x68] sm:$0xff]
        %v672 = vld [vmem:[%s657 + $0x70] sm:$0xff]
        %v673 = vld [vmem:[%s657 + $0x78] sm:$0xff]
        %s674 = scalar_lea.vmem %s6, 1
        %v675 = vld [vmem:[%s674] sm:$0x1]
        %v677 = vperm.slane %v675, 0
        %679 = vmatpush.msra.mxu0 %v673
        %680 = vmatpush.msra.mxu0 %v672
        %681 = vmatpush.msra.mxu0 %v671
        %682 = vmatpush.msra.mxu0 %v670
        %683 = vmatpush.msra.mxu0 %v669
        %684 = vmatpush.msra.mxu0 %v668
        %685 = vmatpush.msra.mxu0 %v667
        %686 = vmatpush.msra.mxu0 %v666
        %687 = vmatpush.msra.mxu0 %v665
        %688 = vmatpush.msra.mxu0 %v664
        %689 = vmatpush.msra.mxu0 %v663
        %690 = vmatpush.msra.mxu0 %v662
        %691 = vmatpush.msra.mxu0 %v661
        %692 = vmatpush.msra.mxu0 %v660
        %693 = vmatpush.msra.mxu0 %v659
        %694 = vmatpush.msra.mxu0 %v658
        %695 = vmatmul.f32.gmra.mxu0 %v655
        %v696 = vpop.f32.mrf.mxu0
        %v697 = vadd.f32 %v677, %v696
        %698 = vmatmul.f32.gmra.mxu0 %v656
        %v699 = vpop.f32.mrf.mxu0
        %v700 = vadd.f32 %v677, %v699
        %701 = vdwg.mxu0
        %v702 = vmax.f32 %v697, 0.0
        %v703 = vmax.f32 %v700, 0.0
        %s704 = scalar_lea.vmem %s7, 1
        %v705 = vld [vmem:[%s704] sm:$0x1]
        %v707 = vperm.slane %v705, 0
        %v709 = vmul.f32 %v702, %v707
        %v710 = vmul.f32 %v703, %v707
        %s711 = scalar_lea.vmem %s8, 1
        %v712 = vld [vmem:[%s711] sm:$0x1]
        %v714 = vperm.slane %v712, 0
        %v716 = vadd.f32 %v709, %v714
        %v717 = vadd.f32 %v710, %v714
        %v718 = vmax.f32 %v675, 0.0
        %v719 = vmul.f32 %v718, %v705
        %v720 = vadd.f32 %v719, %v712
        %721 = vst [vmem:[#allocation2] sm:$0x1] -1e+30
        %722 = vst [vmem:[#allocation2 + $0x1] sm:$0x1] %v720
        %723 = vst [vmem:[#allocation2 + $0x2] sm:$0xff] %v716
        %724 = vst [vmem:[#allocation2 + $0xa] sm:$0x3] %v717
        %725 = vst [vmem:[#allocation2 + $0xc] sm:$0x1] %v720
        %726 = vst [vmem:[#allocation2 + $0xd] sm:$0x1] -1e+30
        %v727 = vld [vmem:[#allocation2] sm:$0xff]
        %v728 = vld [vmem:[#allocation2 + $0x8] sm:$0x3f]
        %v731 = vrot.slane %v727, 1
        %v732 = vrot.slane %v728, 1
        %v733 = vsel %vm428, %v731, %v732
        %v736 = vmax.f32 %v727, %v733
        %v737 = vmax.f32 %v728, %v732
        %vm738 = vcmask 105472
        %v739 = vsel %vm738, %v569, 0
        %v741 = vsel %vm738, %v570, 0
        %vm743 = vcmask 1044480
        %v745 = vsel %vm743, %v737, 0
        %747 = vmatpush.msra.mxu0 0.0
        %748 = vmatpush.msra.mxu0 0.0
        %749 = vmatpush.msra.mxu0 0.0
        %750 = vmatpush.msra.mxu0 0.0
        %751 = vmatpush.msra.mxu0 0.0
        %752 = vmatpush.msra.mxu0 0.0
        %753 = vmatpush.msra.mxu0 0.0
        %754 = vmatpush.msra.mxu0 0.0
        %755 = vmatpush.msra.mxu0 0.0
        %756 = vmatpush.msra.mxu0 0.0
        %757 = vmatpush.msra.mxu0 0.0
        %758 = vmatpush.msra.mxu0 0.0
        %759 = vmatpush.msra.mxu0 0.0
        %760 = vmatpush.msra.mxu0 0.0
        %761 = vmatpush.msra.mxu0 %v745
        %762 = vmatpush.msra.mxu0 %v736
        %763 = vmatmul.f32.gmra.mxu0 %v739
        %v764 = vpop.f32.mrf.mxu0
        %v765 = vadd.f32 0.0, %v764
        %766 = vmatmul.f32.gmra.mxu0 %v741
        %v767 = vpop.f32.mrf.mxu0
        %v768 = vadd.f32 0.0, %v767
        %769 = vdwg.mxu0
        %s770 = scalar_lea.vmem [#allocation3], 8
        %v771 = vld [vmem:[%s770] sm:$0x7]
        %v772 = vperm.slane %v771, 0
        %v773 = vmul.f32 %v765, %v772
        %v774 = vperm.slane %v771, 1
        %v775 = vmul.f32 %v765, %v774
        %v777 = vrot.slane %v775, 1
        %v779 = vadd.f32 %v773, %v777
        %v780 = vperm.slane %v771, 2
        %v781 = vmul.f32 %v765, %v780
        %v782 = vmul.f32 %v768, %v780
        %v785 = vrot.slane %v781, 2
        %v786 = vrot.slane %v782, 2
        %v787 = vsel %vm445, %v785, %v786
        %v789 = vadd.f32 %v779, %v787
        %s790 = scalar_lea.vmem [#allocation5], 2
        %v791 = vld [vmem:[%s790] sm:$0x1]
        %v793 = vperm.slane %v791, 0
        %v795 = vadd.f32 %v789, %v793
        %v796 = vmax.f32 %v795, 0.0
        %s797 = scalar_lea.vmem [#allocation7], 2
        %v798 = vld [vmem:[%s797] sm:$0x1]
        %v800 = vperm.slane %v798, 0
        %v802 = vmul.f32 %v796, %v800
        %s803 = scalar_lea.vmem [#allocation8], 2
        %v804 = vld [vmem:[%s803] sm:$0x1]
        %v806 = vperm.slane %v804, 0
        %v808 = vadd.f32 %v802, %v806
        %s809 = scalar_lea.vmem [#allocation10], 256
        %v810 = vld [vmem:[%s809] sm:$0xff]
        %v811 = vld [vmem:[%s809 + $0x8] sm:$0xff]
        %v812 = vld [vmem:[%s809 + $0x10] sm:$0xff]
        %v813 = vld [vmem:[%s809 + $0x18] sm:$0xff]
        %v814 = vld [vmem:[%s809 + $0x20] sm:$0xff]
        %v815 = vld [vmem:[%s809 + $0x28] sm:$0xff]
        %v816 = vld [vmem:[%s809 + $0x30] sm:$0xff]
        %v817 = vld [vmem:[%s809 + $0x38] sm:$0xff]
        %v818 = vld [vmem:[%s809 + $0x40] sm:$0xff]
        %v819 = vld [vmem:[%s809 + $0x48] sm:$0xff]
        %v820 = vld [vmem:[%s809 + $0x50] sm:$0xff]
        %v821 = vld [vmem:[%s809 + $0x58] sm:$0xff]
        %v822 = vld [vmem:[%s809 + $0x60] sm:$0xff]
        %v823 = vld [vmem:[%s809 + $0x68] sm:$0xff]
        %v824 = vld [vmem:[%s809 + $0x70] sm:$0xff]
        %v825 = vld [vmem:[%s809 + $0x78] sm:$0xff]
        %s826 = scalar_lea.vmem %s6, 2
        %v827 = vld [vmem:[%s826] sm:$0x1]
        %v829 = vperm.slane %v827, 0
        %831 = vmatpush.msra.mxu0 %v825
        %832 = vmatpush.msra.mxu0 %v824
        %833 = vmatpush.msra.mxu0 %v823
        %834 = vmatpush.msra.mxu0 %v822
        %835 = vmatpush.msra.mxu0 %v821
        %836 = vmatpush.msra.mxu0 %v820
        %837 = vmatpush.msra.mxu0 %v819
        %838 = vmatpush.msra.mxu0 %v818
        %839 = vmatpush.msra.mxu0 %v817
        %840 = vmatpush.msra.mxu0 %v816
        %841 = vmatpush.msra.mxu0 %v815
        %842 = vmatpush.msra.mxu0 %v814
        %843 = vmatpush.msra.mxu0 %v813
        %844 = vmatpush.msra.mxu0 %v812
        %845 = vmatpush.msra.mxu0 %v811
        %846 = vmatpush.msra.mxu0 %v810
        %847 = vmatmul.f32.gmra.mxu0 %v808
        %v848 = vpop.f32.mrf.mxu0
        %v849 = vadd.f32 %v829, %v848
        %850 = vdwg.mxu0
        %v851 = vmax.f32 %v849, 0.0
        %s852 = scalar_lea.vmem %s7, 2
        %v853 = vld [vmem:[%s852] sm:$0x1]
        %v855 = vperm.slane %v853, 0
        %v857 = vmul.f32 %v851, %v855
        %s858 = scalar_lea.vmem %s8, 2
        %v859 = vld [vmem:[%s858] sm:$0x1]
        %v861 = vperm.slane %v859, 0
        %v863 = vadd.f32 %v857, %v861
        %v864 = vmax.f32 %v827, 0.0
        %v865 = vmul.f32 %v864, %v853
        %v866 = vadd.f32 %v865, %v859
        %867 = vst [vmem:[#allocation2] sm:$0x1] -1e+30
        %868 = vst [vmem:[#allocation2 + $0x1] sm:$0x1] %v866
        %869 = vst [vmem:[#allocation2 + $0x2] sm:$0x7f] %v863
        %870 = vst [vmem:[#allocation2 + $0x9] sm:$0x1] %v866
        %871 = vst [vmem:[#allocation2 + $0xa] sm:$0x1] -1e+30
        %v872 = vld [vmem:[#allocation2] sm:$0xff]
        %v873 = vld [vmem:[#allocation2 + $0x8] sm:$0x7]
        %v876 = vrot.slane %v872, 1
        %v877 = vrot.slane %v873, 1
        %v878 = vsel %vm428, %v876, %v877
        %v881 = vmax.f32 %v872, %v878
        %v882 = vmax.f32 %v873, %v877
        %vm883 = vcmask 80896
        %v884 = vsel %vm883, %v569, 0
        %vm886 = vcmask 1041408
        %v888 = vsel %vm886, %v882, 0
        %890 = vmatpush.msra.mxu0 0.0
        %891 = vmatpush.msra.mxu0 0.0
        %892 = vmatpush.msra.mxu0 0.0
        %893 = vmatpush.msra.mxu0 0.0
        %894 = vmatpush.msra.mxu0 0.0
        %895 = vmatpush.msra.mxu0 0.0
        %896 = vmatpush.msra.mxu0 0.0
        %897 = vmatpush.msra.mxu0 0.0
        %898 = vmatpush.msra.mxu0 0.0
        %899 = vmatpush.msra.mxu0 0.0
        %900 = vmatpush.msra.mxu0 0.0
        %901 = vmatpush.msra.mxu0 0.0
        %902 = vmatpush.msra.mxu0 0.0
        %903 = vmatpush.msra.mxu0 0.0
        %904 = vmatpush.msra.mxu0 %v888
        %905 = vmatpush.msra.mxu0 %v881
        %906 = vmatmul.f32.gmra.mxu0 %v884
        %v907 = vpop.f32.mrf.mxu0
        %v908 = vadd.f32 0.0, %v907
        %909 = vdwg.mxu0
        %s910 = scalar_lea.vmem [#allocation3], 12
        %v911 = vld [vmem:[%s910] sm:$0x7]
        %v912 = vperm.slane %v911, 0
        %v913 = vmul.f32 %v908, %v912
        %v914 = vperm.slane %v911, 1
        %v915 = vmul.f32 %v908, %v914
        %v917 = vrot.slane %v915, 1
        %v919 = vadd.f32 %v913, %v917
        %v920 = vperm.slane %v911, 2
        %v921 = vmul.f32 %v908, %v920
        %v923 = vrot.slane %v921, 2
        %v925 = vadd.f32 %v919, %v923
        %s926 = scalar_lea.vmem [#allocation5], 3
        %v927 = vld [vmem:[%s926] sm:$0x1]
        %v929 = vperm.slane %v927, 0
        %v931 = vadd.f32 %v925, %v929
        %v932 = vmax.f32 %v931, 0.0
        %s933 = scalar_lea.vmem [#allocation7], 3
        %v934 = vld [vmem:[%s933] sm:$0x1]
        %v936 = vperm.slane %v934, 0
        %v938 = vmul.f32 %v932, %v936
        %s939 = scalar_lea.vmem [#allocation8], 3
        %v940 = vld [vmem:[%s939] sm:$0x1]
        %v942 = vperm.slane %v940, 0
        %v944 = vadd.f32 %v938, %v942
        %s945 = scalar_lea.vmem [#allocation10], 384
        %v946 = vld [vmem:[%s945] sm:$0xff]
        %v947 = vld [vmem:[%s945 + $0x8] sm:$0xff]
        %v948 = vld [vmem:[%s945 + $0x10] sm:$0xff]
        %v949 = vld [vmem:[%s945 + $0x18] sm:$0xff]
        %v950 = vld [vmem:[%s945 + $0x20] sm:$0xff]
        %v951 = vld [vmem:[%s945 + $0x28] sm:$0xff]
        %v952 = vld [vmem:[%s945 + $0x30] sm:$0xff]
        %v953 = vld [vmem:[%s945 + $0x38] sm:$0xff]
        %v954 = vld [vmem:[%s945 + $0x40] sm:$0xff]
        %v955 = vld [vmem:[%s945 + $0x48] sm:$0xff]
        %v956 = vld [vmem:[%s945 + $0x50] sm:$0xff]
        %v957 = vld [vmem:[%s945 + $0x58] sm:$0xff]
        %v958 = vld [vmem:[%s945 + $0x60] sm:$0xff]
        %v959 = vld [vmem:[%s945 + $0x68] sm:$0xff]
        %v960 = vld [vmem:[%s945 + $0x70] sm:$0xff]
        %v961 = vld [vmem:[%s945 + $0x78] sm:$0xff]
        %s962 = scalar_lea.vmem %s6, 3
        %v963 = vld [vmem:[%s962] sm:$0x1]
        %v965 = vperm.slane %v963, 0
        %967 = vmatpush.msra.mxu0 %v961
        %968 = vmatpush.msra.mxu0 %v960
        %969 = vmatpush.msra.mxu0 %v959
        %970 = vmatpush.msra.mxu0 %v958
        %971 = vmatpush.msra.mxu0 %v957
        %972 = vmatpush.msra.mxu0 %v956
        %973 = vmatpush.msra.mxu0 %v955
        %974 = vmatpush.msra.mxu0 %v954
        %975 = vmatpush.msra.mxu0 %v953
        %976 = vmatpush.msra.mxu0 %v952
        %977 = vmatpush.msra.mxu0 %v951
        %978 = vmatpush.msra.mxu0 %v950
        %979 = vmatpush.msra.mxu0 %v949
        %980 = vmatpush.msra.mxu0 %v948
        %981 = vmatpush.msra.mxu0 %v947
        %982 = vmatpush.msra.mxu0 %v946
        %983 = vmatmul.f32.gmra.mxu0 %v944
        %v984 = vpop.f32.mrf.mxu0
        %v985 = vadd.f32 %v965, %v984
        %986 = vdwg.mxu0
        %v987 = vmax.f32 %v985, 0.0
        %s988 = scalar_lea.vmem %s7, 3
        %v989 = vld [vmem:[%s988] sm:$0x1]
        %v991 = vperm.slane %v989, 0
        %v993 = vmul.f32 %v987, %v991
        %s994 = scalar_lea.vmem %s8, 3
        %v995 = vld [vmem:[%s994] sm:$0x1]
        %v997 = vperm.slane %v995, 0
        %v999 = vadd.f32 %v993, %v997
        %v1000 = vmax.f32 %v963, 0.0
        %v1001 = vmul.f32 %v1000, %v989
        %v1002 = vadd.f32 %v1001, %v995
        %1003 = vst [vmem:[#allocation2] sm:$0x1] -1e+30
        %1004 = vst [vmem:[#allocation2 + $0x1] sm:$0x1] %v1002
        %1005 = vst [vmem:[#allocation2 + $0x2] sm:$0x1f] %v999
        %1006 = vst [vmem:[#allocation2 + $0x7] sm:$0x1] %v1002
        %1007 = vst [vmem:[#allocation2 + $0x8] sm:$0x1] -1e+30
        %v1008 = vld [vmem:[#allocation2] sm:$0xff]
        %v1009 = vld [vmem:[#allocation2 + $0x8] sm:$0x1]
        %v1012 = vrot.slane %v1008, 1
        %v1013 = vrot.slane %v1009, 1
        %v1014 = vsel %vm428, %v1012, %v1013
        %v1016 = vmax.f32 %v1008, %v1014
        %vm1017 = vcmask 64512
        %v1018 = vsel %vm1017, %v569, 0
        %1020 = vmatpush.msra.mxu0 0.0
        %1021 = vmatpush.msra.mxu0 0.0
        %1022 = vmatpush.msra.mxu0 0.0
        %1023 = vmatpush.msra.mxu0 0.0
        %1024 = vmatpush.msra.mxu0 0.0
        %1025 = vmatpush.msra.mxu0 0.0
        %1026 = vmatpush.msra.mxu0 0.0
        %1027 = vmatpush.msra.mxu0 0.0
        %1028 = vmatpush.msra.mxu0 0.0
        %1029 = vmatpush.msra.mxu0 0.0
        %1030 = vmatpush.msra.mxu0 0.0
        %1031 = vmatpush.msra.mxu0 0.0
        %1032 = vmatpush.msra.mxu0 0.0
        %1033 = vmatpush.msra.mxu0 0.0
        %1034 = vmatpush.msra.mxu0 0.0
        %1035 = vmatpush.msra.mxu0 %v1016
        %1036 = vmatmul.f32.gmra.mxu0 %v1018
        %v1037 = vpop.f32.mrf.mxu0
        %v1038 = vadd.f32 0.0, %v1037
        %1039 = vdwg.mxu0
        %s1040 = scalar_lea.vmem [#allocation3], 16
        %v1041 = vld [vmem:[%s1040] sm:$0x7]
        %v1042 = vperm.slane %v1041, 0
        %v1043 = vmul.f32 %v1038, %v1042
        %v1044 = vperm.slane %v1041, 1
        %v1045 = vmul.f32 %v1038, %v1044
        %v1047 = vrot.slane %v1045, 1
        %v1049 = vadd.f32 %v1043, %v1047
        %v1050 = vperm.slane %v1041, 2
        %v1051 = vmul.f32 %v1038, %v1050
        %v1053 = vrot.slane %v1051, 2
        %v1055 = vadd.f32 %v1049, %v1053
        %s1056 = scalar_lea.vmem [#allocation5], 4
        %v1057 = vld [vmem:[%s1056] sm:$0x1]
        %v1059 = vperm.slane %v1057, 0
        %v1061 = vadd.f32 %v1055, %v1059
        %v1062 = vmax.f32 %v1061, 0.0
        %s1063 = scalar_lea.vmem [#allocation7], 4
        %v1064 = vld [vmem:[%s1063] sm:$0x1]
        %v1066 = vperm.slane %v1064, 0
        %v1068 = vmul.f32 %v1062, %v1066
        %s1069 = scalar_lea.vmem [#allocation8], 4
        %v1070 = vld [vmem:[%s1069] sm:$0x1]
        %v1072 = vperm.slane %v1070, 0
        %v1074 = vadd.f32 %v1068, %v1072
        %s1075 = scalar_lea.vmem [#allocation10], 512
        %v1076 = vld [vmem:[%s1075] sm:$0xff]
        %v1077 = vld [vmem:[%s1075 + $0x8] sm:$0xff]
        %v1078 = vld [vmem:[%s1075 + $0x10] sm:$0xff]
        %v1079 = vld [vmem:[%s1075 + $0x18] sm:$0xff]
        %v1080 = vld [vmem:[%s1075 + $0x20] sm:$0xff]
        %v1081 = vld [vmem:[%s1075 + $0x28] sm:$0xff]
        %v1082 = vld [vmem:[%s1075 + $0x30] sm:$0xff]
        %v1083 = vld [vmem:[%s1075 + $0x38] sm:$0xff]
        %v1084 = vld [vmem:[%s1075 + $0x40] sm:$0xff]
        %v1085 = vld [vmem:[%s1075 + $0x48] sm:$0xff]
        %v1086 = vld [vmem:[%s1075 + $0x50] sm:$0xff]
        %v1087 = vld [vmem:[%s1075 + $0x58] sm:$0xff]
        %v1088 = vld [vmem:[%s1075 + $0x60] sm:$0xff]
        %v1089 = vld [vmem:[%s1075 + $0x68] sm:$0xff]
        %v1090 = vld [vmem:[%s1075 + $0x70] sm:$0xff]
        %v1091 = vld [vmem:[%s1075 + $0x78] sm:$0xff]
        %s1092 = scalar_lea.vmem %s6, 4
        %v1093 = vld [vmem:[%s1092] sm:$0x1]
        %v1095 = vperm.slane %v1093, 0
        %1097 = vmatpush.msra.mxu0 %v1091
        %1098 = vmatpush.msra.mxu0 %v1090
        %1099 = vmatpush.msra.mxu0 %v1089
        %1100 = vmatpush.msra.mxu0 %v1088
        %1101 = vmatpush.msra.mxu0 %v1087
        %1102 = vmatpush.msra.mxu0 %v1086
        %1103 = vmatpush.msra.mxu0 %v1085
        %1104 = vmatpush.msra.mxu0 %v1084
        %1105 = vmatpush.msra.mxu0 %v1083
        %1106 = vmatpush.msra.mxu0 %v1082
        %1107 = vmatpush.msra.mxu0 %v1081
        %1108 = vmatpush.msra.mxu0 %v1080
        %1109 = vmatpush.msra.mxu0 %v1079
        %1110 = vmatpush.msra.mxu0 %v1078
        %1111 = vmatpush.msra.mxu0 %v1077
        %1112 = vmatpush.msra.mxu0 %v1076
        %1113 = vmatmul.f32.gmra.mxu0 %v1074
        %v1114 = vpop.f32.mrf.mxu0
        %v1115 = vadd.f32 %v1095, %v1114
        %1116 = vdwg.mxu0
        %v1117 = vmax.f32 %v1115, 0.0
        %s1118 = scalar_lea.vmem %s7, 4
        %v1119 = vld [vmem:[%s1118] sm:$0x1]
        %v1121 = vperm.slane %v1119, 0
        %v1123 = vmul.f32 %v1117, %v1121
        %s1124 = scalar_lea.vmem %s8, 4
        %v1125 = vld [vmem:[%s1124] sm:$0x1]
        %v1127 = vperm.slane %v1125, 0
        %v1129 = vadd.f32 %v1123, %v1127
        %v1130 = vmax.f32 %v1093, 0.0
        %v1131 = vmul.f32 %v1130, %v1119
        %v1132 = vadd.f32 %v1131, %v1125
        %1133 = vst [vmem:[#allocation2] sm:$0x1] -1e+30
        %1134 = vst [vmem:[#allocation2 + $0x1] sm:$0x1] %v1132
        %1135 = vst [vmem:[#allocation2 + $0x2] sm:$0xf] %v1129
        %1136 = vst [vmem:[#allocation2 + $0x6] sm:$0x1] %v1132
        %1137 = vst [vmem:[#allocation2 + $0x7] sm:$0x1] -1e+30
        %v1138 = vld [vmem:[#allocation2] sm:$0xff]
        %v1140 = vrot.slane %v1138, 1
        %v1142 = vmax.f32 %v1138, %v1140
        %vm1143 = vcmask 56320
        %v1144 = vsel %vm1143, %v569, 0
        %v1147 = vsel %vm428, %v1142, 0
        %1149 = vmatpush.msra.mxu0 0.0
        %1150 = vmatpush.msra.mxu0 0.0
        %1151 = vmatpush.msra.mxu0 0.0
        %1152 = vmatpush.msra.mxu0 0.0
        %1153 = vmatpush.msra.mxu0 0.0
        %1154 = vmatpush.msra.mxu0 0.0
        %1155 = vmatpush.msra.mxu0 0.0
        %1156 = vmatpush.msra.mxu0 0.0
        %1157 = vmatpush.msra.mxu0 0.0
        %1158 = vmatpush.msra.mxu0 0.0
        %1159 = vmatpush.msra.mxu0 0.0
        %1160 = vmatpush.msra.mxu0 0.0
        %1161 = vmatpush.msra.mxu0 0.0
        %1162 = vmatpush.msra.mxu0 0.0
        %1163 = vmatpush.msra.mxu0 0.0
        %1164 = vmatpush.msra.mxu0 %v1147
        %1165 = vmatmul.f32.gmra.mxu0 %v1144
        %v1166 = vpop.f32.mrf.mxu0
        %v1167 = vadd.f32 0.0, %v1166
        %1168 = vdwg.mxu0
        %s1169 = scalar_lea.vmem [#allocation3], 20
        %v1170 = vld [vmem:[%s1169] sm:$0x7]
        %v1171 = vperm.slane %v1170, 0
        %v1172 = vmul.f32 %v1167, %v1171
        %v1173 = vperm.slane %v1170, 1
        %v1174 = vmul.f32 %v1167, %v1173
        %v1176 = vrot.slane %v1174, 1
        %v1178 = vadd.f32 %v1172, %v1176
        %v1179 = vperm.slane %v1170, 2
        %v1180 = vmul.f32 %v1167, %v1179
        %v1182 = vrot.slane %v1180, 2
        %v1184 = vadd.f32 %v1178, %v1182
        %s1185 = scalar_lea.vmem [#allocation5], 5
        %v1186 = vld [vmem:[%s1185] sm:$0x1]
        %v1188 = vperm.slane %v1186, 0
        %v1190 = vadd.f32 %v1184, %v1188
        %v1191 = vmax.f32 %v1190, 0.0
        %s1192 = scalar_lea.vmem [#allocation7], 5
        %v1193 = vld [vmem:[%s1192] sm:$0x1]
        %v1195 = vperm.slane %v1193, 0
        %v1197 = vmul.f32 %v1191, %v1195
        %s1198 = scalar_lea.vmem [#allocation8], 5
        %v1199 = vld [vmem:[%s1198] sm:$0x1]
        %v1201 = vperm.slane %v1199, 0
        %v1203 = vadd.f32 %v1197, %v1201
        %s1204 = scalar_lea.vmem [#allocation10], 640
        %v1205 = vld [vmem:[%s1204] sm:$0xff]
        %v1206 = vld [vmem:[%s1204 + $0x8] sm:$0xff]
        %v1207 = vld [vmem:[%s1204 + $0x10] sm:$0xff]
        %v1208 = vld [vmem:[%s1204 + $0x18] sm:$0xff]
        %v1209 = vld [vmem:[%s1204 + $0x20] sm:$0xff]
        %v1210 = vld [vmem:[%s1204 + $0x28] sm:$0xff]
        %v1211 = vld [vmem:[%s1204 + $0x30] sm:$0xff]
        %v1212 = vld [vmem:[%s1204 + $0x38] sm:$0xff]
        %v1213 = vld [vmem:[%s1204 + $0x40] sm:$0xff]
        %v1214 = vld [vmem:[%s1204 + $0x48] sm:$0xff]
        %v1215 = vld [vmem:[%s1204 + $0x50] sm:$0xff]
        %v1216 = vld [vmem:[%s1204 + $0x58] sm:$0xff]
        %v1217 = vld [vmem:[%s1204 + $0x60] sm:$0xff]
        %v1218 = vld [vmem:[%s1204 + $0x68] sm:$0xff]
        %v1219 = vld [vmem:[%s1204 + $0x70] sm:$0xff]
        %v1220 = vld [vmem:[%s1204 + $0x78] sm:$0xff]
        %s1221 = scalar_lea.vmem %s6, 5
        %v1222 = vld [vmem:[%s1221] sm:$0x1]
        %v1224 = vperm.slane %v1222, 0
        %1226 = vmatpush.msra.mxu0 %v1220
        %1227 = vmatpush.msra.mxu0 %v1219
        %1228 = vmatpush.msra.mxu0 %v1218
        %1229 = vmatpush.msra.mxu0 %v1217
        %1230 = vmatpush.msra.mxu0 %v1216
        %1231 = vmatpush.msra.mxu0 %v1215
        %1232 = vmatpush.msra.mxu0 %v1214
        %1233 = vmatpush.msra.mxu0 %v1213
        %1234 = vmatpush.msra.mxu0 %v1212
        %1235 = vmatpush.msra.mxu0 %v1211
        %1236 = vmatpush.msra.mxu0 %v1210
        %1237 = vmatpush.msra.mxu0 %v1209
        %1238 = vmatpush.msra.mxu0 %v1208
        %1239 = vmatpush.msra.mxu0 %v1207
        %1240 = vmatpush.msra.mxu0 %v1206
        %1241 = vmatpush.msra.mxu0 %v1205
        %1242 = vmatmul.f32.gmra.mxu0 %v1203
        %v1243 = vpop.f32.mrf.mxu0
        %v1244 = vadd.f32 %v1224, %v1243
        %1245 = vdwg.mxu0
        %v1246 = vmax.f32 %v1244, 0.0
        %s1247 = scalar_lea.vmem %s7, 5
        %v1248 = vld [vmem:[%s1247] sm:$0x1]
        %v1250 = vperm.slane %v1248, 0
        %v1252 = vmul.f32 %v1246, %v1250
        %s1253 = scalar_lea.vmem %s8, 5
        %v1254 = vld [vmem:[%s1253] sm:$0x1]
        %v1256 = vperm.slane %v1254, 0
        %v1258 = vadd.f32 %v1252, %v1256
        %v1259 = vmax.f32 %v1222, 0.0
        %v1260 = vmul.f32 %v1259, %v1248
        %v1261 = vadd.f32 %v1260, %v1254
        %1262 = vst [vmem:[#allocation2] sm:$0x1] -1e+30
        %1263 = vst [vmem:[#allocation2 + $0x1] sm:$0x1] %v1261
        %1264 = vst [vmem:[#allocation2 + $0x2] sm:$0xf] %v1258
        %1265 = vst [vmem:[#allocation2 + $0x6] sm:$0x1] %v1261
        %1266 = vst [vmem:[#allocation2 + $0x7] sm:$0x1] -1e+30
        %v1267 = vld [vmem:[#allocation2] sm:$0xff]
        %v1269 = vrot.slane %v1267, 1
        %v1271 = vmax.f32 %v1267, %v1269
        %v1273 = vsel %vm428, %v1271, 0
        %1275 = vmatpush.msra.mxu0 0.0
        %1276 = vmatpush.msra.mxu0 0.0
        %1277 = vmatpush.msra.mxu0 0.0
        %1278 = vmatpush.msra.mxu0 0.0
        %1279 = vmatpush.msra.mxu0 0.0
        %1280 = vmatpush.msra.mxu0 0.0
        %1281 = vmatpush.msra.mxu0 0.0
        %1282 = vmatpush.msra.mxu0 0.0
        %1283 = vmatpush.msra.mxu0 0.0
        %1284 = vmatpush.msra.mxu0 0.0
        %1285 = vmatpush.msra.mxu0 0.0
        %1286 = vmatpush.msra.mxu0 0.0
        %1287 = vmatpush.msra.mxu0 0.0
        %1288 = vmatpush.msra.mxu0 0.0
        %1289 = vmatpush.msra.mxu0 0.0
        %1290 = vmatpush.msra.mxu0 %v1273
        %1291 = vmatmul.f32.gmra.mxu0 %v1144
        %v1292 = vpop.f32.mrf.mxu0
        %v1293 = vadd.f32 0.0, %v1292
        %1294 = vdwg.mxu0
        %s1295 = scalar_lea.vmem [#allocation3], 24
        %v1296 = vld [vmem:[%s1295] sm:$0x7]
        %v1297 = vperm.slane %v1296, 0
        %v1298 = vmul.f32 %v1293, %v1297
        %v1299 = vperm.slane %v1296, 1
        %v1300 = vmul.f32 %v1293, %v1299
        %v1302 = vrot.slane %v1300, 1
        %v1304 = vadd.f32 %v1298, %v1302
        %v1305 = vperm.slane %v1296, 2
        %v1306 = vmul.f32 %v1293, %v1305
        %v1308 = vrot.slane %v1306, 2
        %v1310 = vadd.f32 %v1304, %v1308
        %s1311 = scalar_lea.vmem [#allocation5], 6
        %v1312 = vld [vmem:[%s1311] sm:$0x1]
        %v1314 = vperm.slane %v1312, 0
        %v1316 = vadd.f32 %v1310, %v1314
        %v1317 = vmax.f32 %v1316, 0.0
        %s1318 = scalar_lea.vmem [#allocation7], 6
        %v1319 = vld [vmem:[%s1318] sm:$0x1]
        %v1321 = vperm.slane %v1319, 0
        %v1323 = vmul.f32 %v1317, %v1321
        %s1324 = scalar_lea.vmem [#allocation8], 6
        %v1325 = vld [vmem:[%s1324] sm:$0x1]
        %v1327 = vperm.slane %v1325, 0
        %v1329 = vadd.f32 %v1323, %v1327
        %s1330 = scalar_lea.vmem [#allocation10], 768
        %v1331 = vld [vmem:[%s1330] sm:$0xff]
        %v1332 = vld [vmem:[%s1330 + $0x8] sm:$0xff]
        %v1333 = vld [vmem:[%s1330 + $0x10] sm:$0xff]
        %v1334 = vld [vmem:[%s1330 + $0x18] sm:$0xff]
        %v1335 = vld [vmem:[%s1330 + $0x20] sm:$0xff]
        %v1336 = vld [vmem:[%s1330 + $0x28] sm:$0xff]
        %v1337 = vld [vmem:[%s1330 + $0x30] sm:$0xff]
        %v1338 = vld [vmem:[%s1330 + $0x38] sm:$0xff]
        %v1339 = vld [vmem:[%s1330 + $0x40] sm:$0xff]
        %v1340 = vld [vmem:[%s1330 + $0x48] sm:$0xff]
        %v1341 = vld [vmem:[%s1330 + $0x50] sm:$0xff]
        %v1342 = vld [vmem:[%s1330 + $0x58] sm:$0xff]
        %v1343 = vld [vmem:[%s1330 + $0x60] sm:$0xff]
        %v1344 = vld [vmem:[%s1330 + $0x68] sm:$0xff]
        %v1345 = vld [vmem:[%s1330 + $0x70] sm:$0xff]
        %v1346 = vld [vmem:[%s1330 + $0x78] sm:$0xff]
        %s1347 = scalar_lea.vmem %s6, 6
        %v1348 = vld [vmem:[%s1347] sm:$0x1]
        %v1350 = vperm.slane %v1348, 0
        %1352 = vmatpush.msra.mxu0 %v1346
        %1353 = vmatpush.msra.mxu0 %v1345
        %1354 = vmatpush.msra.mxu0 %v1344
        %1355 = vmatpush.msra.mxu0 %v1343
        %1356 = vmatpush.msra.mxu0 %v1342
        %1357 = vmatpush.msra.mxu0 %v1341
        %1358 = vmatpush.msra.mxu0 %v1340
        %1359 = vmatpush.msra.mxu0 %v1339
        %1360 = vmatpush.msra.mxu0 %v1338
        %1361 = vmatpush.msra.mxu0 %v1337
        %1362 = vmatpush.msra.mxu0 %v1336
        %1363 = vmatpush.msra.mxu0 %v1335
        %1364 = vmatpush.msra.mxu0 %v1334
        %1365 = vmatpush.msra.mxu0 %v1333
        %1366 = vmatpush.msra.mxu0 %v1332
        %1367 = vmatpush.msra.mxu0 %v1331
        %1368 = vmatmul.f32.gmra.mxu0 %v1329
        %v1369 = vpop.f32.mrf.mxu0
        %v1370 = vadd.f32 %v1350, %v1369
        %1371 = vdwg.mxu0
        %v1372 = vmax.f32 %v1370, 0.0
        %s1373 = scalar_lea.vmem %s7, 6
        %v1374 = vld [vmem:[%s1373] sm:$0x1]
        %v1376 = vperm.slane %v1374, 0
        %v1378 = vmul.f32 %v1372, %v1376
        %s1379 = scalar_lea.vmem %s8, 6
        %v1380 = vld [vmem:[%s1379] sm:$0x1]
        %v1382 = vperm.slane %v1380, 0
        %v1384 = vadd.f32 %v1378, %v1382
        %v1385 = vmax.f32 %v1348, 0.0
        %v1386 = vmul.f32 %v1385, %v1374
        %v1387 = vadd.f32 %v1386, %v1380
        %1388 = vst [vmem:[#allocation2] sm:$0x1] -1e+30
        %1389 = vst [vmem:[#allocation2 + $0x1] sm:$0x1] %v1387
        %1390 = vst [vmem:[#allocation2 + $0x2] sm:$0xf] %v1384
        %1391 = vst [vmem:[#allocation2 + $0x6] sm:$0x1] %v1387
        %1392 = vst [vmem:[#allocation2 + $0x7] sm:$0x1] -1e+30
        %v1393 = vld [vmem:[#allocation2] sm:$0xff]
        %v1395 = vrot.slane %v1393, 1
        %v1397 = vmax.f32 %v1393, %v1395
        %v1399 = vsel %vm428, %v1397, 0
        %1401 = vmatpush.msra.mxu0 0.0
        %1402 = vmatpush.msra.mxu0 0.0
        %1403 = vmatpush.msra.mxu0 0.0
        %1404 = vmatpush.msra.mxu0 0.0
        %1405 = vmatpush.msra.mxu0 0.0
        %1406 = vmatpush.msra.mxu0 0.0
        %1407 = vmatpush.msra.mxu0 0.0
        %1408 = vmatpush.msra.mxu0 0.0
        %1409 = vmatpush.msra.mxu0 0.0
        %1410 = vmatpush.msra.mxu0 0.0
        %1411 = vmatpush.msra.mxu0 0.0
        %1412 = vmatpush.msra.mxu0 0.0
        %1413 = vmatpush.msra.mxu0 0.0
        %1414 = vmatpush.msra.mxu0 0.0
        %1415 = vmatpush.msra.mxu0 0.0
        %1416 = vmatpush.msra.mxu0 %v1399
        %1417 = vmatmul.f32.gmra.mxu0 %v1144
        %v1418 = vpop.f32.mrf.mxu0
        %v1419 = vadd.f32 0.0, %v1418
        %1420 = vdwg.mxu0
        %s1421 = scalar_lea.vmem [#allocation3], 28
        %v1422 = vld [vmem:[%s1421] sm:$0x7]
        %v1423 = vperm.slane %v1422, 0
        %v1424 = vmul.f32 %v1419, %v1423
        %v1425 = vperm.slane %v1422, 1
        %v1426 = vmul.f32 %v1419, %v1425
        %v1428 = vrot.slane %v1426, 1
        %v1430 = vadd.f32 %v1424, %v1428
        %v1431 = vperm.slane %v1422, 2
        %v1432 = vmul.f32 %v1419, %v1431
        %v1434 = vrot.slane %v1432, 2
        %v1436 = vadd.f32 %v1430, %v1434
        %s1437 = scalar_lea.vmem [#allocation5], 7
        %v1438 = vld [vmem:[%s1437] sm:$0x1]
        %v1440 = vperm.slane %v1438, 0
        %v1442 = vadd.f32 %v1436, %v1440
        %v1443 = vmax.f32 %v1442, 0.0
        %s1444 = scalar_lea.vmem [#allocation7], 7
        %v1445 = vld [vmem:[%s1444] sm:$0x1]
        %v1447 = vperm.slane %v1445, 0
        %v1449 = vmul.f32 %v1443, %v1447
        %s1450 = scalar_lea.vmem [#allocation8], 7
        %v1451 = vld [vmem:[%s1450] sm:$0x1]
        %v1453 = vperm.slane %v1451, 0
        %v1455 = vadd.f32 %v1449, %v1453
        %s1456 = scalar_lea.vmem [#allocation10], 896
        %v1457 = vld [vmem:[%s1456] sm:$0xff]
        %v1458 = vld [vmem:[%s1456 + $0x8] sm:$0xff]
        %v1459 = vld [vmem:[%s1456 + $0x10] sm:$0xff]
        %v1460 = vld [vmem:[%s1456 + $0x18] sm:$0xff]
        %v1461 = vld [vmem:[%s1456 + $0x20] sm:$0xff]
        %v1462 = vld [vmem:[%s1456 + $0x28] sm:$0xff]
        %v1463 = vld [vmem:[%s1456 + $0x30] sm:$0xff]
        %v1464 = vld [vmem:[%s1456 + $0x38] sm:$0xff]
        %v1465 = vld [vmem:[%s1456 + $0x40] sm:$0xff]
        %v1466 = vld [vmem:[%s1456 + $0x48] sm:$0xff]
        %v1467 = vld [vmem:[%s1456 + $0x50] sm:$0xff]
        %v1468 = vld [vmem:[%s1456 + $0x58] sm:$0xff]
        %v1469 = vld [vmem:[%s1456 + $0x60] sm:$0xff]
        %v1470 = vld [vmem:[%s1456 + $0x68] sm:$0xff]
        %v1471 = vld [vmem:[%s1456 + $0x70] sm:$0xff]
        %v1472 = vld [vmem:[%s1456 + $0x78] sm:$0xff]
        %s1473 = scalar_lea.vmem %s6, 7
        %v1474 = vld [vmem:[%s1473] sm:$0x1]
        %v1476 = vperm.slane %v1474, 0
        %1478 = vmatpush.msra.mxu0 %v1472
        %1479 = vmatpush.msra.mxu0 %v1471
        %1480 = vmatpush.msra.mxu0 %v1470
        %1481 = vmatpush.msra.mxu0 %v1469
        %1482 = vmatpush.msra.mxu0 %v1468
        %1483 = vmatpush.msra.mxu0 %v1467
        %1484 = vmatpush.msra.mxu0 %v1466
        %1485 = vmatpush.msra.mxu0 %v1465
        %1486 = vmatpush.msra.mxu0 %v1464
        %1487 = vmatpush.msra.mxu0 %v1463
        %1488 = vmatpush.msra.mxu0 %v1462
        %1489 = vmatpush.msra.mxu0 %v1461
        %1490 = vmatpush.msra.mxu0 %v1460
        %1491 = vmatpush.msra.mxu0 %v1459
        %1492 = vmatpush.msra.mxu0 %v1458
        %1493 = vmatpush.msra.mxu0 %v1457
        %1494 = vmatmul.f32.gmra.mxu0 %v1455
        %v1495 = vpop.f32.mrf.mxu0
        %v1496 = vadd.f32 %v1476, %v1495
        %1497 = vdwg.mxu0
        %v1498 = vmax.f32 %v1496, 0.0
        %s1499 = scalar_lea.vmem %s7, 7
        %v1500 = vld [vmem:[%s1499] sm:$0x1]
        %v1502 = vperm.slane %v1500, 0
        %v1504 = vmul.f32 %v1498, %v1502
        %s1505 = scalar_lea.vmem %s8, 7
        %v1506 = vld [vmem:[%s1505] sm:$0x1]
        %v1508 = vperm.slane %v1506, 0
        %v1510 = vadd.f32 %v1504, %v1508
        %v1511 = vmax.f32 %v1474, 0.0
        %v1512 = vmul.f32 %v1511, %v1500
        %v1513 = vadd.f32 %v1512, %v1506
        %1514 = vst [vmem:[#allocation2] sm:$0x1] -1e+30
        %1515 = vst [vmem:[#allocation2 + $0x1] sm:$0x1] %v1513
        %1516 = vst [vmem:[#allocation2 + $0x2] sm:$0xf] %v1510
        %1517 = vst [vmem:[#allocation2 + $0x6] sm:$0x1] %v1513
        %1518 = vst [vmem:[#allocation2 + $0x7] sm:$0x1] -1e+30
        %v1519 = vld [vmem:[#allocation2] sm:$0xff]
        %v1521 = vrot.slane %v1519, 1
        %v1523 = vmax.f32 %v1519, %v1521
        %v1525 = vsel %vm428, %v1523, 0
        %1527 = vmatpush.msra.mxu0 0.0
        %1528 = vmatpush.msra.mxu0 0.0
        %1529 = vmatpush.msra.mxu0 0.0
        %1530 = vmatpush.msra.mxu0 0.0
        %1531 = vmatpush.msra.mxu0 0.0
        %1532 = vmatpush.msra.mxu0 0.0
        %1533 = vmatpush.msra.mxu0 0.0
        %1534 = vmatpush.msra.mxu0 0.0
        %1535 = vmatpush.msra.mxu0 0.0
        %1536 = vmatpush.msra.mxu0 0.0
        %1537 = vmatpush.msra.mxu0 0.0
        %1538 = vmatpush.msra.mxu0 0.0
        %1539 = vmatpush.msra.mxu0 0.0
        %1540 = vmatpush.msra.mxu0 0.0
        %1541 = vmatpush.msra.mxu0 0.0
        %1542 = vmatpush.msra.mxu0 %v1525
        %1543 = vmatmul.f32.gmra.mxu0 %v1144
        %v1544 = vpop.f32.mrf.mxu0
        %v1545 = vadd.f32 0.0, %v1544
        %1546 = vdwg.mxu0
        %s1547 = scalar_lea.vmem [#allocation3], 32
        %v1548 = vld [vmem:[%s1547] sm:$0x7]
        %v1549 = vperm.slane %v1548, 0
        %v1550 = vmul.f32 %v1545, %v1549
        %v1551 = vperm.slane %v1548, 1
        %v1552 = vmul.f32 %v1545, %v1551
        %v1554 = vrot.slane %v1552, 1
        %v1556 = vadd.f32 %v1550, %v1554
        %v1557 = vperm.slane %v1548, 2
        %v1558 = vmul.f32 %v1545, %v1557
        %v1560 = vrot.slane %v1558, 2
        %v1562 = vadd.f32 %v1556, %v1560
        %s1563 = scalar_lea.vmem [#allocation5], 8
        %v1564 = vld [vmem:[%s1563] sm:$0x1]
        %v1566 = vperm.slane %v1564, 0
        %v1568 = vadd.f32 %v1562, %v1566
        %v1569 = vmax.f32 %v1568, 0.0
        %s1570 = scalar_lea.vmem [#allocation7], 8
        %v1571 = vld [vmem:[%s1570] sm:$0x1]
        %v1573 = vperm.slane %v1571, 0
        %v1575 = vmul.f32 %v1569, %v1573
        %s1576 = scalar_lea.vmem [#allocation8], 8
        %v1577 = vld [vmem:[%s1576] sm:$0x1]
        %v1579 = vperm.slane %v1577, 0
        %v1581 = vadd.f32 %v1575, %v1579
        %s1582 = scalar_lea.vmem [#allocation10], 1024
        %v1583 = vld [vmem:[%s1582] sm:$0xff]
        %v1584 = vld [vmem:[%s1582 + $0x8] sm:$0xff]
        %v1585 = vld [vmem:[%s1582 + $0x10] sm:$0xff]
        %v1586 = vld [vmem:[%s1582 + $0x18] sm:$0xff]
        %v1587 = vld [vmem:[%s1582 + $0x20] sm:$0xff]
        %v1588 = vld [vmem:[%s1582 + $0x28] sm:$0xff]
        %v1589 = vld [vmem:[%s1582 + $0x30] sm:$0xff]
        %v1590 = vld [vmem:[%s1582 + $0x38] sm:$0xff]
        %v1591 = vld [vmem:[%s1582 + $0x40] sm:$0xff]
        %v1592 = vld [vmem:[%s1582 + $0x48] sm:$0xff]
        %v1593 = vld [vmem:[%s1582 + $0x50] sm:$0xff]
        %v1594 = vld [vmem:[%s1582 + $0x58] sm:$0xff]
        %v1595 = vld [vmem:[%s1582 + $0x60] sm:$0xff]
        %v1596 = vld [vmem:[%s1582 + $0x68] sm:$0xff]
        %v1597 = vld [vmem:[%s1582 + $0x70] sm:$0xff]
        %v1598 = vld [vmem:[%s1582 + $0x78] sm:$0xff]
        %s1599 = scalar_lea.vmem %s6, 8
        %v1600 = vld [vmem:[%s1599] sm:$0x1]
        %v1602 = vperm.slane %v1600, 0
        %1604 = vmatpush.msra.mxu0 %v1598
        %1605 = vmatpush.msra.mxu0 %v1597
        %1606 = vmatpush.msra.mxu0 %v1596
        %1607 = vmatpush.msra.mxu0 %v1595
        %1608 = vmatpush.msra.mxu0 %v1594
        %1609 = vmatpush.msra.mxu0 %v1593
        %1610 = vmatpush.msra.mxu0 %v1592
        %1611 = vmatpush.msra.mxu0 %v1591
        %1612 = vmatpush.msra.mxu0 %v1590
        %1613 = vmatpush.msra.mxu0 %v1589
        %1614 = vmatpush.msra.mxu0 %v1588
        %1615 = vmatpush.msra.mxu0 %v1587
        %1616 = vmatpush.msra.mxu0 %v1586
        %1617 = vmatpush.msra.mxu0 %v1585
        %1618 = vmatpush.msra.mxu0 %v1584
        %1619 = vmatpush.msra.mxu0 %v1583
        %1620 = vmatmul.f32.gmra.mxu0 %v1581
        %v1621 = vpop.f32.mrf.mxu0
        %v1622 = vadd.f32 %v1602, %v1621
        %1623 = vdwg.mxu0
        %v1624 = vmax.f32 %v1622, 0.0
        %s1625 = scalar_lea.vmem %s7, 8
        %v1626 = vld [vmem:[%s1625] sm:$0x1]
        %v1628 = vperm.slane %v1626, 0
        %v1630 = vmul.f32 %v1624, %v1628
        %s1631 = scalar_lea.vmem %s8, 8
        %v1632 = vld [vmem:[%s1631] sm:$0x1]
        %v1634 = vperm.slane %v1632, 0
        %v1636 = vadd.f32 %v1630, %v1634
        %v1637 = vmax.f32 %v1600, 0.0
        %v1638 = vmul.f32 %v1637, %v1626
        %v1639 = vadd.f32 %v1638, %v1632
        %1640 = vst [vmem:[#allocation2] sm:$0x1] -1e+30
        %1641 = vst [vmem:[#allocation2 + $0x1] sm:$0x1] %v1639
        %1642 = vst [vmem:[#allocation2 + $0x2] sm:$0xf] %v1636
        %1643 = vst [vmem:[#allocation2 + $0x6] sm:$0x1] %v1639
        %1644 = vst [vmem:[#allocation2 + $0x7] sm:$0x1] -1e+30
        %v1645 = vld [vmem:[#allocation2] sm:$0xff]
        %v1647 = vrot.slane %v1645, 1
        %v1649 = vmax.f32 %v1645, %v1647
        %v1651 = vsel %vm428, %v1649, 0
        %1653 = vmatpush.msra.mxu0 0.0
        %1654 = vmatpush.msra.mxu0 0.0
        %1655 = vmatpush.msra.mxu0 0.0
        %1656 = vmatpush.msra.mxu0 0.0
        %1657 = vmatpush.msra.mxu0 0.0
        %1658 = vmatpush.msra.mxu0 0.0
        %1659 = vmatpush.msra.mxu0 0.0
        %1660 = vmatpush.msra.mxu0 0.0
        %1661 = vmatpush.msra.mxu0 0.0
        %1662 = vmatpush.msra.mxu0 0.0
        %1663 = vmatpush.msra.mxu0 0.0
        %1664 = vmatpush.msra.mxu0 0.0
        %1665 = vmatpush.msra.mxu0 0.0
        %1666 = vmatpush.msra.mxu0 0.0
        %1667 = vmatpush.msra.mxu0 0.0
        %1668 = vmatpush.msra.mxu0 %v1651
        %1669 = vmatmul.f32.gmra.mxu0 %v1144
        %v1670 = vpop.f32.mrf.mxu0
        %v1671 = vadd.f32 0.0, %v1670
        %1672 = vdwg.mxu0
        %1673 = vst [vmem:[%s413 - $0x1] sm:$0x1e] %v1671
        %p1674 = scmp.lt.s32.totalorder %s23, 3
        %s1675 = scalar_select %p1674, %s23, 3
        %s1676 = smul.addr %s1675, 4
        %s1677 = scalar_lea.vmem %s9, %s1676
        // Predicated region
        $region77: #{_lambda_.2} parent=55 // pred_check
          %p1678 = pneg %p235
        $region78: #{_lambda_.2} parent=55 // pred_check_branch
          %1680 = sbr.rel (%p1678) target = $region80
        $region79: #{_lambda_.2} parent=55 // pred_region
          _
        $region80: #{_lambda_.2} parent=55 // pred_fallthru
          _
      $region56: #{_lambda_.2} parent=5 // pred_fallthru
        _
      %p1681 = scmp.le.s32.totalorder 2, %s18
      // Predicated region
      $region81: #{_lambda_.2} parent=5 // pred_check
        %p1682 = pneg %p1681
      $region82: #{_lambda_.2} parent=5 // pred_check_branch
        %1684 = sbr.rel (%p1682) target = $region84
      $region83: #{_lambda_.2} parent=5 // pred_region
        %s1685 = ssub.s32 %s18, 2
        // Predicated region
        $region85: #{_lambda_.2} parent=83 // pred_check
          %p1686 = pneg %p241
        $region86: #{_lambda_.2} parent=83 // pred_check_branch
          %1688 = sbr.rel (%p1686) target = $region88
        $region87: #{_lambda_.2} parent=83 // pred_region
          %p1689 = scmp.lt.s32.totalorder %s24, 3
          %s1690 = scalar_select %p1689, %s24, 3
          %s1691 = smul.addr %s1690, 4
          %s1692 = scalar_lea.vmem %s9, %s1691
        $region88: #{_lambda_.2} parent=83 // pred_fallthru
          _
      $region84: #{_lambda_.2} parent=5 // pred_fallthru
        _
    $region6: #{_lambda_.2} parent=1 // loop_footer
      %s22 = sadd.s32 1, %s18
    $region7: #{_lambda_.2} parent=1 // loop_footer_branch
      %17 = sbr.rel target = $region3
    $region8: #{_lambda_.2} parent=1 // loop_exit
      _
    %1693 = vsyncpa [#allocation4], 1
    %s1694 = scalar_lea.sflag [#allocation4], 1
    %1695 = vsyncpa %s1694, 1
    %1696 = vsyncpa [#allocation6], 1
    %1697 = vsyncpa [#allocation9], 1

</llo_original>
